<compile_context>
chip_gen: v7x
topology: tpu7x:2x2x1
jax: 0.10.0
libtpu: 0.0.40
codegen_flags: <defaults>
</compile_context>

<pallas_src>
import math
import functools

import jax
import jax.numpy as jnp
from jax import lax
from jax.experimental import pallas as pl
from jax.experimental.pallas import tpu as pltpu

LAYER_NORM_EPS = 1e-12  # BERT default config.layer_norm_eps


def _layer_norm(x, gamma, beta):
    mean = jnp.mean(x, axis=-1, keepdims=True)
    var = jnp.mean(jnp.square(x - mean), axis=-1, keepdims=True)
    return (x - mean) * jax.lax.rsqrt(var + LAYER_NORM_EPS) * gamma + beta


def _gelu(x):
    # TODO(synk): BERT's default hidden_act is exact erf-GELU; tanh approximation used
    # because lax.erf has no Pallas/Mosaic lowering (~1e-3 max error).
    c = math.sqrt(2.0 / math.pi)
    return 0.5 * x * (1.0 + jnp.tanh(c * (x + 0.044715 * x * x * x)))


def _bert_layer_kernel(num_heads,
                       h_ref, mask_ref,
                       qkvw_ref, qkvb_ref,
                       aow_ref, aob_ref, ln1g_ref, ln1b_ref,
                       iw_ref, ib_ref, ow_ref, ob_ref, ln2g_ref, ln2b_ref,
                       out_ref):
    x = h_ref[0]                       # (S, H) f32 residual stream
    mask = mask_ref[0]                 # (1, S) additive attention mask, kept in f32
    S, H = x.shape
    head_dim = H // num_heads
    scale = 1.0 / math.sqrt(head_dim)

    x_bf = x.astype(jnp.bfloat16)

    # Fused QKV: one wide (S,H) x (H,3H) bf16 MXU matmul with f32 accumulation.
    qkv = jnp.dot(x_bf, qkvw_ref[...], preferred_element_type=jnp.float32) + qkvb_ref[...]
    q_all = (qkv[:, :H] * scale).astype(jnp.bfloat16)     # fold 1/sqrt(hd) into q once
    k_all = qkv[:, H:2 * H].astype(jnp.bfloat16)
    v_all = qkv[:, 2 * H:].astype(jnp.bfloat16)

    # Multi-head attention. Per-head 2-D matmuls; Q @ K^T is expressed with contracting
    # dims so no transpose is materialized, and each head's context is projected through
    # its (hd, H) slice of the attention-output weight and accumulated -> no concatenate.
    attn = None
    for h in range(num_heads):         # static unrolled loop over heads
        lo = h * head_dim
        qh = q_all[:, lo:lo + head_dim]
        kh = k_all[:, lo:lo + head_dim]
        vh = v_all[:, lo:lo + head_dim]

        # scores = (q * scale) @ k^T + mask   (stats stay f32; mask add stays f32)
        scores = lax.dot_general(qh, kh, (((1,), (1,)), ((), ())),
                                 preferred_element_type=jnp.float32)
        scores = scores + mask
        scores = scores - jnp.max(scores, axis=-1, keepdims=True)
        probs = jnp.exp(scores)                               # unnormalized, f32
        denom = jnp.sum(probs, axis=-1, keepdims=True)        # (S, 1) f32

        ctx = jnp.dot(probs.astype(jnp.bfloat16), vh,
                      preferred_element_type=jnp.float32)     # (S, hd)
        # Fold softmax normalization onto the narrow context (EUP reciprocal ~ free).
        ctx = ctx * pl.reciprocal(denom, approx=True)

        contrib = jnp.dot(ctx.astype(jnp.bfloat16), aow_ref[h],
                          preferred_element_type=jnp.float32)  # (S, H)
        attn = contrib if attn is None else attn + contrib

    # BertSelfOutput: dense (accumulated above) + residual + LayerNorm (f32).
    attn = attn + aob_ref[...]
    y = _layer_norm(attn + x, ln1g_ref[...], ln1b_ref[...])

    # BertIntermediate (GELU) + BertOutput + residual + LayerNorm.
    ff = jnp.dot(y.astype(jnp.bfloat16), iw_ref[...],
                 preferred_element_type=jnp.float32) + ib_ref[...]
    ff = _gelu(ff)                                             # f32 elementwise
    z = jnp.dot(ff.astype(jnp.bfloat16), ow_ref[...],
                preferred_element_type=jnp.float32) + ob_ref[...]
    out = _layer_norm(z + y, ln2g_ref[...], ln2b_ref[...])

    out_ref[0] = out.astype(out_ref.dtype)


def pack_layer_params(p, num_heads, compute_dtype=jnp.bfloat16):
    """Pack one BertLayer's params: fuse QKV, reshape ao_w per-head, cast weights to bf16."""
    H = p["q_w"].shape[0]
    head_dim = H // num_heads
    qkv_w = jnp.concatenate([p["q_w"], p["k_w"], p["v_w"]], axis=1)   # (H, 3H)
    qkv_b = jnp.concatenate([p["q_b"], p["k_b"], p["v_b"]], axis=1)   # (1, 3H)
    ao_w = p["ao_w"].reshape(num_heads, head_dim, H)                  # (nh, hd, H)
    f32 = jnp.float32
    return (
        qkv_w.astype(compute_dtype), qkv_b.astype(f32),
        ao_w.astype(compute_dtype), p["ao_b"].astype(f32),
        p["ln1_g"].astype(f32), p["ln1_b"].astype(f32),
        p["i_w"].astype(compute_dtype), p["i_b"].astype(f32),
        p["o_w"].astype(compute_dtype), p["o_b"].astype(f32),
        p["ln2_g"].astype(f32), p["ln2_b"].astype(f32),
    )


def _vmem_limit_bytes(S, H, inter, packed):
    """Explicit VMEM budget: weights (default-double-buffered) + activations + margin,
    clamped so it stays within v7x's 64 MiB physical VMEM."""
    param_bytes = sum(int(p.size) * p.dtype.itemsize for p in packed)
    act_bytes = 4 * (S * H * 4)                         # in/out (1,S,H) tiles, buffered
    inter_bytes = 4 * (S * max(3 * H, inter) + S * S + 4 * S * H)
    est = 2 * param_bytes + 2 * (act_bytes + inter_bytes) + (4 << 20)
    return int(min(max(est, 32 << 20), 64 << 20))


def bert_layer_forward(hidden, ext_mask, packed, num_heads):
    """One BertLayer over the whole batch; grid=(B,) with one batch element per step."""
    B, S, H = hidden.shape
    inter = packed[6].shape[1]

    in_specs = [
        pl.BlockSpec((1, S, H), lambda b: (b, 0, 0)),    # per-batch hidden tile
        pl.BlockSpec((1, 1, S), lambda b: (b, 0, 0)),    # per-batch additive mask
    ]
    # Weights/biases: full-array blocks with a constant index_map, so they are DMA'd
    # once and reused for every grid step.
    for p in packed:
        in_specs.append(pl.BlockSpec(p.shape, lambda b, nd=p.ndim: (0,) * nd))

    kernel = functools.partial(_bert_layer_kernel, num_heads)
    return pl.pallas_call(
        kernel,
        out_shape=jax.ShapeDtypeStruct((B, S, H), hidden.dtype),
        grid=(B,),
        in_specs=in_specs,
        out_specs=pl.BlockSpec((1, S, H), lambda b: (b, 0, 0)),
        compiler_params=pltpu.CompilerParams(
            dimension_semantics=("parallel",),
            vmem_limit_bytes=_vmem_limit_bytes(S, H, inter, packed),
        ),
    )(hidden, ext_mask, *packed)


def bert_encoder_forward(hidden_states, attention_mask, main_params, train_params, num_heads):
    """Reproduces BertEncoder.forward: returns (last_hidden_state, last_hidden_state_train)."""
    B, S, H = hidden_states.shape
    assert H % num_heads == 0, "hidden_size must be a multiple of num_attention_heads"

    # HF extended attention mask: (1 - mask) * min_float, broadcast over heads/query dim.
    # Kept (and consumed) in f32 so the large negative never hits bf16.
    ext_mask = ((1.0 - attention_mask.astype(jnp.float32))
                * jnp.finfo(jnp.float32).min)[:, None, :]               # (B, 1, S)

    main_packed = [pack_layer_params(p, num_heads) for p in main_params]
    train_packed = [pack_layer_params(p, num_heads) for p in train_params]

    n_main, n_train = len(main_packed), len(train_packed)
    start = n_main - n_train           # train branch begins at this main-layer index
    h = hidden_states
    h_train = None
    for i in range(n_main):
        if i == start:
            h_train = h                # pre-layer-i hidden state seeds the train branch
        if i >= start:
            h_train = bert_layer_forward(h_train, ext_mask, train_packed[i - start], num_heads)
        h = bert_layer_forward(h, ext_mask, main_packed[i], num_heads)
    return h, h_train


# ---------------- pure-JAX reference (f32 everywhere) for a sanity check ----------------

def _bert_layer_reference(h, ext_mask, p, num_heads):
    B, S, H = h.shape
    hd = H // num_heads

    def heads(t):
        return t.reshape(B, S, num_heads, hd).transpose(0, 2, 1, 3)

    q = heads(h @ p["q_w"] + p["q_b"])
    k = heads(h @ p["k_w"] + p["k_b"])
    v = heads(h @ p["v_w"] + p["v_b"])
    scores = jnp.einsum("bhqd,bhkd->bhqk", q, k) / math.sqrt(hd)
    scores = scores + ext_mask[:, None, :, :]
    probs = jax.nn.softmax(scores, axis=-1)
    ctx = jnp.einsum("bhqk,bhkd->bhqd", probs, v)
    ctx = ctx.transpose(0, 2, 1, 3).reshape(B, S, H)
    attn = ctx @ p["ao_w"] + p["ao_b"]
    y = _layer_norm(attn + h, p["ln1_g"], p["ln1_b"])
    ff = _gelu(y @ p["i_w"] + p["i_b"])
    z = ff @ p["o_w"] + p["o_b"]
    return _layer_norm(z + y, p["ln2_g"], p["ln2_b"])


def bert_encoder_reference(hidden_states, attention_mask, main_params, train_params, num_heads):
    ext_mask = ((1.0 - attention_mask.astype(jnp.float32))
                * jnp.finfo(jnp.float32).min)[:, None, :]
    n_main, n_train = len(main_params), len(train_params)
    start = n_main - n_train
    h = hidden_states
    h_train = None
    for i in range(n_main):
        if i == start:
            h_train = h
        if i >= start:
            h_train = _bert_layer_reference(h_train, ext_mask, train_params[i - start], num_heads)
        h = _bert_layer_reference(h, ext_mask, main_params[i], num_heads)
    return h, h_train


def init_layer_params(key, H, I):
    keys = jax.random.split(key, 6)
    std = 0.02  # BERT initializer_range

    def w(k, shape):
        return jax.random.normal(k, shape, jnp.float32) * std

    z = lambda n: jnp.zeros((1, n), jnp.float32)
    o = lambda n: jnp.ones((1, n), jnp.float32)
    return dict(
        q_w=w(keys[0], (H, H)), q_b=z(H),
        k_w=w(keys[1], (H, H)), k_b=z(H),
        v_w=w(keys[2], (H, H)), v_b=z(H),
        ao_w=w(keys[3], (H, H)), ao_b=z(H),
        ln1_g=o(H), ln1_b=z(H),
        i_w=w(keys[4], (H, I)), i_b=z(I),
        o_w=w(keys[5], (I, H)), o_b=z(H),
        ln2_g=o(H), ln2_b=z(H),
    )


if __name__ == "__main__":
    # Small config: hidden=32, heads=4 (head_dim=8), intermediate=64, seq=8, batch=2.
    # num_hidden_layers must be >= 12 because BertEncoder hardcodes 12 train layers.
    B, S, H, NH, INTER = 2, 8, 32, 4, 64
    NUM_LAYERS, NUM_TRAIN = 12, 12

    key = jax.random.PRNGKey(0)
    k_hidden, k_main, k_train = jax.random.split(key, 3)

    hidden_states = jax.random.normal(k_hidden, (B, S, H), jnp.float32)
    attention_mask = jnp.ones((B, S), jnp.float32)

    main_params = [init_layer_params(k, H, INTER) for k in jax.random.split(k_main, NUM_LAYERS)]
    train_params = [init_layer_params(k, H, INTER) for k in jax.random.split(k_train, NUM_TRAIN)]

    fwd = jax.jit(functools.partial(bert_encoder_forward, num_heads=NH))
    last_hidden, last_hidden_train = fwd(hidden_states, attention_mask, main_params, train_params)
    jax.block_until_ready((last_hidden, last_hidden_train))

    assert last_hidden.shape == (B, S, H)
    assert last_hidden_train.shape == (B, S, H)
    assert bool(jnp.all(jnp.isfinite(last_hidden))) and bool(jnp.all(jnp.isfinite(last_hidden_train)))

    # Sanity check against an f32 pure-JAX reference (bf16 MXU operands => loose tolerance).
    ref_h, ref_t = bert_encoder_reference(hidden_states, attention_mask,
                                          main_params, train_params, NH)
    max_diff = float(jnp.maximum(jnp.max(jnp.abs(last_hidden - ref_h)),
                                 jnp.max(jnp.abs(last_hidden_train - ref_t))))
    assert max_diff < 0.15, f"kernel deviates from reference: max_diff={max_diff}"

    print("KERNEL_OK")
</pallas_src>

<mosaic_0001>
module attributes {stable_mosaic.version = 11 : i64} {
  func.func @_bert_layer_kernel(%arg0: i32, %arg1: memref<1x8x32xf32, #tpu.memory_space<vmem>>, %arg2: memref<1x1x8xf32, #tpu.memory_space<vmem>>, %arg3: memref<32x96xbf16, #tpu.memory_space<vmem>>, %arg4: memref<1x96xf32, #tpu.memory_space<vmem>>, %arg5: memref<4x8x32xbf16, #tpu.memory_space<vmem>>, %arg6: memref<1x32xf32, #tpu.memory_space<vmem>>, %arg7: memref<1x32xf32, #tpu.memory_space<vmem>>, %arg8: memref<1x32xf32, #tpu.memory_space<vmem>>, %arg9: memref<32x64xbf16, #tpu.memory_space<vmem>>, %arg10: memref<1x64xf32, #tpu.memory_space<vmem>>, %arg11: memref<64x32xbf16, #tpu.memory_space<vmem>>, %arg12: memref<1x32xf32, #tpu.memory_space<vmem>>, %arg13: memref<1x32xf32, #tpu.memory_space<vmem>>, %arg14: memref<1x32xf32, #tpu.memory_space<vmem>>, %arg15: memref<1x8x32xf32, #tpu.memory_space<vmem>>) attributes {dimension_semantics = [#tpu.dimension_semantics<parallel>], iteration_bounds = array<i64: 2>, scalar_prefetch = 0 : i64, scratch_operands = 0 : i64, tpu.core_type = #tpu.core_type<tc>, window_params = [{transform_indices = @transform_0, window_bounds = array<i64: 1, 8, 32>}, {transform_indices = @transform_1, window_bounds = array<i64: 1, 1, 8>}, {pipeline_mode = #tpu.pipeline_mode<synchronous>, transform_indices = @transform_2, window_bounds = array<i64: 32, 96>}, {pipeline_mode = #tpu.pipeline_mode<synchronous>, transform_indices = @transform_3, window_bounds = array<i64: 1, 96>}, {pipeline_mode = #tpu.pipeline_mode<synchronous>, transform_indices = @transform_4, window_bounds = array<i64: 4, 8, 32>}, {pipeline_mode = #tpu.pipeline_mode<synchronous>, transform_indices = @transform_5, window_bounds = array<i64: 1, 32>}, {pipeline_mode = #tpu.pipeline_mode<synchronous>, transform_indices = @transform_6, window_bounds = array<i64: 1, 32>}, {pipeline_mode = #tpu.pipeline_mode<synchronous>, transform_indices = @transform_7, window_bounds = array<i64: 1, 32>}, {pipeline_mode = #tpu.pipeline_mode<synchronous>, transform_indices = @transform_8, window_bounds = array<i64: 32, 64>}, {pipeline_mode = #tpu.pipeline_mode<synchronous>, transform_indices = @transform_9, window_bounds = array<i64: 1, 64>}, {pipeline_mode = #tpu.pipeline_mode<synchronous>, transform_indices = @transform_10, window_bounds = array<i64: 64, 32>}, {pipeline_mode = #tpu.pipeline_mode<synchronous>, transform_indices = @transform_11, window_bounds = array<i64: 1, 32>}, {pipeline_mode = #tpu.pipeline_mode<synchronous>, transform_indices = @transform_12, window_bounds = array<i64: 1, 32>}, {pipeline_mode = #tpu.pipeline_mode<synchronous>, transform_indices = @transform_13, window_bounds = array<i64: 1, 32>}, {transform_indices = @transform_14, window_bounds = array<i64: 1, 8, 32>}]} {
    %c0 = arith.constant 0 : index
    %c0_0 = arith.constant 0 : index
    %c0_1 = arith.constant 0 : index
    %0 = vector.load %arg1[%c0, %c0_0, %c0_1] : memref<1x8x32xf32, #tpu.memory_space<vmem>>, vector<1x8x32xf32>
    %1 = vector.shape_cast %0 : vector<1x8x32xf32> to vector<8x32xf32>
    %c0_2 = arith.constant 0 : index
    %c0_3 = arith.constant 0 : index
    %c0_4 = arith.constant 0 : index
    %2 = vector.load %arg2[%c0_2, %c0_3, %c0_4] : memref<1x1x8xf32, #tpu.memory_space<vmem>>, vector<1x1x8xf32>
    %3 = vector.shape_cast %2 : vector<1x1x8xf32> to vector<1x8xf32>
    %4 = arith.truncf %1 : vector<8x32xf32> to vector<8x32xbf16>
    %c0_5 = arith.constant 0 : index
    %c0_6 = arith.constant 0 : index
    %5 = vector.load %arg3[%c0_5, %c0_6] : memref<32x96xbf16, #tpu.memory_space<vmem>>, vector<32x96xbf16>
    %cst = arith.constant dense<0.000000e+00> : vector<8x96xf32>
    %6 = tpu.matmul %4, %5, %cst {dimension_numbers = #tpu.dot_dimension_numbers<[1], [0], [0], [1], [0, 0, 1, 1], [], []>} : vector<8x32xbf16>, vector<32x96xbf16>, vector<8x96xf32> -> vector<8x96xf32>
    %c0_7 = arith.constant 0 : index
    %c0_8 = arith.constant 0 : index
    %7 = vector.load %arg4[%c0_7, %c0_8] : memref<1x96xf32, #tpu.memory_space<vmem>>, vector<1x96xf32>
    %8 = vector.broadcast %7 : vector<1x96xf32> to vector<8x96xf32>
    %9 = arith.addf %6, %8 : vector<8x96xf32>
    %10 = vector.extract_strided_slice %9 {offsets = [0, 0], sizes = [8, 32], strides = [1, 1]} : vector<8x96xf32> to vector<8x32xf32>
    %cst_9 = arith.constant 0.353553385 : f32
    %11 = vector.broadcast %cst_9 : f32 to vector<8x32xf32>
    %12 = arith.mulf %10, %11 : vector<8x32xf32>
    %13 = arith.truncf %12 : vector<8x32xf32> to vector<8x32xbf16>
    %14 = vector.extract_strided_slice %9 {offsets = [0, 32], sizes = [8, 32], strides = [1, 1]} : vector<8x96xf32> to vector<8x32xf32>
    %15 = arith.truncf %14 : vector<8x32xf32> to vector<8x32xbf16>
    %16 = vector.extract_strided_slice %9 {offsets = [0, 64], sizes = [8, 32], strides = [1, 1]} : vector<8x96xf32> to vector<8x32xf32>
    %17 = arith.truncf %16 : vector<8x32xf32> to vector<8x32xbf16>
    %18 = vector.extract_strided_slice %13 {offsets = [0, 0], sizes = [8, 8], strides = [1, 1]} : vector<8x32xbf16> to vector<8x8xbf16>
    %19 = vector.extract_strided_slice %15 {offsets = [0, 0], sizes = [8, 8], strides = [1, 1]} : vector<8x32xbf16> to vector<8x8xbf16>
    %20 = vector.extract_strided_slice %17 {offsets = [0, 0], sizes = [8, 8], strides = [1, 1]} : vector<8x32xbf16> to vector<8x8xbf16>
    %cst_10 = arith.constant dense<0.000000e+00> : vector<8x8xf32>
    %21 = tpu.matmul %18, %19, %cst_10 {dimension_numbers = #tpu.dot_dimension_numbers<[1], [1], [0], [0], [0, 0, 1, 0], [], []>} : vector<8x8xbf16>, vector<8x8xbf16>, vector<8x8xf32> -> vector<8x8xf32>
    %22 = vector.broadcast %3 : vector<1x8xf32> to vector<8x8xf32>
    %23 = arith.addf %21, %22 : vector<8x8xf32>
    %cst_11 = arith.constant dense<0xFF800000> : vector<8xf32>
    %24 = vector.multi_reduction <maximumf>, %23, %cst_11 [1] : vector<8x8xf32> to vector<8xf32>
    %25 = vector.shape_cast %24 : vector<8xf32> to vector<8x1xf32>
    %26 = vector.broadcast %25 : vector<8x1xf32> to vector<8x8xf32>
    %27 = arith.subf %23, %26 : vector<8x8xf32>
    %28 = math.exp %27 : vector<8x8xf32>
    %cst_12 = arith.constant dense<0.000000e+00> : vector<8xf32>
    %29 = vector.multi_reduction <add>, %28, %cst_12 [1] : vector<8x8xf32> to vector<8xf32>
    %30 = vector.shape_cast %29 : vector<8xf32> to vector<8x1xf32>
    %31 = arith.truncf %28 : vector<8x8xf32> to vector<8x8xbf16>
    %cst_13 = arith.constant dense<0.000000e+00> : vector<8x8xf32>
    %32 = tpu.matmul %31, %20, %cst_13 {dimension_numbers = #tpu.dot_dimension_numbers<[1], [0], [0], [1], [0, 0, 1, 1], [], []>} : vector<8x8xbf16>, vector<8x8xbf16>, vector<8x8xf32> -> vector<8x8xf32>
    %33 = tpu.reciprocal %30 {approx = true} : vector<8x1xf32> -> vector<8x1xf32>
    %34 = vector.broadcast %33 : vector<8x1xf32> to vector<8x8xf32>
    %35 = arith.mulf %32, %34 : vector<8x8xf32>
    %36 = arith.truncf %35 : vector<8x8xf32> to vector<8x8xbf16>
    %c0_14 = arith.constant 0 : index
    %c0_15 = arith.constant 0 : index
    %c0_16 = arith.constant 0 : index
    %37 = vector.load %arg5[%c0_14, %c0_15, %c0_16] : memref<4x8x32xbf16, #tpu.memory_space<vmem>>, vector<1x8x32xbf16>
    %38 = vector.shape_cast %37 : vector<1x8x32xbf16> to vector<8x32xbf16>
    %cst_17 = arith.constant dense<0.000000e+00> : vector<8x32xf32>
    %39 = tpu.matmul %36, %38, %cst_17 {dimension_numbers = #tpu.dot_dimension_numbers<[1], [0], [0], [1], [0, 0, 1, 1], [], []>} : vector<8x8xbf16>, vector<8x32xbf16>, vector<8x32xf32> -> vector<8x32xf32>
    %40 = vector.extract_strided_slice %13 {offsets = [0, 8], sizes = [8, 8], strides = [1, 1]} : vector<8x32xbf16> to vector<8x8xbf16>
    %41 = vector.extract_strided_slice %15 {offsets = [0, 8], sizes = [8, 8], strides = [1, 1]} : vector<8x32xbf16> to vector<8x8xbf16>
    %42 = vector.extract_strided_slice %17 {offsets = [0, 8], sizes = [8, 8], strides = [1, 1]} : vector<8x32xbf16> to vector<8x8xbf16>
    %cst_18 = arith.constant dense<0.000000e+00> : vector<8x8xf32>
    %43 = tpu.matmul %40, %41, %cst_18 {dimension_numbers = #tpu.dot_dimension_numbers<[1], [1], [0], [0], [0, 0, 1, 0], [], []>} : vector<8x8xbf16>, vector<8x8xbf16>, vector<8x8xf32> -> vector<8x8xf32>
    %44 = vector.broadcast %3 : vector<1x8xf32> to vector<8x8xf32>
    %45 = arith.addf %43, %44 : vector<8x8xf32>
    %cst_19 = arith.constant dense<0xFF800000> : vector<8xf32>
    %46 = vector.multi_reduction <maximumf>, %45, %cst_19 [1] : vector<8x8xf32> to vector<8xf32>
    %47 = vector.shape_cast %46 : vector<8xf32> to vector<8x1xf32>
    %48 = vector.broadcast %47 : vector<8x1xf32> to vector<8x8xf32>
    %49 = arith.subf %45, %48 : vector<8x8xf32>
    %50 = math.exp %49 : vector<8x8xf32>
    %cst_20 = arith.constant dense<0.000000e+00> : vector<8xf32>
    %51 = vector.multi_reduction <add>, %50, %cst_20 [1] : vector<8x8xf32> to vector<8xf32>
    %52 = vector.shape_cast %51 : vector<8xf32> to vector<8x1xf32>
    %53 = arith.truncf %50 : vector<8x8xf32> to vector<8x8xbf16>
    %cst_21 = arith.constant dense<0.000000e+00> : vector<8x8xf32>
    %54 = tpu.matmul %53, %42, %cst_21 {dimension_numbers = #tpu.dot_dimension_numbers<[1], [0], [0], [1], [0, 0, 1, 1], [], []>} : vector<8x8xbf16>, vector<8x8xbf16>, vector<8x8xf32> -> vector<8x8xf32>
    %55 = tpu.reciprocal %52 {approx = true} : vector<8x1xf32> -> vector<8x1xf32>
    %56 = vector.broadcast %55 : vector<8x1xf32> to vector<8x8xf32>
    %57 = arith.mulf %54, %56 : vector<8x8xf32>
    %58 = arith.truncf %57 : vector<8x8xf32> to vector<8x8xbf16>
    %c1 = arith.constant 1 : index
    %c0_22 = arith.constant 0 : index
    %c0_23 = arith.constant 0 : index
    %59 = vector.load %arg5[%c1, %c0_22, %c0_23] : memref<4x8x32xbf16, #tpu.memory_space<vmem>>, vector<1x8x32xbf16>
    %60 = vector.shape_cast %59 : vector<1x8x32xbf16> to vector<8x32xbf16>
    %cst_24 = arith.constant dense<0.000000e+00> : vector<8x32xf32>
    %61 = tpu.matmul %58, %60, %cst_24 {dimension_numbers = #tpu.dot_dimension_numbers<[1], [0], [0], [1], [0, 0, 1, 1], [], []>} : vector<8x8xbf16>, vector<8x32xbf16>, vector<8x32xf32> -> vector<8x32xf32>
    %62 = arith.addf %39, %61 : vector<8x32xf32>
    %63 = vector.extract_strided_slice %13 {offsets = [0, 16], sizes = [8, 8], strides = [1, 1]} : vector<8x32xbf16> to vector<8x8xbf16>
    %64 = vector.extract_strided_slice %15 {offsets = [0, 16], sizes = [8, 8], strides = [1, 1]} : vector<8x32xbf16> to vector<8x8xbf16>
    %65 = vector.extract_strided_slice %17 {offsets = [0, 16], sizes = [8, 8], strides = [1, 1]} : vector<8x32xbf16> to vector<8x8xbf16>
    %cst_25 = arith.constant dense<0.000000e+00> : vector<8x8xf32>
    %66 = tpu.matmul %63, %64, %cst_25 {dimension_numbers = #tpu.dot_dimension_numbers<[1], [1], [0], [0], [0, 0, 1, 0], [], []>} : vector<8x8xbf16>, vector<8x8xbf16>, vector<8x8xf32> -> vector<8x8xf32>
    %67 = vector.broadcast %3 : vector<1x8xf32> to vector<8x8xf32>
    %68 = arith.addf %66, %67 : vector<8x8xf32>
    %cst_26 = arith.constant dense<0xFF800000> : vector<8xf32>
    %69 = vector.multi_reduction <maximumf>, %68, %cst_26 [1] : vector<8x8xf32> to vector<8xf32>
    %70 = vector.shape_cast %69 : vector<8xf32> to vector<8x1xf32>
    %71 = vector.broadcast %70 : vector<8x1xf32> to vector<8x8xf32>
    %72 = arith.subf %68, %71 : vector<8x8xf32>
    %73 = math.exp %72 : vector<8x8xf32>
    %cst_27 = arith.constant dense<0.000000e+00> : vector<8xf32>
    %74 = vector.multi_reduction <add>, %73, %cst_27 [1] : vector<8x8xf32> to vector<8xf32>
    %75 = vector.shape_cast %74 : vector<8xf32> to vector<8x1xf32>
    %76 = arith.truncf %73 : vector<8x8xf32> to vector<8x8xbf16>
    %cst_28 = arith.constant dense<0.000000e+00> : vector<8x8xf32>
    %77 = tpu.matmul %76, %65, %cst_28 {dimension_numbers = #tpu.dot_dimension_numbers<[1], [0], [0], [1], [0, 0, 1, 1], [], []>} : vector<8x8xbf16>, vector<8x8xbf16>, vector<8x8xf32> -> vector<8x8xf32>
    %78 = tpu.reciprocal %75 {approx = true} : vector<8x1xf32> -> vector<8x1xf32>
    %79 = vector.broadcast %78 : vector<8x1xf32> to vector<8x8xf32>
    %80 = arith.mulf %77, %79 : vector<8x8xf32>
    %81 = arith.truncf %80 : vector<8x8xf32> to vector<8x8xbf16>
    %c2 = arith.constant 2 : index
    %c0_29 = arith.constant 0 : index
    %c0_30 = arith.constant 0 : index
    %82 = vector.load %arg5[%c2, %c0_29, %c0_30] : memref<4x8x32xbf16, #tpu.memory_space<vmem>>, vector<1x8x32xbf16>
    %83 = vector.shape_cast %82 : vector<1x8x32xbf16> to vector<8x32xbf16>
    %cst_31 = arith.constant dense<0.000000e+00> : vector<8x32xf32>
    %84 = tpu.matmul %81, %83, %cst_31 {dimension_numbers = #tpu.dot_dimension_numbers<[1], [0], [0], [1], [0, 0, 1, 1], [], []>} : vector<8x8xbf16>, vector<8x32xbf16>, vector<8x32xf32> -> vector<8x32xf32>
    %85 = arith.addf %62, %84 : vector<8x32xf32>
    %86 = vector.extract_strided_slice %13 {offsets = [0, 24], sizes = [8, 8], strides = [1, 1]} : vector<8x32xbf16> to vector<8x8xbf16>
    %87 = vector.extract_strided_slice %15 {offsets = [0, 24], sizes = [8, 8], strides = [1, 1]} : vector<8x32xbf16> to vector<8x8xbf16>
    %88 = vector.extract_strided_slice %17 {offsets = [0, 24], sizes = [8, 8], strides = [1, 1]} : vector<8x32xbf16> to vector<8x8xbf16>
    %cst_32 = arith.constant dense<0.000000e+00> : vector<8x8xf32>
    %89 = tpu.matmul %86, %87, %cst_32 {dimension_numbers = #tpu.dot_dimension_numbers<[1], [1], [0], [0], [0, 0, 1, 0], [], []>} : vector<8x8xbf16>, vector<8x8xbf16>, vector<8x8xf32> -> vector<8x8xf32>
    %90 = vector.broadcast %3 : vector<1x8xf32> to vector<8x8xf32>
    %91 = arith.addf %89, %90 : vector<8x8xf32>
    %cst_33 = arith.constant dense<0xFF800000> : vector<8xf32>
    %92 = vector.multi_reduction <maximumf>, %91, %cst_33 [1] : vector<8x8xf32> to vector<8xf32>
    %93 = vector.shape_cast %92 : vector<8xf32> to vector<8x1xf32>
    %94 = vector.broadcast %93 : vector<8x1xf32> to vector<8x8xf32>
    %95 = arith.subf %91, %94 : vector<8x8xf32>
    %96 = math.exp %95 : vector<8x8xf32>
    %cst_34 = arith.constant dense<0.000000e+00> : vector<8xf32>
    %97 = vector.multi_reduction <add>, %96, %cst_34 [1] : vector<8x8xf32> to vector<8xf32>
    %98 = vector.shape_cast %97 : vector<8xf32> to vector<8x1xf32>
    %99 = arith.truncf %96 : vector<8x8xf32> to vector<8x8xbf16>
    %cst_35 = arith.constant dense<0.000000e+00> : vector<8x8xf32>
    %100 = tpu.matmul %99, %88, %cst_35 {dimension_numbers = #tpu.dot_dimension_numbers<[1], [0], [0], [1], [0, 0, 1, 1], [], []>} : vector<8x8xbf16>, vector<8x8xbf16>, vector<8x8xf32> -> vector<8x8xf32>
    %101 = tpu.reciprocal %98 {approx = true} : vector<8x1xf32> -> vector<8x1xf32>
    %102 = vector.broadcast %101 : vector<8x1xf32> to vector<8x8xf32>
    %103 = arith.mulf %100, %102 : vector<8x8xf32>
    %104 = arith.truncf %103 : vector<8x8xf32> to vector<8x8xbf16>
    %c3 = arith.constant 3 : index
    %c0_36 = arith.constant 0 : index
    %c0_37 = arith.constant 0 : index
    %105 = vector.load %arg5[%c3, %c0_36, %c0_37] : memref<4x8x32xbf16, #tpu.memory_space<vmem>>, vector<1x8x32xbf16>
    %106 = vector.shape_cast %105 : vector<1x8x32xbf16> to vector<8x32xbf16>
    %cst_38 = arith.constant dense<0.000000e+00> : vector<8x32xf32>
    %107 = tpu.matmul %104, %106, %cst_38 {dimension_numbers = #tpu.dot_dimension_numbers<[1], [0], [0], [1], [0, 0, 1, 1], [], []>} : vector<8x8xbf16>, vector<8x32xbf16>, vector<8x32xf32> -> vector<8x32xf32>
    %108 = arith.addf %85, %107 : vector<8x32xf32>
    %c0_39 = arith.constant 0 : index
    %c0_40 = arith.constant 0 : index
    %109 = vector.load %arg6[%c0_39, %c0_40] : memref<1x32xf32, #tpu.memory_space<vmem>>, vector<1x32xf32>
    %110 = vector.broadcast %109 : vector<1x32xf32> to vector<8x32xf32>
    %111 = arith.addf %108, %110 : vector<8x32xf32>
    %112 = arith.addf %111, %1 : vector<8x32xf32>
    %c0_41 = arith.constant 0 : index
    %c0_42 = arith.constant 0 : index
    %113 = vector.load %arg7[%c0_41, %c0_42] : memref<1x32xf32, #tpu.memory_space<vmem>>, vector<1x32xf32>
    %c0_43 = arith.constant 0 : index
    %c0_44 = arith.constant 0 : index
    %114 = vector.load %arg8[%c0_43, %c0_44] : memref<1x32xf32, #tpu.memory_space<vmem>>, vector<1x32xf32>
    %cst_45 = arith.constant dense<0.000000e+00> : vector<8xf32>
    %115 = vector.multi_reduction <add>, %112, %cst_45 [1] : vector<8x32xf32> to vector<8xf32>
    %116 = vector.shape_cast %115 : vector<8xf32> to vector<8x1xf32>
    %cst_46 = arith.constant 3.200000e+01 : f32
    %117 = vector.broadcast %cst_46 : f32 to vector<8x1xf32>
    %118 = arith.divf %116, %117 : vector<8x1xf32>
    %119 = vector.broadcast %118 : vector<8x1xf32> to vector<8x32xf32>
    %120 = arith.subf %112, %119 : vector<8x32xf32>
    %121 = arith.mulf %120, %120 : vector<8x32xf32>
    %cst_47 = arith.constant dense<0.000000e+00> : vector<8xf32>
    %122 = vector.multi_reduction <add>, %121, %cst_47 [1] : vector<8x32xf32> to vector<8xf32>
    %123 = vector.shape_cast %122 : vector<8xf32> to vector<8x1xf32>
    %cst_48 = arith.constant 3.200000e+01 : f32
    %124 = vector.broadcast %cst_48 : f32 to vector<8x1xf32>
    %125 = arith.divf %123, %124 : vector<8x1xf32>
    %126 = vector.broadcast %118 : vector<8x1xf32> to vector<8x32xf32>
    %127 = arith.subf %112, %126 : vector<8x32xf32>
    %cst_49 = arith.constant 9.99999996E-13 : f32
    %128 = vector.broadcast %cst_49 : f32 to vector<8x1xf32>
    %129 = arith.addf %125, %128 : vector<8x1xf32>
    %130 = math.rsqrt %129 : vector<8x1xf32>
    %131 = vector.broadcast %130 : vector<8x1xf32> to vector<8x32xf32>
    %132 = arith.mulf %127, %131 : vector<8x32xf32>
    %133 = vector.broadcast %113 : vector<1x32xf32> to vector<8x32xf32>
    %134 = arith.mulf %132, %133 : vector<8x32xf32>
    %135 = vector.broadcast %114 : vector<1x32xf32> to vector<8x32xf32>
    %136 = arith.addf %134, %135 : vector<8x32xf32>
    %137 = arith.truncf %136 : vector<8x32xf32> to vector<8x32xbf16>
    %c0_50 = arith.constant 0 : index
    %c0_51 = arith.constant 0 : index
    %138 = vector.load %arg9[%c0_50, %c0_51] : memref<32x64xbf16, #tpu.memory_space<vmem>>, vector<32x64xbf16>
    %cst_52 = arith.constant dense<0.000000e+00> : vector<8x64xf32>
    %139 = tpu.matmul %137, %138, %cst_52 {dimension_numbers = #tpu.dot_dimension_numbers<[1], [0], [0], [1], [0, 0, 1, 1], [], []>} : vector<8x32xbf16>, vector<32x64xbf16>, vector<8x64xf32> -> vector<8x64xf32>
    %c0_53 = arith.constant 0 : index
    %c0_54 = arith.constant 0 : index
    %140 = vector.load %arg10[%c0_53, %c0_54] : memref<1x64xf32, #tpu.memory_space<vmem>>, vector<1x64xf32>
    %141 = vector.broadcast %140 : vector<1x64xf32> to vector<8x64xf32>
    %142 = arith.addf %139, %141 : vector<8x64xf32>
    %cst_55 = arith.constant 5.000000e-01 : f32
    %143 = vector.broadcast %cst_55 : f32 to vector<8x64xf32>
    %144 = arith.mulf %143, %142 : vector<8x64xf32>
    %cst_56 = arith.constant 4.471500e-02 : f32
    %145 = vector.broadcast %cst_56 : f32 to vector<8x64xf32>
    %146 = arith.mulf %145, %142 : vector<8x64xf32>
    %147 = arith.mulf %146, %142 : vector<8x64xf32>
    %148 = arith.mulf %147, %142 : vector<8x64xf32>
    %149 = arith.addf %142, %148 : vector<8x64xf32>
    %cst_57 = arith.constant 0.797884583 : f32
    %150 = vector.broadcast %cst_57 : f32 to vector<8x64xf32>
    %151 = arith.mulf %150, %149 : vector<8x64xf32>
    %152 = math.tanh %151 : vector<8x64xf32>
    %cst_58 = arith.constant 1.000000e+00 : f32
    %153 = vector.broadcast %cst_58 : f32 to vector<8x64xf32>
    %154 = arith.addf %153, %152 : vector<8x64xf32>
    %155 = arith.mulf %144, %154 : vector<8x64xf32>
    %156 = arith.truncf %155 : vector<8x64xf32> to vector<8x64xbf16>
    %c0_59 = arith.constant 0 : index
    %c0_60 = arith.constant 0 : index
    %157 = vector.load %arg11[%c0_59, %c0_60] : memref<64x32xbf16, #tpu.memory_space<vmem>>, vector<64x32xbf16>
    %cst_61 = arith.constant dense<0.000000e+00> : vector<8x32xf32>
    %158 = tpu.matmul %156, %157, %cst_61 {dimension_numbers = #tpu.dot_dimension_numbers<[1], [0], [0], [1], [0, 0, 1, 1], [], []>} : vector<8x64xbf16>, vector<64x32xbf16>, vector<8x32xf32> -> vector<8x32xf32>
    %c0_62 = arith.constant 0 : index
    %c0_63 = arith.constant 0 : index
    %159 = vector.load %arg12[%c0_62, %c0_63] : memref<1x32xf32, #tpu.memory_space<vmem>>, vector<1x32xf32>
    %160 = vector.broadcast %159 : vector<1x32xf32> to vector<8x32xf32>
    %161 = arith.addf %158, %160 : vector<8x32xf32>
    %162 = arith.addf %161, %136 : vector<8x32xf32>
    %c0_64 = arith.constant 0 : index
    %c0_65 = arith.constant 0 : index
    %163 = vector.load %arg13[%c0_64, %c0_65] : memref<1x32xf32, #tpu.memory_space<vmem>>, vector<1x32xf32>
    %c0_66 = arith.constant 0 : index
    %c0_67 = arith.constant 0 : index
    %164 = vector.load %arg14[%c0_66, %c0_67] : memref<1x32xf32, #tpu.memory_space<vmem>>, vector<1x32xf32>
    %cst_68 = arith.constant dense<0.000000e+00> : vector<8xf32>
    %165 = vector.multi_reduction <add>, %162, %cst_68 [1] : vector<8x32xf32> to vector<8xf32>
    %166 = vector.shape_cast %165 : vector<8xf32> to vector<8x1xf32>
    %cst_69 = arith.constant 3.200000e+01 : f32
    %167 = vector.broadcast %cst_69 : f32 to vector<8x1xf32>
    %168 = arith.divf %166, %167 : vector<8x1xf32>
    %169 = vector.broadcast %168 : vector<8x1xf32> to vector<8x32xf32>
    %170 = arith.subf %162, %169 : vector<8x32xf32>
    %171 = arith.mulf %170, %170 : vector<8x32xf32>
    %cst_70 = arith.constant dense<0.000000e+00> : vector<8xf32>
    %172 = vector.multi_reduction <add>, %171, %cst_70 [1] : vector<8x32xf32> to vector<8xf32>
    %173 = vector.shape_cast %172 : vector<8xf32> to vector<8x1xf32>
    %cst_71 = arith.constant 3.200000e+01 : f32
    %174 = vector.broadcast %cst_71 : f32 to vector<8x1xf32>
    %175 = arith.divf %173, %174 : vector<8x1xf32>
    %176 = vector.broadcast %168 : vector<8x1xf32> to vector<8x32xf32>
    %177 = arith.subf %162, %176 : vector<8x32xf32>
    %cst_72 = arith.constant 9.99999996E-13 : f32
    %178 = vector.broadcast %cst_72 : f32 to vector<8x1xf32>
    %179 = arith.addf %175, %178 : vector<8x1xf32>
    %180 = math.rsqrt %179 : vector<8x1xf32>
    %181 = vector.broadcast %180 : vector<8x1xf32> to vector<8x32xf32>
    %182 = arith.mulf %177, %181 : vector<8x32xf32>
    %183 = vector.broadcast %163 : vector<1x32xf32> to vector<8x32xf32>
    %184 = arith.mulf %182, %183 : vector<8x32xf32>
    %185 = vector.broadcast %164 : vector<1x32xf32> to vector<8x32xf32>
    %186 = arith.addf %184, %185 : vector<8x32xf32>
    %c0_73 = arith.constant 0 : index
    %c0_74 = arith.constant 0 : index
    %c0_75 = arith.constant 0 : index
    %187 = vector.load %arg15[%c0_73, %c0_74, %c0_75] : memref<1x8x32xf32, #tpu.memory_space<vmem>>, vector<1x8x32xf32>
    %188 = vector.shape_cast %187 : vector<1x8x32xf32> to vector<8x32xf32>
    %189 = vector.shape_cast %186 : vector<8x32xf32> to vector<1x8x32xf32>
    tpu.vector_store %arg15[%c0_73, %c0_74, %c0_75], %189 {strides = array<i32>} : memref<1x8x32xf32, #tpu.memory_space<vmem>>, vector<1x8x32xf32>,
    return
  }
  func.func @transform_0(%arg0: i32) -> (i32, i32, i32) {
    %c0_i32 = arith.constant 0 : i32
    %c0_i32_0 = arith.constant 0 : i32
    %c0_i32_1 = arith.constant 0 : i32
    return %arg0, %c0_i32, %c0_i32_0 : i32, i32, i32
  }
  func.func @transform_1(%arg0: i32) -> (i32, i32, i32) {
    %c0_i32 = arith.constant 0 : i32
    %c0_i32_0 = arith.constant 0 : i32
    %c0_i32_1 = arith.constant 0 : i32
    return %arg0, %c0_i32, %c0_i32_0 : i32, i32, i32
  }
  func.func @transform_2(%arg0: i32) -> (i32, i32) {
    %c0_i32 = arith.constant 0 : i32
    %c0_i32_0 = arith.constant 0 : i32
    %c0_i32_1 = arith.constant 0 : i32
    return %c0_i32, %c0_i32_0 : i32, i32
  }
  func.func @transform_3(%arg0: i32) -> (i32, i32) {
    %c0_i32 = arith.constant 0 : i32
    %c0_i32_0 = arith.constant 0 : i32
    %c0_i32_1 = arith.constant 0 : i32
    return %c0_i32, %c0_i32_0 : i32, i32
  }
  func.func @transform_4(%arg0: i32) -> (i32, i32, i32) {
    %c0_i32 = arith.constant 0 : i32
    %c0_i32_0 = arith.constant 0 : i32
    %c0_i32_1 = arith.constant 0 : i32
    %c0_i32_2 = arith.constant 0 : i32
    return %c0_i32, %c0_i32_0, %c0_i32_1 : i32, i32, i32
  }
  func.func @transform_5(%arg0: i32) -> (i32, i32) {
    %c0_i32 = arith.constant 0 : i32
    %c0_i32_0 = arith.constant 0 : i32
    %c0_i32_1 = arith.constant 0 : i32
    return %c0_i32, %c0_i32_0 : i32, i32
  }
  func.func @transform_6(%arg0: i32) -> (i32, i32) {
    %c0_i32 = arith.constant 0 : i32
    %c0_i32_0 = arith.constant 0 : i32
    %c0_i32_1 = arith.constant 0 : i32
    return %c0_i32, %c0_i32_0 : i32, i32
  }
  func.func @transform_7(%arg0: i32) -> (i32, i32) {
    %c0_i32 = arith.constant 0 : i32
    %c0_i32_0 = arith.constant 0 : i32
    %c0_i32_1 = arith.constant 0 : i32
    return %c0_i32, %c0_i32_0 : i32, i32
  }
  func.func @transform_8(%arg0: i32) -> (i32, i32) {
    %c0_i32 = arith.constant 0 : i32
    %c0_i32_0 = arith.constant 0 : i32
    %c0_i32_1 = arith.constant 0 : i32
    return %c0_i32, %c0_i32_0 : i32, i32
  }
  func.func @transform_9(%arg0: i32) -> (i32, i32) {
    %c0_i32 = arith.constant 0 : i32
    %c0_i32_0 = arith.constant 0 : i32
    %c0_i32_1 = arith.constant 0 : i32
    return %c0_i32, %c0_i32_0 : i32, i32
  }
  func.func @transform_10(%arg0: i32) -> (i32, i32) {
    %c0_i32 = arith.constant 0 : i32
    %c0_i32_0 = arith.constant 0 : i32
    %c0_i32_1 = arith.constant 0 : i32
    return %c0_i32, %c0_i32_0 : i32, i32
  }
  func.func @transform_11(%arg0: i32) -> (i32, i32) {
    %c0_i32 = arith.constant 0 : i32
    %c0_i32_0 = arith.constant 0 : i32
    %c0_i32_1 = arith.constant 0 : i32
    return %c0_i32, %c0_i32_0 : i32, i32
  }
  func.func @transform_12(%arg0: i32) -> (i32, i32) {
    %c0_i32 = arith.constant 0 : i32
    %c0_i32_0 = arith.constant 0 : i32
    %c0_i32_1 = arith.constant 0 : i32
    return %c0_i32, %c0_i32_0 : i32, i32
  }
  func.func @transform_13(%arg0: i32) -> (i32, i32) {
    %c0_i32 = arith.constant 0 : i32
    %c0_i32_0 = arith.constant 0 : i32
    %c0_i32_1 = arith.constant 0 : i32
    return %c0_i32, %c0_i32_0 : i32, i32
  }
  func.func @transform_14(%arg0: i32) -> (i32, i32, i32) {
    %c0_i32 = arith.constant 0 : i32
    %c0_i32_0 = arith.constant 0 : i32
    %c0_i32_1 = arith.constant 0 : i32
    return %arg0, %c0_i32, %c0_i32_0 : i32, i32, i32
  }
}

module attributes {stable_mosaic.version = 11 : i64} {
  func.func @_bert_layer_kernel(%arg0: i32, %arg1: memref<1x8x32xf32, #tpu.memory_space<vmem>>, %arg2: memref<1x1x8xf32, #tpu.memory_space<vmem>>, %arg3: memref<32x96xbf16, #tpu.memory_space<vmem>>, %arg4: memref<1x96xf32, #tpu.memory_space<vmem>>, %arg5: memref<4x8x32xbf16, #tpu.memory_space<vmem>>, %arg6: memref<1x32xf32, #tpu.memory_space<vmem>>, %arg7: memref<1x32xf32, #tpu.memory_space<vmem>>, %arg8: memref<1x32xf32, #tpu.memory_space<vmem>>, %arg9: memref<32x64xbf16, #tpu.memory_space<vmem>>, %arg10: memref<1x64xf32, #tpu.memory_space<vmem>>, %arg11: memref<64x32xbf16, #tpu.memory_space<vmem>>, %arg12: memref<1x32xf32, #tpu.memory_space<vmem>>, %arg13: memref<1x32xf32, #tpu.memory_space<vmem>>, %arg14: memref<1x32xf32, #tpu.memory_space<vmem>>, %arg15: memref<1x8x32xf32, #tpu.memory_space<vmem>>) attributes {dimension_semantics = [#tpu.dimension_semantics<parallel>], iteration_bounds = array<i64: 2>, scalar_prefetch = 0 : i64, scratch_operands = 0 : i64, tpu.core_type = #tpu.core_type<tc>, window_params = [{transform_indices = @transform_0, window_bounds = array<i64: 1, 8, 32>}, {transform_indices = @transform_1, window_bounds = array<i64: 1, 1, 8>}, {pipeline_mode = #tpu.pipeline_mode<synchronous>, transform_indices = @transform_2, window_bounds = array<i64: 32, 96>}, {pipeline_mode = #tpu.pipeline_mode<synchronous>, transform_indices = @transform_3, window_bounds = array<i64: 1, 96>}, {pipeline_mode = #tpu.pipeline_mode<synchronous>, transform_indices = @transform_4, window_bounds = array<i64: 4, 8, 32>}, {pipeline_mode = #tpu.pipeline_mode<synchronous>, transform_indices = @transform_5, window_bounds = array<i64: 1, 32>}, {pipeline_mode = #tpu.pipeline_mode<synchronous>, transform_indices = @transform_6, window_bounds = array<i64: 1, 32>}, {pipeline_mode = #tpu.pipeline_mode<synchronous>, transform_indices = @transform_7, window_bounds = array<i64: 1, 32>}, {pipeline_mode = #tpu.pipeline_mode<synchronous>, transform_indices = @transform_8, window_bounds = array<i64: 32, 64>}, {pipeline_mode = #tpu.pipeline_mode<synchronous>, transform_indices = @transform_9, window_bounds = array<i64: 1, 64>}, {pipeline_mode = #tpu.pipeline_mode<synchronous>, transform_indices = @transform_10, window_bounds = array<i64: 64, 32>}, {pipeline_mode = #tpu.pipeline_mode<synchronous>, transform_indices = @transform_11, window_bounds = array<i64: 1, 32>}, {pipeline_mode = #tpu.pipeline_mode<synchronous>, transform_indices = @transform_12, window_bounds = array<i64: 1, 32>}, {pipeline_mode = #tpu.pipeline_mode<synchronous>, transform_indices = @transform_13, window_bounds = array<i64: 1, 32>}, {transform_indices = @transform_14, window_bounds = array<i64: 1, 8, 32>}]} {
    %c0 = arith.constant 0 : index
    %c0_0 = arith.constant 0 : index
    %c0_1 = arith.constant 0 : index
    %0 = vector.load %arg1[%c0, %c0_0, %c0_1] : memref<1x8x32xf32, #tpu.memory_space<vmem>>, vector<1x8x32xf32>
    %1 = vector.shape_cast %0 : vector<1x8x32xf32> to vector<8x32xf32>
    %c0_2 = arith.constant 0 : index
    %c0_3 = arith.constant 0 : index
    %c0_4 = arith.constant 0 : index
    %2 = vector.load %arg2[%c0_2, %c0_3, %c0_4] : memref<1x1x8xf32, #tpu.memory_space<vmem>>, vector<1x1x8xf32>
    %3 = vector.shape_cast %2 : vector<1x1x8xf32> to vector<1x8xf32>
    %4 = arith.truncf %1 : vector<8x32xf32> to vector<8x32xbf16>
    %c0_5 = arith.constant 0 : index
    %c0_6 = arith.constant 0 : index
    %5 = vector.load %arg3[%c0_5, %c0_6] : memref<32x96xbf16, #tpu.memory_space<vmem>>, vector<32x96xbf16>
    %cst = arith.constant dense<0.000000e+00> : vector<8x96xf32>
    %6 = tpu.matmul %4, %5, %cst {dimension_numbers = #tpu.dot_dimension_numbers<[1], [0], [0], [1], [0, 0, 1, 1], [], []>} : vector<8x32xbf16>, vector<32x96xbf16>, vector<8x96xf32> -> vector<8x96xf32>
    %c0_7 = arith.constant 0 : index
    %c0_8 = arith.constant 0 : index
    %7 = vector.load %arg4[%c0_7, %c0_8] : memref<1x96xf32, #tpu.memory_space<vmem>>, vector<1x96xf32>
    %8 = vector.broadcast %7 : vector<1x96xf32> to vector<8x96xf32>
    %9 = arith.addf %6, %8 : vector<8x96xf32>
    %10 = vector.extract_strided_slice %9 {offsets = [0, 0], sizes = [8, 32], strides = [1, 1]} : vector<8x96xf32> to vector<8x32xf32>
    %cst_9 = arith.constant 0.353553385 : f32
    %11 = vector.broadcast %cst_9 : f32 to vector<8x32xf32>
    %12 = arith.mulf %10, %11 : vector<8x32xf32>
    %13 = arith.truncf %12 : vector<8x32xf32> to vector<8x32xbf16>
    %14 = vector.extract_strided_slice %9 {offsets = [0, 32], sizes = [8, 32], strides = [1, 1]} : vector<8x96xf32> to vector<8x32xf32>
    %15 = arith.truncf %14 : vector<8x32xf32> to vector<8x32xbf16>
    %16 = vector.extract_strided_slice %9 {offsets = [0, 64], sizes = [8, 32], strides = [1, 1]} : vector<8x96xf32> to vector<8x32xf32>
    %17 = arith.truncf %16 : vector<8x32xf32> to vector<8x32xbf16>
    %18 = vector.extract_strided_slice %13 {offsets = [0, 0], sizes = [8, 8], strides = [1, 1]} : vector<8x32xbf16> to vector<8x8xbf16>
    %19 = vector.extract_strided_slice %15 {offsets = [0, 0], sizes = [8, 8], strides = [1, 1]} : vector<8x32xbf16> to vector<8x8xbf16>
    %20 = vector.extract_strided_slice %17 {offsets = [0, 0], sizes = [8, 8], strides = [1, 1]} : vector<8x32xbf16> to vector<8x8xbf16>
    %cst_10 = arith.constant dense<0.000000e+00> : vector<8x8xf32>
    %21 = tpu.matmul %18, %19, %cst_10 {dimension_numbers = #tpu.dot_dimension_numbers<[1], [1], [0], [0], [0, 0, 1, 0], [], []>} : vector<8x8xbf16>, vector<8x8xbf16>, vector<8x8xf32> -> vector<8x8xf32>
    %22 = vector.broadcast %3 : vector<1x8xf32> to vector<8x8xf32>
    %23 = arith.addf %21, %22 : vector<8x8xf32>
    %cst_11 = arith.constant dense<0xFF800000> : vector<8xf32>
    %24 = vector.multi_reduction <maximumf>, %23, %cst_11 [1] : vector<8x8xf32> to vector<8xf32>
    %25 = vector.shape_cast %24 : vector<8xf32> to vector<8x1xf32>
    %26 = vector.broadcast %25 : vector<8x1xf32> to vector<8x8xf32>
    %27 = arith.subf %23, %26 : vector<8x8xf32>
    %28 = math.exp %27 : vector<8x8xf32>
    %cst_12 = arith.constant dense<0.000000e+00> : vector<8xf32>
    %29 = vector.multi_reduction <add>, %28, %cst_12 [1] : vector<8x8xf32> to vector<8xf32>
    %30 = vector.shape_cast %29 : vector<8xf32> to vector<8x1xf32>
    %31 = arith.truncf %28 : vector<8x8xf32> to vector<8x8xbf16>
    %cst_13 = arith.constant dense<0.000000e+00> : vector<8x8xf32>
    %32 = tpu.matmul %31, %20, %cst_13 {dimension_numbers = #tpu.dot_dimension_numbers<[1], [0], [0], [1], [0, 0, 1, 1], [], []>} : vector<8x8xbf16>, vector<8x8xbf16>, vector<8x8xf32> -> vector<8x8xf32>
    %33 = tpu.reciprocal %30 {approx = true} : vector<8x1xf32> -> vector<8x1xf32>
    %34 = vector.broadcast %33 : vector<8x1xf32> to vector<8x8xf32>
    %35 = arith.mulf %32, %34 : vector<8x8xf32>
    %36 = arith.truncf %35 : vector<8x8xf32> to vector<8x8xbf16>
    %c0_14 = arith.constant 0 : index
    %c0_15 = arith.constant 0 : index
    %c0_16 = arith.constant 0 : index
    %37 = vector.load %arg5[%c0_14, %c0_15, %c0_16] : memref<4x8x32xbf16, #tpu.memory_space<vmem>>, vector<1x8x32xbf16>
    %38 = vector.shape_cast %37 : vector<1x8x32xbf16> to vector<8x32xbf16>
    %cst_17 = arith.constant dense<0.000000e+00> : vector<8x32xf32>
    %39 = tpu.matmul %36, %38, %cst_17 {dimension_numbers = #tpu.dot_dimension_numbers<[1], [0], [0], [1], [0, 0, 1, 1], [], []>} : vector<8x8xbf16>, vector<8x32xbf16>, vector<8x32xf32> -> vector<8x32xf32>
    %40 = vector.extract_strided_slice %13 {offsets = [0, 8], sizes = [8, 8], strides = [1, 1]} : vector<8x32xbf16> to vector<8x8xbf16>
    %41 = vector.extract_strided_slice %15 {offsets = [0, 8], sizes = [8, 8], strides = [1, 1]} : vector<8x32xbf16> to vector<8x8xbf16>
    %42 = vector.extract_strided_slice %17 {offsets = [0, 8], sizes = [8, 8], strides = [1, 1]} : vector<8x32xbf16> to vector<8x8xbf16>
    %cst_18 = arith.constant dense<0.000000e+00> : vector<8x8xf32>
    %43 = tpu.matmul %40, %41, %cst_18 {dimension_numbers = #tpu.dot_dimension_numbers<[1], [1], [0], [0], [0, 0, 1, 0], [], []>} : vector<8x8xbf16>, vector<8x8xbf16>, vector<8x8xf32> -> vector<8x8xf32>
    %44 = vector.broadcast %3 : vector<1x8xf32> to vector<8x8xf32>
    %45 = arith.addf %43, %44 : vector<8x8xf32>
    %cst_19 = arith.constant dense<0xFF800000> : vector<8xf32>
    %46 = vector.multi_reduction <maximumf>, %45, %cst_19 [1] : vector<8x8xf32> to vector<8xf32>
    %47 = vector.shape_cast %46 : vector<8xf32> to vector<8x1xf32>
    %48 = vector.broadcast %47 : vector<8x1xf32> to vector<8x8xf32>
    %49 = arith.subf %45, %48 : vector<8x8xf32>
    %50 = math.exp %49 : vector<8x8xf32>
    %cst_20 = arith.constant dense<0.000000e+00> : vector<8xf32>
    %51 = vector.multi_reduction <add>, %50, %cst_20 [1] : vector<8x8xf32> to vector<8xf32>
    %52 = vector.shape_cast %51 : vector<8xf32> to vector<8x1xf32>
    %53 = arith.truncf %50 : vector<8x8xf32> to vector<8x8xbf16>
    %cst_21 = arith.constant dense<0.000000e+00> : vector<8x8xf32>
    %54 = tpu.matmul %53, %42, %cst_21 {dimension_numbers = #tpu.dot_dimension_numbers<[1], [0], [0], [1], [0, 0, 1, 1], [], []>} : vector<8x8xbf16>, vector<8x8xbf16>, vector<8x8xf32> -> vector<8x8xf32>
    %55 = tpu.reciprocal %52 {approx = true} : vector<8x1xf32> -> vector<8x1xf32>
    %56 = vector.broadcast %55 : vector<8x1xf32> to vector<8x8xf32>
    %57 = arith.mulf %54, %56 : vector<8x8xf32>
    %58 = arith.truncf %57 : vector<8x8xf32> to vector<8x8xbf16>
    %c1 = arith.constant 1 : index
    %c0_22 = arith.constant 0 : index
    %c0_23 = arith.constant 0 : index
    %59 = vector.load %arg5[%c1, %c0_22, %c0_23] : memref<4x8x32xbf16, #tpu.memory_space<vmem>>, vector<1x8x32xbf16>
    %60 = vector.shape_cast %59 : vector<1x8x32xbf16> to vector<8x32xbf16>
    %cst_24 = arith.constant dense<0.000000e+00> : vector<8x32xf32>
    %61 = tpu.matmul %58, %60, %cst_24 {dimension_numbers = #tpu.dot_dimension_numbers<[1], [0], [0], [1], [0, 0, 1, 1], [], []>} : vector<8x8xbf16>, vector<8x32xbf16>, vector<8x32xf32> -> vector<8x32xf32>
    %62 = arith.addf %39, %61 : vector<8x32xf32>
    %63 = vector.extract_strided_slice %13 {offsets = [0, 16], sizes = [8, 8], strides = [1, 1]} : vector<8x32xbf16> to vector<8x8xbf16>
    %64 = vector.extract_strided_slice %15 {offsets = [0, 16], sizes = [8, 8], strides = [1, 1]} : vector<8x32xbf16> to vector<8x8xbf16>
    %65 = vector.extract_strided_slice %17 {offsets = [0, 16], sizes = [8, 8], strides = [1, 1]} : vector<8x32xbf16> to vector<8x8xbf16>
    %cst_25 = arith.constant dense<0.000000e+00> : vector<8x8xf32>
    %66 = tpu.matmul %63, %64, %cst_25 {dimension_numbers = #tpu.dot_dimension_numbers<[1], [1], [0], [0], [0, 0, 1, 0], [], []>} : vector<8x8xbf16>, vector<8x8xbf16>, vector<8x8xf32> -> vector<8x8xf32>
    %67 = vector.broadcast %3 : vector<1x8xf32> to vector<8x8xf32>
    %68 = arith.addf %66, %67 : vector<8x8xf32>
    %cst_26 = arith.constant dense<0xFF800000> : vector<8xf32>
    %69 = vector.multi_reduction <maximumf>, %68, %cst_26 [1] : vector<8x8xf32> to vector<8xf32>
    %70 = vector.shape_cast %69 : vector<8xf32> to vector<8x1xf32>
    %71 = vector.broadcast %70 : vector<8x1xf32> to vector<8x8xf32>
    %72 = arith.subf %68, %71 : vector<8x8xf32>
    %73 = math.exp %72 : vector<8x8xf32>
    %cst_27 = arith.constant dense<0.000000e+00> : vector<8xf32>
    %74 = vector.multi_reduction <add>, %73, %cst_27 [1] : vector<8x8xf32> to vector<8xf32>
    %75 = vector.shape_cast %74 : vector<8xf32> to vector<8x1xf32>
    %76 = arith.truncf %73 : vector<8x8xf32> to vector<8x8xbf16>
    %cst_28 = arith.constant dense<0.000000e+00> : vector<8x8xf32>
    %77 = tpu.matmul %76, %65, %cst_28 {dimension_numbers = #tpu.dot_dimension_numbers<[1], [0], [0], [1], [0, 0, 1, 1], [], []>} : vector<8x8xbf16>, vector<8x8xbf16>, vector<8x8xf32> -> vector<8x8xf32>
    %78 = tpu.reciprocal %75 {approx = true} : vector<8x1xf32> -> vector<8x1xf32>
    %79 = vector.broadcast %78 : vector<8x1xf32> to vector<8x8xf32>
    %80 = arith.mulf %77, %79 : vector<8x8xf32>
    %81 = arith.truncf %80 : vector<8x8xf32> to vector<8x8xbf16>
    %c2 = arith.constant 2 : index
    %c0_29 = arith.constant 0 : index
    %c0_30 = arith.constant 0 : index
    %82 = vector.load %arg5[%c2, %c0_29, %c0_30] : memref<4x8x32xbf16, #tpu.memory_space<vmem>>, vector<1x8x32xbf16>
    %83 = vector.shape_cast %82 : vector<1x8x32xbf16> to vector<8x32xbf16>
    %cst_31 = arith.constant dense<0.000000e+00> : vector<8x32xf32>
    %84 = tpu.matmul %81, %83, %cst_31 {dimension_numbers = #tpu.dot_dimension_numbers<[1], [0], [0], [1], [0, 0, 1, 1], [], []>} : vector<8x8xbf16>, vector<8x32xbf16>, vector<8x32xf32> -> vector<8x32xf32>
    %85 = arith.addf %62, %84 : vector<8x32xf32>
    %86 = vector.extract_strided_slice %13 {offsets = [0, 24], sizes = [8, 8], strides = [1, 1]} : vector<8x32xbf16> to vector<8x8xbf16>
    %87 = vector.extract_strided_slice %15 {offsets = [0, 24], sizes = [8, 8], strides = [1, 1]} : vector<8x32xbf16> to vector<8x8xbf16>
    %88 = vector.extract_strided_slice %17 {offsets = [0, 24], sizes = [8, 8], strides = [1, 1]} : vector<8x32xbf16> to vector<8x8xbf16>
    %cst_32 = arith.constant dense<0.000000e+00> : vector<8x8xf32>
    %89 = tpu.matmul %86, %87, %cst_32 {dimension_numbers = #tpu.dot_dimension_numbers<[1], [1], [0], [0], [0, 0, 1, 0], [], []>} : vector<8x8xbf16>, vector<8x8xbf16>, vector<8x8xf32> -> vector<8x8xf32>
    %90 = vector.broadcast %3 : vector<1x8xf32> to vector<8x8xf32>
    %91 = arith.addf %89, %90 : vector<8x8xf32>
    %cst_33 = arith.constant dense<0xFF800000> : vector<8xf32>
    %92 = vector.multi_reduction <maximumf>, %91, %cst_33 [1] : vector<8x8xf32> to vector<8xf32>
    %93 = vector.shape_cast %92 : vector<8xf32> to vector<8x1xf32>
    %94 = vector.broadcast %93 : vector<8x1xf32> to vector<8x8xf32>
    %95 = arith.subf %91, %94 : vector<8x8xf32>
    %96 = math.exp %95 : vector<8x8xf32>
    %cst_34 = arith.constant dense<0.000000e+00> : vector<8xf32>
    %97 = vector.multi_reduction <add>, %96, %cst_34 [1] : vector<8x8xf32> to vector<8xf32>
    %98 = vector.shape_cast %97 : vector<8xf32> to vector<8x1xf32>
    %99 = arith.truncf %96 : vector<8x8xf32> to vector<8x8xbf16>
    %cst_35 = arith.constant dense<0.000000e+00> : vector<8x8xf32>
    %100 = tpu.matmul %99, %88, %cst_35 {dimension_numbers = #tpu.dot_dimension_numbers<[1], [0], [0], [1], [0, 0, 1, 1], [], []>} : vector<8x8xbf16>, vector<8x8xbf16>, vector<8x8xf32> -> vector<8x8xf32>
    %101 = tpu.reciprocal %98 {approx = true} : vector<8x1xf32> -> vector<8x1xf32>
    %102 = vector.broadcast %101 : vector<8x1xf32> to vector<8x8xf32>
    %103 = arith.mulf %100, %102 : vector<8x8xf32>
    %104 = arith.truncf %103 : vector<8x8xf32> to vector<8x8xbf16>
    %c3 = arith.constant 3 : index
    %c0_36 = arith.constant 0 : index
    %c0_37 = arith.constant 0 : index
    %105 = vector.load %arg5[%c3, %c0_36, %c0_37] : memref<4x8x32xbf16, #tpu.memory_space<vmem>>, vector<1x8x32xbf16>
    %106 = vector.shape_cast %105 : vector<1x8x32xbf16> to vector<8x32xbf16>
    %cst_38 = arith.constant dense<0.000000e+00> : vector<8x32xf32>
    %107 = tpu.matmul %104, %106, %cst_38 {dimension_numbers = #tpu.dot_dimension_numbers<[1], [0], [0], [1], [0, 0, 1, 1], [], []>} : vector<8x8xbf16>, vector<8x32xbf16>, vector<8x32xf32> -> vector<8x32xf32>
    %108 = arith.addf %85, %107 : vector<8x32xf32>
    %c0_39 = arith.constant 0 : index
    %c0_40 = arith.constant 0 : index
    %109 = vector.load %arg6[%c0_39, %c0_40] : memref<1x32xf32, #tpu.memory_space<vmem>>, vector<1x32xf32>
    %110 = vector.broadcast %109 : vector<1x32xf32> to vector<8x32xf32>
    %111 = arith.addf %108, %110 : vector<8x32xf32>
    %112 = arith.addf %111, %1 : vector<8x32xf32>
    %c0_41 = arith.constant 0 : index
    %c0_42 = arith.constant 0 : index
    %113 = vector.load %arg7[%c0_41, %c0_42] : memref<1x32xf32, #tpu.memory_space<vmem>>, vector<1x32xf32>
    %c0_43 = arith.constant 0 : index
    %c0_44 = arith.constant 0 : index
    %114 = vector.load %arg8[%c0_43, %c0_44] : memref<1x32xf32, #tpu.memory_space<vmem>>, vector<1x32xf32>
    %cst_45 = arith.constant dense<0.000000e+00> : vector<8xf32>
    %115 = vector.multi_reduction <add>, %112, %cst_45 [1] : vector<8x32xf32> to vector<8xf32>
    %116 = vector.shape_cast %115 : vector<8xf32> to vector<8x1xf32>
    %cst_46 = arith.constant 3.200000e+01 : f32
    %117 = vector.broadcast %cst_46 : f32 to vector<8x1xf32>
    %118 = arith.divf %116, %117 : vector<8x1xf32>
    %119 = vector.broadcast %118 : vector<8x1xf32> to vector<8x32xf32>
    %120 = arith.subf %112, %119 : vector<8x32xf32>
    %121 = arith.mulf %120, %120 : vector<8x32xf32>
    %cst_47 = arith.constant dense<0.000000e+00> : vector<8xf32>
    %122 = vector.multi_reduction <add>, %121, %cst_47 [1] : vector<8x32xf32> to vector<8xf32>
    %123 = vector.shape_cast %122 : vector<8xf32> to vector<8x1xf32>
    %cst_48 = arith.constant 3.200000e+01 : f32
    %124 = vector.broadcast %cst_48 : f32 to vector<8x1xf32>
    %125 = arith.divf %123, %124 : vector<8x1xf32>
    %126 = vector.broadcast %118 : vector<8x1xf32> to vector<8x32xf32>
    %127 = arith.subf %112, %126 : vector<8x32xf32>
    %cst_49 = arith.constant 9.99999996E-13 : f32
    %128 = vector.broadcast %cst_49 : f32 to vector<8x1xf32>
    %129 = arith.addf %125, %128 : vector<8x1xf32>
    %130 = math.rsqrt %129 : vector<8x1xf32>
    %131 = vector.broadcast %130 : vector<8x1xf32> to vector<8x32xf32>
    %132 = arith.mulf %127, %131 : vector<8x32xf32>
    %133 = vector.broadcast %113 : vector<1x32xf32> to vector<8x32xf32>
    %134 = arith.mulf %132, %133 : vector<8x32xf32>
    %135 = vector.broadcast %114 : vector<1x32xf32> to vector<8x32xf32>
    %136 = arith.addf %134, %135 : vector<8x32xf32>
    %137 = arith.truncf %136 : vector<8x32xf32> to vector<8x32xbf16>
    %c0_50 = arith.constant 0 : index
    %c0_51 = arith.constant 0 : index
    %138 = vector.load %arg9[%c0_50, %c0_51] : memref<32x64xbf16, #tpu.memory_space<vmem>>, vector<32x64xbf16>
    %cst_52 = arith.constant dense<0.000000e+00> : vector<8x64xf32>
    %139 = tpu.matmul %137, %138, %cst_52 {dimension_numbers = #tpu.dot_dimension_numbers<[1], [0], [0], [1], [0, 0, 1, 1], [], []>} : vector<8x32xbf16>, vector<32x64xbf16>, vector<8x64xf32> -> vector<8x64xf32>
    %c0_53 = arith.constant 0 : index
    %c0_54 = arith.constant 0 : index
    %140 = vector.load %arg10[%c0_53, %c0_54] : memref<1x64xf32, #tpu.memory_space<vmem>>, vector<1x64xf32>
    %141 = vector.broadcast %140 : vector<1x64xf32> to vector<8x64xf32>
    %142 = arith.addf %139, %141 : vector<8x64xf32>
    %cst_55 = arith.constant 5.000000e-01 : f32
    %143 = vector.broadcast %cst_55 : f32 to vector<8x64xf32>
    %144 = arith.mulf %143, %142 : vector<8x64xf32>
    %cst_56 = arith.constant 4.471500e-02 : f32
    %145 = vector.broadcast %cst_56 : f32 to vector<8x64xf32>
    %146 = arith.mulf %145, %142 : vector<8x64xf32>
    %147 = arith.mulf %146, %142 : vector<8x64xf32>
    %148 = arith.mulf %147, %142 : vector<8x64xf32>
    %149 = arith.addf %142, %148 : vector<8x64xf32>
    %cst_57 = arith.constant 0.797884583 : f32
    %150 = vector.broadcast %cst_57 : f32 to vector<8x64xf32>
    %151 = arith.mulf %150, %149 : vector<8x64xf32>
    %152 = math.tanh %151 : vector<8x64xf32>
    %cst_58 = arith.constant 1.000000e+00 : f32
    %153 = vector.broadcast %cst_58 : f32 to vector<8x64xf32>
    %154 = arith.addf %153, %152 : vector<8x64xf32>
    %155 = arith.mulf %144, %154 : vector<8x64xf32>
    %156 = arith.truncf %155 : vector<8x64xf32> to vector<8x64xbf16>
    %c0_59 = arith.constant 0 : index
    %c0_60 = arith.constant 0 : index
    %157 = vector.load %arg11[%c0_59, %c0_60] : memref<64x32xbf16, #tpu.memory_space<vmem>>, vector<64x32xbf16>
    %cst_61 = arith.constant dense<0.000000e+00> : vector<8x32xf32>
    %158 = tpu.matmul %156, %157, %cst_61 {dimension_numbers = #tpu.dot_dimension_numbers<[1], [0], [0], [1], [0, 0, 1, 1], [], []>} : vector<8x64xbf16>, vector<64x32xbf16>, vector<8x32xf32> -> vector<8x32xf32>
    %c0_62 = arith.constant 0 : index
    %c0_63 = arith.constant 0 : index
    %159 = vector.load %arg12[%c0_62, %c0_63] : memref<1x32xf32, #tpu.memory_space<vmem>>, vector<1x32xf32>
    %160 = vector.broadcast %159 : vector<1x32xf32> to vector<8x32xf32>
    %161 = arith.addf %158, %160 : vector<8x32xf32>
    %162 = arith.addf %161, %136 : vector<8x32xf32>
    %c0_64 = arith.constant 0 : index
    %c0_65 = arith.constant 0 : index
    %163 = vector.load %arg13[%c0_64, %c0_65] : memref<1x32xf32, #tpu.memory_space<vmem>>, vector<1x32xf32>
    %c0_66 = arith.constant 0 : index
    %c0_67 = arith.constant 0 : index
    %164 = vector.load %arg14[%c0_66, %c0_67] : memref<1x32xf32, #tpu.memory_space<vmem>>, vector<1x32xf32>
    %cst_68 = arith.constant dense<0.000000e+00> : vector<8xf32>
    %165 = vector.multi_reduction <add>, %162, %cst_68 [1] : vector<8x32xf32> to vector<8xf32>
    %166 = vector.shape_cast %165 : vector<8xf32> to vector<8x1xf32>
    %cst_69 = arith.constant 3.200000e+01 : f32
    %167 = vector.broadcast %cst_69 : f32 to vector<8x1xf32>
    %168 = arith.divf %166, %167 : vector<8x1xf32>
    %169 = vector.broadcast %168 : vector<8x1xf32> to vector<8x32xf32>
    %170 = arith.subf %162, %169 : vector<8x32xf32>
    %171 = arith.mulf %170, %170 : vector<8x32xf32>
    %cst_70 = arith.constant dense<0.000000e+00> : vector<8xf32>
    %172 = vector.multi_reduction <add>, %171, %cst_70 [1] : vector<8x32xf32> to vector<8xf32>
    %173 = vector.shape_cast %172 : vector<8xf32> to vector<8x1xf32>
    %cst_71 = arith.constant 3.200000e+01 : f32
    %174 = vector.broadcast %cst_71 : f32 to vector<8x1xf32>
    %175 = arith.divf %173, %174 : vector<8x1xf32>
    %176 = vector.broadcast %168 : vector<8x1xf32> to vector<8x32xf32>
    %177 = arith.subf %162, %176 : vector<8x32xf32>
    %cst_72 = arith.constant 9.99999996E-13 : f32
    %178 = vector.broadcast %cst_72 : f32 to vector<8x1xf32>
    %179 = arith.addf %175, %178 : vector<8x1xf32>
    %180 = math.rsqrt %179 : vector<8x1xf32>
    %181 = vector.broadcast %180 : vector<8x1xf32> to vector<8x32xf32>
    %182 = arith.mulf %177, %181 : vector<8x32xf32>
    %183 = vector.broadcast %163 : vector<1x32xf32> to vector<8x32xf32>
    %184 = arith.mulf %182, %183 : vector<8x32xf32>
    %185 = vector.broadcast %164 : vector<1x32xf32> to vector<8x32xf32>
    %186 = arith.addf %184, %185 : vector<8x32xf32>
    %c0_73 = arith.constant 0 : index
    %c0_74 = arith.constant 0 : index
    %c0_75 = arith.constant 0 : index
    %187 = vector.load %arg15[%c0_73, %c0_74, %c0_75] : memref<1x8x32xf32, #tpu.memory_space<vmem>>, vector<1x8x32xf32>
    %188 = vector.shape_cast %187 : vector<1x8x32xf32> to vector<8x32xf32>
    %189 = vector.shape_cast %186 : vector<8x32xf32> to vector<1x8x32xf32>
    tpu.vector_store %arg15[%c0_73, %c0_74, %c0_75], %189 {strides = array<i32>} : memref<1x8x32xf32, #tpu.memory_space<vmem>>, vector<1x8x32xf32>,
    return
  }
  func.func @transform_0(%arg0: i32) -> (i32, i32, i32) {
    %c0_i32 = arith.constant 0 : i32
    %c0_i32_0 = arith.constant 0 : i32
    %c0_i32_1 = arith.constant 0 : i32
    return %arg0, %c0_i32, %c0_i32_0 : i32, i32, i32
  }
  func.func @transform_1(%arg0: i32) -> (i32, i32, i32) {
    %c0_i32 = arith.constant 0 : i32
    %c0_i32_0 = arith.constant 0 : i32
    %c0_i32_1 = arith.constant 0 : i32
    return %arg0, %c0_i32, %c0_i32_0 : i32, i32, i32
  }
  func.func @transform_2(%arg0: i32) -> (i32, i32) {
    %c0_i32 = arith.constant 0 : i32
    %c0_i32_0 = arith.constant 0 : i32
    %c0_i32_1 = arith.constant 0 : i32
    return %c0_i32, %c0_i32_0 : i32, i32
  }
  func.func @transform_3(%arg0: i32) -> (i32, i32) {
    %c0_i32 = arith.constant 0 : i32
    %c0_i32_0 = arith.constant 0 : i32
    %c0_i32_1 = arith.constant 0 : i32
    return %c0_i32, %c0_i32_0 : i32, i32
  }
  func.func @transform_4(%arg0: i32) -> (i32, i32, i32) {
    %c0_i32 = arith.constant 0 : i32
    %c0_i32_0 = arith.constant 0 : i32
    %c0_i32_1 = arith.constant 0 : i32
    %c0_i32_2 = arith.constant 0 : i32
    return %c0_i32, %c0_i32_0, %c0_i32_1 : i32, i32, i32
  }
  func.func @transform_5(%arg0: i32) -> (i32, i32) {
    %c0_i32 = arith.constant 0 : i32
    %c0_i32_0 = arith.constant 0 : i32
    %c0_i32_1 = arith.constant 0 : i32
    return %c0_i32, %c0_i32_0 : i32, i32
  }
  func.func @transform_6(%arg0: i32) -> (i32, i32) {
    %c0_i32 = arith.constant 0 : i32
    %c0_i32_0 = arith.constant 0 : i32
    %c0_i32_1 = arith.constant 0 : i32
    return %c0_i32, %c0_i32_0 : i32, i32
  }
  func.func @transform_7(%arg0: i32) -> (i32, i32) {
    %c0_i32 = arith.constant 0 : i32
    %c0_i32_0 = arith.constant 0 : i32
    %c0_i32_1 = arith.constant 0 : i32
    return %c0_i32, %c0_i32_0 : i32, i32
  }
  func.func @transform_8(%arg0: i32) -> (i32, i32) {
    %c0_i32 = arith.constant 0 : i32
    %c0_i32_0 = arith.constant 0 : i32
    %c0_i32_1 = arith.constant 0 : i32
    return %c0_i32, %c0_i32_0 : i32, i32
  }
  func.func @transform_9(%arg0: i32) -> (i32, i32) {
    %c0_i32 = arith.constant 0 : i32
    %c0_i32_0 = arith.constant 0 : i32
    %c0_i32_1 = arith.constant 0 : i32
    return %c0_i32, %c0_i32_0 : i32, i32
  }
  func.func @transform_10(%arg0: i32) -> (i32, i32) {
    %c0_i32 = arith.constant 0 : i32
    %c0_i32_0 = arith.constant 0 : i32
    %c0_i32_1 = arith.constant 0 : i32
    return %c0_i32, %c0_i32_0 : i32, i32
  }
  func.func @transform_11(%arg0: i32) -> (i32, i32) {
    %c0_i32 = arith.constant 0 : i32
    %c0_i32_0 = arith.constant 0 : i32
    %c0_i32_1 = arith.constant 0 : i32
    return %c0_i32, %c0_i32_0 : i32, i32
  }
  func.func @transform_12(%arg0: i32) -> (i32, i32) {
    %c0_i32 = arith.constant 0 : i32
    %c0_i32_0 = arith.constant 0 : i32
    %c0_i32_1 = arith.constant 0 : i32
    return %c0_i32, %c0_i32_0 : i32, i32
  }
  func.func @transform_13(%arg0: i32) -> (i32, i32) {
    %c0_i32 = arith.constant 0 : i32
    %c0_i32_0 = arith.constant 0 : i32
    %c0_i32_1 = arith.constant 0 : i32
    return %c0_i32, %c0_i32_0 : i32, i32
  }
  func.func @transform_14(%arg0: i32) -> (i32, i32, i32) {
    %c0_i32 = arith.constant 0 : i32
    %c0_i32_0 = arith.constant 0 : i32
    %c0_i32_1 = arith.constant 0 : i32
    return %arg0, %c0_i32, %c0_i32_0 : i32, i32, i32
  }
}

</mosaic_0001>

<llo_original>
// kernel: bert_encoder_forward.46
$region0: #{bert_encoder_forward.46}
  #allocation0 [shape = 'u32[]', space=smem, size = 0x4, offset = 0x4, fixed_abs, tag = 'smem constant byte address 0x4 - core index']
  #allocation1 [shape = 'u32[144,128]{1,0:T(1,128)}', space=vmem, size = 0x12000, scoped, tag = 'internal scratch']
  %s0 = inlined_call_operand.vmem [shape: f32[2,8,32], index: 0, kind: input, shape index: {}]
  %s1 = inlined_call_operand.vmem [shape: f32[2,1,8], index: 1, kind: input, shape index: {}]
  %s2 = inlined_call_operand.vmem [shape: bf16[32,96], index: 2, kind: input, shape index: {}]
  %s3 = inlined_call_operand.vmem [shape: f32[1,96], index: 3, kind: input, shape index: {}]
  %s4 = inlined_call_operand.vmem [shape: bf16[4,8,32], index: 4, kind: input, shape index: {}]
  %s5 = inlined_call_operand.vmem [shape: f32[1,32], index: 5, kind: input, shape index: {}]
  %s6 = inlined_call_operand.vmem [shape: f32[1,32], index: 6, kind: input, shape index: {}]
  %s7 = inlined_call_operand.vmem [shape: f32[1,32], index: 7, kind: input, shape index: {}]
  %s8 = inlined_call_operand.vmem [shape: bf16[32,64], index: 8, kind: input, shape index: {}]
  %s9 = inlined_call_operand.vmem [shape: f32[1,64], index: 9, kind: input, shape index: {}]
  %s10 = inlined_call_operand.vmem [shape: bf16[64,32], index: 10, kind: input, shape index: {}]
  %s11 = inlined_call_operand.vmem [shape: f32[1,32], index: 11, kind: input, shape index: {}]
  %s12 = inlined_call_operand.vmem [shape: f32[1,32], index: 12, kind: input, shape index: {}]
  %s13 = inlined_call_operand.vmem [shape: f32[1,32], index: 13, kind: input, shape index: {}]
  %s14 = inlined_call_operand.hbm [shape: f32[2,8,32], index: 14, kind: output, shape index: {}]
  %s15 = sld [smem:[#allocation0]]
  $region89: #{bert_encoder_forward.46} parent=0
    _
  %s17 = ssub.s32 1, %s15
  %s18 = scalar_select 0, %s17, %s15
  $region1: #{bert_encoder_forward.46} parent=0
    #allocation2 [shape = 'u8[8192]{0}', space=vmem, size = 0x2000, scoped, tag = 'output window, operand 0']
    #allocation3 [shape = 's32[2]{0}', space=sflag, size = 0x8, scoped, tag = 'scoped memory for bert_encoder_forward.46']
    %19 = vsyncpa [#allocation3], 0
    %s20 = scalar_lea.sflag [#allocation3], 1
    %21 = vsyncpa %s20, 0
    loop: start=0, step=1, limit=4
    $region2: #{bert_encoder_forward.46} parent=1 // loop_pre_header
      _
    $region3: #{bert_encoder_forward.46} parent=1 // loop_header
      %s23 = sphi 0, %s27
      %p24 = scmp.ge.s32.totalorder %s23, 4
      %s33 = sphi 0, %s35
      %s36 = sphi 0, %s33
      %s37 = sphi 0, %s36
      %s53 = sphi 0, %s37
      %s59 = sphi 0, %s61
      %s62 = sphi 0, %s59
      %s63 = sphi 0, %s62
      %s79 = sphi 0, %s63
      %s83 = sphi 0, %s83
      %s85 = sphi 0, %s83
      %s86 = sphi 0, %s85
      %s100 = sphi 0, %s86
      %s104 = sphi 0, %s104
      %s106 = sphi 0, %s104
      %s107 = sphi 0, %s106
      %s121 = sphi 0, %s107
      %s125 = sphi 0, %s125
      %s127 = sphi 0, %s125
      %s128 = sphi 0, %s127
      %s142 = sphi 0, %s128
      %s146 = sphi 0, %s146
      %s148 = sphi 0, %s146
      %s149 = sphi 0, %s148
      %s163 = sphi 0, %s149
      %s167 = sphi 0, %s167
      %s169 = sphi 0, %s167
      %s170 = sphi 0, %s169
      %s184 = sphi 0, %s170
      %s188 = sphi 0, %s188
      %s190 = sphi 0, %s188
      %s191 = sphi 0, %s190
      %s205 = sphi 0, %s191
      %s209 = sphi 0, %s209
      %s211 = sphi 0, %s209
      %s212 = sphi 0, %s211
      %s226 = sphi 0, %s212
      %s230 = sphi 0, %s230
      %s232 = sphi 0, %s230
      %s233 = sphi 0, %s232
      %s247 = sphi 0, %s233
      %s251 = sphi 0, %s251
      %s253 = sphi 0, %s251
      %s254 = sphi 0, %s253
      %s268 = sphi 0, %s254
      %s272 = sphi 0, %s272
      %s274 = sphi 0, %s272
      %s275 = sphi 0, %s274
      %s289 = sphi 0, %s275
      %s293 = sphi 0, %s293
      %s295 = sphi 0, %s293
      %s296 = sphi 0, %s295
      %s310 = sphi 0, %s296
      %s314 = sphi 0, %s314
      %s316 = sphi 0, %s314
      %s317 = sphi 0, %s316
      %s331 = sphi 0, %s317
      %s337 = sphi 0, %s339
      %s340 = sphi 0, %s337
      %s341 = sphi 0, %s340
      %s357 = sphi 0, %s341
    $region4: #{bert_encoder_forward.46} parent=1 // loop_header_branch
      %26 = sbr.rel (%p24) target = $region8
    $region5: #{bert_encoder_forward.46} parent=1 // loop_body
      %s28 = ssub.s32 %s23, 1
      %s29 = ssub.s32 %s23, 2
      %s30 = sadd.s32 %s23, 1
      %s31 = ssub.s32 %s23, %s30
      %p32 = scmp.eq.s32.totalorder %s31, 0
      %s34 = sadd.s32 %s33, 1
      %s35 = scalar_select %p32, %s33, %s34
      %p38 = pneg %p32
      %p39 = scmp.eq.s32.totalorder %s23, 1
      %p40 = por %p38, %p39
      %p41 = scmp.ne.s32.totalorder %s33, %s36
      %p42 = scmp.eq.s32.totalorder %s23, 0
      %p43 = por %p41, %p42
      %p44 = scmp.ne.s32.totalorder %s33, %s36
      %p45 = scmp.eq.s32.totalorder %s28, 1
      %p46 = por %p44, %p45
      %p47 = scmp.ne.s32.totalorder %s36, %s37
      %p48 = scmp.eq.s32.totalorder %s28, 0
      %p49 = por %p47, %p48
      %p50 = scmp.ne.s32.totalorder %s36, %s37
      %p51 = scmp.eq.s32.totalorder %s29, 1
      %p52 = por %p50, %p51
      %p54 = scmp.ne.s32.totalorder %s37, %s53
      %p55 = scmp.eq.s32.totalorder %s29, 0
      %p56 = por %p54, %p55
      %s57 = ssub.s32 %s23, %s30
      %p58 = scmp.eq.s32.totalorder %s57, 0
      %s60 = sadd.s32 %s59, 1
      %s61 = scalar_select %p58, %s59, %s60
      %p64 = pneg %p58
      %p65 = scmp.eq.s32.totalorder %s23, 1
      %p66 = por %p64, %p65
      %p67 = scmp.ne.s32.totalorder %s59, %s62
      %p68 = scmp.eq.s32.totalorder %s23, 0
      %p69 = por %p67, %p68
      %p70 = scmp.ne.s32.totalorder %s59, %s62
      %p71 = scmp.eq.s32.totalorder %s28, 1
      %p72 = por %p70, %p71
      %p73 = scmp.ne.s32.totalorder %s62, %s63
      %p74 = scmp.eq.s32.totalorder %s28, 0
      %p75 = por %p73, %p74
      %p76 = scmp.ne.s32.totalorder %s62, %s63
      %p77 = scmp.eq.s32.totalorder %s29, 1
      %p78 = por %p76, %p77
      %p80 = scmp.ne.s32.totalorder %s63, %s79
      %p81 = scmp.eq.s32.totalorder %s29, 0
      %p82 = por %p80, %p81
      %s84 = sadd.s32 %s83, 1
      %p87 = scmp.eq.s32.totalorder %s23, 1
      %p88 = scmp.ne.s32.totalorder %s83, %s85
      %p89 = scmp.eq.s32.totalorder %s23, 0
      %p90 = por %p88, %p89
      %p91 = scmp.ne.s32.totalorder %s83, %s85
      %p92 = scmp.eq.s32.totalorder %s28, 1
      %p93 = por %p91, %p92
      %p94 = scmp.ne.s32.totalorder %s85, %s86
      %p95 = scmp.eq.s32.totalorder %s28, 0
      %p96 = por %p94, %p95
      %p97 = scmp.ne.s32.totalorder %s85, %s86
      %p98 = scmp.eq.s32.totalorder %s29, 1
      %p99 = por %p97, %p98
      %p101 = scmp.ne.s32.totalorder %s86, %s100
      %p102 = scmp.eq.s32.totalorder %s29, 0
      %p103 = por %p101, %p102
      %s105 = sadd.s32 %s104, 1
      %p108 = scmp.eq.s32.totalorder %s23, 1
      %p109 = scmp.ne.s32.totalorder %s104, %s106
      %p110 = scmp.eq.s32.totalorder %s23, 0
      %p111 = por %p109, %p110
      %p112 = scmp.ne.s32.totalorder %s104, %s106
      %p113 = scmp.eq.s32.totalorder %s28, 1
      %p114 = por %p112, %p113
      %p115 = scmp.ne.s32.totalorder %s106, %s107
      %p116 = scmp.eq.s32.totalorder %s28, 0
      %p117 = por %p115, %p116
      %p118 = scmp.ne.s32.totalorder %s106, %s107
      %p119 = scmp.eq.s32.totalorder %s29, 1
      %p120 = por %p118, %p119
      %p122 = scmp.ne.s32.totalorder %s107, %s121
      %p123 = scmp.eq.s32.totalorder %s29, 0
      %p124 = por %p122, %p123
      %s126 = sadd.s32 %s125, 1
      %p129 = scmp.eq.s32.totalorder %s23, 1
      %p130 = scmp.ne.s32.totalorder %s125, %s127
      %p131 = scmp.eq.s32.totalorder %s23, 0
      %p132 = por %p130, %p131
      %p133 = scmp.ne.s32.totalorder %s125, %s127
      %p134 = scmp.eq.s32.totalorder %s28, 1
      %p135 = por %p133, %p134
      %p136 = scmp.ne.s32.totalorder %s127, %s128
      %p137 = scmp.eq.s32.totalorder %s28, 0
      %p138 = por %p136, %p137
      %p139 = scmp.ne.s32.totalorder %s127, %s128
      %p140 = scmp.eq.s32.totalorder %s29, 1
      %p141 = por %p139, %p140
      %p143 = scmp.ne.s32.totalorder %s128, %s142
      %p144 = scmp.eq.s32.totalorder %s29, 0
      %p145 = por %p143, %p144
      %s147 = sadd.s32 %s146, 1
      %p150 = scmp.eq.s32.totalorder %s23, 1
      %p151 = scmp.ne.s32.totalorder %s146, %s148
      %p152 = scmp.eq.s32.totalorder %s23, 0
      %p153 = por %p151, %p152
      %p154 = scmp.ne.s32.totalorder %s146, %s148
      %p155 = scmp.eq.s32.totalorder %s28, 1
      %p156 = por %p154, %p155
      %p157 = scmp.ne.s32.totalorder %s148, %s149
      %p158 = scmp.eq.s32.totalorder %s28, 0
      %p159 = por %p157, %p158
      %p160 = scmp.ne.s32.totalorder %s148, %s149
      %p161 = scmp.eq.s32.totalorder %s29, 1
      %p162 = por %p160, %p161
      %p164 = scmp.ne.s32.totalorder %s149, %s163
      %p165 = scmp.eq.s32.totalorder %s29, 0
      %p166 = por %p164, %p165
      %s168 = sadd.s32 %s167, 1
      %p171 = scmp.eq.s32.totalorder %s23, 1
      %p172 = scmp.ne.s32.totalorder %s167, %s169
      %p173 = scmp.eq.s32.totalorder %s23, 0
      %p174 = por %p172, %p173
      %p175 = scmp.ne.s32.totalorder %s167, %s169
      %p176 = scmp.eq.s32.totalorder %s28, 1
      %p177 = por %p175, %p176
      %p178 = scmp.ne.s32.totalorder %s169, %s170
      %p179 = scmp.eq.s32.totalorder %s28, 0
      %p180 = por %p178, %p179
      %p181 = scmp.ne.s32.totalorder %s169, %s170
      %p182 = scmp.eq.s32.totalorder %s29, 1
      %p183 = por %p181, %p182
      %p185 = scmp.ne.s32.totalorder %s170, %s184
      %p186 = scmp.eq.s32.totalorder %s29, 0
      %p187 = por %p185, %p186
      %s189 = sadd.s32 %s188, 1
      %p192 = scmp.eq.s32.totalorder %s23, 1
      %p193 = scmp.ne.s32.totalorder %s188, %s190
      %p194 = scmp.eq.s32.totalorder %s23, 0
      %p195 = por %p193, %p194
      %p196 = scmp.ne.s32.totalorder %s188, %s190
      %p197 = scmp.eq.s32.totalorder %s28, 1
      %p198 = por %p196, %p197
      %p199 = scmp.ne.s32.totalorder %s190, %s191
      %p200 = scmp.eq.s32.totalorder %s28, 0
      %p201 = por %p199, %p200
      %p202 = scmp.ne.s32.totalorder %s190, %s191
      %p203 = scmp.eq.s32.totalorder %s29, 1
      %p204 = por %p202, %p203
      %p206 = scmp.ne.s32.totalorder %s191, %s205
      %p207 = scmp.eq.s32.totalorder %s29, 0
      %p208 = por %p206, %p207
      %s210 = sadd.s32 %s209, 1
      %p213 = scmp.eq.s32.totalorder %s23, 1
      %p214 = scmp.ne.s32.totalorder %s209, %s211
      %p215 = scmp.eq.s32.totalorder %s23, 0
      %p216 = por %p214, %p215
      %p217 = scmp.ne.s32.totalorder %s209, %s211
      %p218 = scmp.eq.s32.totalorder %s28, 1
      %p219 = por %p217, %p218
      %p220 = scmp.ne.s32.totalorder %s211, %s212
      %p221 = scmp.eq.s32.totalorder %s28, 0
      %p222 = por %p220, %p221
      %p223 = scmp.ne.s32.totalorder %s211, %s212
      %p224 = scmp.eq.s32.totalorder %s29, 1
      %p225 = por %p223, %p224
      %p227 = scmp.ne.s32.totalorder %s212, %s226
      %p228 = scmp.eq.s32.totalorder %s29, 0
      %p229 = por %p227, %p228
      %s231 = sadd.s32 %s230, 1
      %p234 = scmp.eq.s32.totalorder %s23, 1
      %p235 = scmp.ne.s32.totalorder %s230, %s232
      %p236 = scmp.eq.s32.totalorder %s23, 0
      %p237 = por %p235, %p236
      %p238 = scmp.ne.s32.totalorder %s230, %s232
      %p239 = scmp.eq.s32.totalorder %s28, 1
      %p240 = por %p238, %p239
      %p241 = scmp.ne.s32.totalorder %s232, %s233
      %p242 = scmp.eq.s32.totalorder %s28, 0
      %p243 = por %p241, %p242
      %p244 = scmp.ne.s32.totalorder %s232, %s233
      %p245 = scmp.eq.s32.totalorder %s29, 1
      %p246 = por %p244, %p245
      %p248 = scmp.ne.s32.totalorder %s233, %s247
      %p249 = scmp.eq.s32.totalorder %s29, 0
      %p250 = por %p248, %p249
      %s252 = sadd.s32 %s251, 1
      %p255 = scmp.eq.s32.totalorder %s23, 1
      %p256 = scmp.ne.s32.totalorder %s251, %s253
      %p257 = scmp.eq.s32.totalorder %s23, 0
      %p258 = por %p256, %p257
      %p259 = scmp.ne.s32.totalorder %s251, %s253
      %p260 = scmp.eq.s32.totalorder %s28, 1
      %p261 = por %p259, %p260
      %p262 = scmp.ne.s32.totalorder %s253, %s254
      %p263 = scmp.eq.s32.totalorder %s28, 0
      %p264 = por %p262, %p263
      %p265 = scmp.ne.s32.totalorder %s253, %s254
      %p266 = scmp.eq.s32.totalorder %s29, 1
      %p267 = por %p265, %p266
      %p269 = scmp.ne.s32.totalorder %s254, %s268
      %p270 = scmp.eq.s32.totalorder %s29, 0
      %p271 = por %p269, %p270
      %s273 = sadd.s32 %s272, 1
      %p276 = scmp.eq.s32.totalorder %s23, 1
      %p277 = scmp.ne.s32.totalorder %s272, %s274
      %p278 = scmp.eq.s32.totalorder %s23, 0
      %p279 = por %p277, %p278
      %p280 = scmp.ne.s32.totalorder %s272, %s274
      %p281 = scmp.eq.s32.totalorder %s28, 1
      %p282 = por %p280, %p281
      %p283 = scmp.ne.s32.totalorder %s274, %s275
      %p284 = scmp.eq.s32.totalorder %s28, 0
      %p285 = por %p283, %p284
      %p286 = scmp.ne.s32.totalorder %s274, %s275
      %p287 = scmp.eq.s32.totalorder %s29, 1
      %p288 = por %p286, %p287
      %p290 = scmp.ne.s32.totalorder %s275, %s289
      %p291 = scmp.eq.s32.totalorder %s29, 0
      %p292 = por %p290, %p291
      %s294 = sadd.s32 %s293, 1
      %p297 = scmp.eq.s32.totalorder %s23, 1
      %p298 = scmp.ne.s32.totalorder %s293, %s295
      %p299 = scmp.eq.s32.totalorder %s23, 0
      %p300 = por %p298, %p299
      %p301 = scmp.ne.s32.totalorder %s293, %s295
      %p302 = scmp.eq.s32.totalorder %s28, 1
      %p303 = por %p301, %p302
      %p304 = scmp.ne.s32.totalorder %s295, %s296
      %p305 = scmp.eq.s32.totalorder %s28, 0
      %p306 = por %p304, %p305
      %p307 = scmp.ne.s32.totalorder %s295, %s296
      %p308 = scmp.eq.s32.totalorder %s29, 1
      %p309 = por %p307, %p308
      %p311 = scmp.ne.s32.totalorder %s296, %s310
      %p312 = scmp.eq.s32.totalorder %s29, 0
      %p313 = por %p311, %p312
      %s315 = sadd.s32 %s314, 1
      %p318 = scmp.eq.s32.totalorder %s23, 1
      %p319 = scmp.ne.s32.totalorder %s314, %s316
      %p320 = scmp.eq.s32.totalorder %s23, 0
      %p321 = por %p319, %p320
      %p322 = scmp.ne.s32.totalorder %s314, %s316
      %p323 = scmp.eq.s32.totalorder %s28, 1
      %p324 = por %p322, %p323
      %p325 = scmp.ne.s32.totalorder %s316, %s317
      %p326 = scmp.eq.s32.totalorder %s28, 0
      %p327 = por %p325, %p326
      %p328 = scmp.ne.s32.totalorder %s316, %s317
      %p329 = scmp.eq.s32.totalorder %s29, 1
      %p330 = por %p328, %p329
      %p332 = scmp.ne.s32.totalorder %s317, %s331
      %p333 = scmp.eq.s32.totalorder %s29, 0
      %p334 = por %p332, %p333
      %s335 = ssub.s32 %s23, %s30
      %p336 = scmp.eq.s32.totalorder %s335, 0
      %s338 = sadd.s32 %s337, 1
      %s339 = scalar_select %p336, %s337, %s338
      %p342 = pneg %p336
      %p343 = scmp.eq.s32.totalorder %s23, 1
      %p344 = por %p342, %p343
      %p345 = scmp.ne.s32.totalorder %s337, %s340
      %p346 = scmp.eq.s32.totalorder %s23, 0
      %p347 = por %p345, %p346
      %p348 = scmp.ne.s32.totalorder %s337, %s340
      %p349 = scmp.eq.s32.totalorder %s28, 1
      %p350 = por %p348, %p349
      %p351 = scmp.ne.s32.totalorder %s340, %s341
      %p352 = scmp.eq.s32.totalorder %s28, 0
      %p353 = por %p351, %p352
      %p354 = scmp.ne.s32.totalorder %s340, %s341
      %p355 = scmp.eq.s32.totalorder %s29, 1
      %p356 = por %p354, %p355
      %p358 = scmp.ne.s32.totalorder %s341, %s357
      %p359 = scmp.eq.s32.totalorder %s29, 0
      %p360 = por %p358, %p359
      %p361 = scmp.le.s32.totalorder 1, %s23
      %p362 = scmp.lt.s32.totalorder %s23, 3
      %p363 = pnand %p361, %p362
      %p364 = pneg %p363
      // Predicated region
      $region9: #{bert_encoder_forward.46} parent=5 // pred_check
        _
      $region10: #{bert_encoder_forward.46} parent=5 // pred_check_branch
        %366 = sbr.rel (%p363) target = $region12
      $region11: #{bert_encoder_forward.46} parent=5 // pred_region
        %s367 = ssub.s32 %s23, 1
        // Predicated region
        $region13: #{bert_encoder_forward.46} parent=11 // pred_check
          %p368 = pneg %p96
        $region14: #{bert_encoder_forward.46} parent=11 // pred_check_branch
          %370 = sbr.rel (%p368) target = $region16
        $region15: #{bert_encoder_forward.46} parent=11 // pred_region
          _
        $region16: #{bert_encoder_forward.46} parent=11 // pred_fallthru
          _
        // Predicated region
        $region17: #{bert_encoder_forward.46} parent=11 // pred_check
          %p371 = pneg %p117
        $region18: #{bert_encoder_forward.46} parent=11 // pred_check_branch
          %373 = sbr.rel (%p371) target = $region20
        $region19: #{bert_encoder_forward.46} parent=11 // pred_region
          _
        $region20: #{bert_encoder_forward.46} parent=11 // pred_fallthru
          _
        // Predicated region
        $region21: #{bert_encoder_forward.46} parent=11 // pred_check
          %p374 = pneg %p138
        $region22: #{bert_encoder_forward.46} parent=11 // pred_check_branch
          %376 = sbr.rel (%p374) target = $region24
        $region23: #{bert_encoder_forward.46} parent=11 // pred_region
          _
        $region24: #{bert_encoder_forward.46} parent=11 // pred_fallthru
          _
        // Predicated region
        $region25: #{bert_encoder_forward.46} parent=11 // pred_check
          %p377 = pneg %p159
        $region26: #{bert_encoder_forward.46} parent=11 // pred_check_branch
          %379 = sbr.rel (%p377) target = $region28
        $region27: #{bert_encoder_forward.46} parent=11 // pred_region
          _
        $region28: #{bert_encoder_forward.46} parent=11 // pred_fallthru
          _
        // Predicated region
        $region29: #{bert_encoder_forward.46} parent=11 // pred_check
          %p380 = pneg %p180
        $region30: #{bert_encoder_forward.46} parent=11 // pred_check_branch
          %382 = sbr.rel (%p380) target = $region32
        $region31: #{bert_encoder_forward.46} parent=11 // pred_region
          _
        $region32: #{bert_encoder_forward.46} parent=11 // pred_fallthru
          _
        // Predicated region
        $region33: #{bert_encoder_forward.46} parent=11 // pred_check
          %p383 = pneg %p201
        $region34: #{bert_encoder_forward.46} parent=11 // pred_check_branch
          %385 = sbr.rel (%p383) target = $region36
        $region35: #{bert_encoder_forward.46} parent=11 // pred_region
          _
        $region36: #{bert_encoder_forward.46} parent=11 // pred_fallthru
          _
        // Predicated region
        $region37: #{bert_encoder_forward.46} parent=11 // pred_check
          %p386 = pneg %p222
        $region38: #{bert_encoder_forward.46} parent=11 // pred_check_branch
          %388 = sbr.rel (%p386) target = $region40
        $region39: #{bert_encoder_forward.46} parent=11 // pred_region
          _
        $region40: #{bert_encoder_forward.46} parent=11 // pred_fallthru
          _
        // Predicated region
        $region41: #{bert_encoder_forward.46} parent=11 // pred_check
          %p389 = pneg %p243
        $region42: #{bert_encoder_forward.46} parent=11 // pred_check_branch
          %391 = sbr.rel (%p389) target = $region44
        $region43: #{bert_encoder_forward.46} parent=11 // pred_region
          _
        $region44: #{bert_encoder_forward.46} parent=11 // pred_fallthru
          _
        // Predicated region
        $region45: #{bert_encoder_forward.46} parent=11 // pred_check
          %p392 = pneg %p264
        $region46: #{bert_encoder_forward.46} parent=11 // pred_check_branch
          %394 = sbr.rel (%p392) target = $region48
        $region47: #{bert_encoder_forward.46} parent=11 // pred_region
          _
        $region48: #{bert_encoder_forward.46} parent=11 // pred_fallthru
          _
        // Predicated region
        $region49: #{bert_encoder_forward.46} parent=11 // pred_check
          %p395 = pneg %p285
        $region50: #{bert_encoder_forward.46} parent=11 // pred_check_branch
          %397 = sbr.rel (%p395) target = $region52
        $region51: #{bert_encoder_forward.46} parent=11 // pred_region
          _
        $region52: #{bert_encoder_forward.46} parent=11 // pred_fallthru
          _
        // Predicated region
        $region53: #{bert_encoder_forward.46} parent=11 // pred_check
          %p398 = pneg %p306
        $region54: #{bert_encoder_forward.46} parent=11 // pred_check_branch
          %400 = sbr.rel (%p398) target = $region56
        $region55: #{bert_encoder_forward.46} parent=11 // pred_region
          _
        $region56: #{bert_encoder_forward.46} parent=11 // pred_fallthru
          _
        // Predicated region
        $region57: #{bert_encoder_forward.46} parent=11 // pred_check
          %p401 = pneg %p327
        $region58: #{bert_encoder_forward.46} parent=11 // pred_check_branch
          %403 = sbr.rel (%p401) target = $region60
        $region59: #{bert_encoder_forward.46} parent=11 // pred_region
          _
        $region60: #{bert_encoder_forward.46} parent=11 // pred_fallthru
          _
      $region12: #{bert_encoder_forward.46} parent=5 // pred_fallthru
        _
      %p404 = scmp.lt.s32.totalorder %s23, 2
      // Predicated region
      $region61: #{bert_encoder_forward.46} parent=5 // pred_check
        %p405 = pneg %p404
      $region62: #{bert_encoder_forward.46} parent=5 // pred_check_branch
        %407 = sbr.rel (%p405) target = $region64
      $region63: #{bert_encoder_forward.46} parent=5 // pred_region
        // Predicated region
        $region65: #{bert_encoder_forward.46} parent=63 // pred_check
          %p408 = pneg %p43
        $region66: #{bert_encoder_forward.46} parent=63 // pred_check_branch
          %410 = sbr.rel (%p408) target = $region68
        $region67: #{bert_encoder_forward.46} parent=63 // pred_region
          %p411 = scmp.lt.s32.totalorder %s23, 1
          %s412 = scalar_select %p411, %s23, 1
          %s413 = smul.addr %s412, 8
          %s414 = scalar_lea.vmem %s0, %s413
        $region68: #{bert_encoder_forward.46} parent=63 // pred_fallthru
          _
        // Predicated region
        $region69: #{bert_encoder_forward.46} parent=63 // pred_check
          %p415 = pneg %p69
        $region70: #{bert_encoder_forward.46} parent=63 // pred_check_branch
          %417 = sbr.rel (%p415) target = $region72
        $region71: #{bert_encoder_forward.46} parent=63 // pred_region
          %p418 = scmp.lt.s32.totalorder %s23, 1
          %s419 = scalar_select %p418, %s23, 1
          %s420 = scalar_lea.vmem %s1, %s419
        $region72: #{bert_encoder_forward.46} parent=63 // pred_fallthru
          _
      $region64: #{bert_encoder_forward.46} parent=5 // pred_fallthru
        _
      %p421 = scmp.le.s32.totalorder 1, %s23
      %p422 = scmp.lt.s32.totalorder %s23, 3
      %p423 = pnand %p421, %p422
      %p424 = pneg %p423
      // Predicated region
      $region73: #{bert_encoder_forward.46} parent=5 // pred_check
        _
      $region74: #{bert_encoder_forward.46} parent=5 // pred_check_branch
        %426 = sbr.rel (%p423) target = $region76
      $region75: #{bert_encoder_forward.46} parent=5 // pred_region
        %s427 = ssub.s32 %s23, 1
        %p428 = scmp.lt.s32.totalorder %s28, 1
        %s429 = scalar_select %p428, %s28, 1
        %s430 = smul.addr %s429, 8
        %s431 = scalar_lea.vmem %s0, %s430
        %p432 = pneg %p49
        %p433 = pneg %p46
        %p434 = scmp.lt.s32.totalorder %s28, 1
        %s435 = scalar_select %p434, %s28, 1
        %s436 = scalar_lea.vmem %s1, %s435
        %p437 = pneg %p75
        %p438 = pneg %p72
        %p439 = pneg %p96
        %p440 = pneg %p93
        %p441 = pneg %p117
        %p442 = pneg %p114
        %p443 = pneg %p138
        %p444 = pneg %p135
        %p445 = pneg %p159
        %p446 = pneg %p156
        %p447 = pneg %p180
        %p448 = pneg %p177
        %p449 = pneg %p201
        %p450 = pneg %p198
        %p451 = pneg %p222
        %p452 = pneg %p219
        %p453 = pneg %p243
        %p454 = pneg %p240
        %p455 = pneg %p264
        %p456 = pneg %p261
        %p457 = pneg %p285
        %p458 = pneg %p282
        %p459 = pneg %p306
        %p460 = pneg %p303
        %p461 = pneg %p327
        %p462 = pneg %p324
        %p463 = pneg %p353
        %p464 = pneg %p350
        %s465 = sand.u32 %s340, 1
        %s466 = scalar_lea.sflag [#allocation3], %s465
        %s467 = sand.u32 %s340, 1
        %s468 = smul.addr %s467, 8
        %s469 = scalar_lea.vmem [#allocation2], %s468
        %p470 = scmp.lt.s32.totalorder %s28, 1
        %s471 = scalar_select %p470, %s28, 1
        %s472 = smul.addr %s471, 8
        %s473 = scalar_lea.vmem %s0, %s472
        %p474 = scmp.lt.s32.totalorder %s28, 1
        %s475 = scalar_select %p474, %s28, 1
        %s476 = scalar_lea.vmem %s1, %s475
        %v478 = vld [vmem:[%s473] sm:$0xff]
        %v479 = vld [vmem:[%s476] sm:$0x1]
        %v480 = vpack.c.bf16 %v478, %v478
        %v481 = vld [vmem:[%s2] sm:$0xf]
        %v482 = vld [vmem:[%s2 + $0x4] sm:$0xf]
        %v483 = vld [vmem:[%s2 + $0x8] sm:$0xf]
        %v484 = vld [vmem:[%s2 + $0xc] sm:$0xf]
        %v485 = vld [vmem:[%s3] sm:$0x1]
        %v487 = vlaneseq
        %v488 = vshrl.u32 %v487, 7
        %v489 = vsub.s32 0, %v488
        %v490 = vrot.slane %v485, %v489
        %v496 = vunpack.c.l.b16 %v481
        %v497 = vunpack.c.l.b16 %v482
        %v498 = vunpack.c.l.b16 %v483
        %v499 = vunpack.c.l.b16 %v484
        %v500 = vpack.c.b16 %v497, %v496
        %v501 = vpack.c.b16 %v499, %v498
        %vm504 = vcmask 261120
        %v506 = vsel %vm504, %v480, 0
        %508 = vmatprep.subr.bf16.mxu0 0
        %509 = vmatpush1.bf16.msra.mxu0 %v500
        %510 = vmatprep.subr.bf16.mxu0 0
        %511 = vmatpush1.bf16.msra.mxu0 %v501
        %512 = vmatprep.subr.bf16.mxu0 0
        %513 = vmatpush1.bf16.msra.mxu0 0
        %514 = vmatprep.subr.bf16.mxu0 0
        %515 = vmatpush1.bf16.msra.mxu0 0
        %516 = vmatprep.subr.bf16.mxu0 0
        %517 = vmatpush1.bf16.msra.mxu0 0
        %518 = vmatprep.subr.bf16.mxu0 0
        %519 = vmatpush1.bf16.msra.mxu0 0
        %520 = vmatprep.subr.bf16.mxu0 0
        %521 = vmatpush1.bf16.msra.mxu0 0
        %522 = vmatprep.subr.bf16.mxu0 0
        %523 = vmatpush1.bf16.msra.mxu0 0
        %524 = vmatprep.subr.bf16.mxu0 0
        %525 = vmatpush1.bf16.msra.mxu0 0
        %526 = vmatprep.subr.bf16.mxu0 0
        %527 = vmatpush1.bf16.msra.mxu0 0
        %528 = vmatprep.subr.bf16.mxu0 0
        %529 = vmatpush1.bf16.msra.mxu0 0
        %530 = vmatprep.subr.bf16.mxu0 0
        %531 = vmatpush1.bf16.msra.mxu0 0
        %532 = vmatprep.subr.bf16.mxu0 0
        %533 = vmatpush1.bf16.msra.mxu0 0
        %534 = vmatprep.subr.bf16.mxu0 0
        %535 = vmatpush1.bf16.msra.mxu0 0
        %536 = vmatprep.subr.bf16.mxu0 0
        %537 = vmatpush1.bf16.msra.mxu0 0
        %538 = vmatprep.subr.bf16.mxu0 0
        %539 = vmatpush1.bf16.msra.mxu0 0
        %540 = vmatprep.mubr.bf16.mxu0 0
        %541 = vmatmul.mubr.bf16.gmra.mrb[0].mxu0 %v506
        %v542 = vpop.f32.mrb[0].mxu0
        %v543 = vadd.f32 %v490, %v542
        %v544 = vpop.f32.mrb[0].mxu0
        %v545 = vpop.f32.mrb[0].mxu0
        %v546 = vpop.f32.mrb[0].mxu0
        %547 = vdwg.mxu0
        %v548 = vmul.f32 %v543, 0.35355338
        %v549 = vpack.c.bf16 %v548, %v548
        %v550 = vpack.c.bf16 %v543, %v543
        %v552 = vlaneseq
        %v553 = vshrl.u32 %v552, 7
        %v554 = vsub.s32 0, %v553
        %v555 = vrot.slane %v479, %v554
        %558 = vrot.lane.b32.xlu0 %v550, 96
        %v559 = vpop.permute.xlu0 %558
        %vm560 = vcmask 64512
        %v562 = vsel %vm560, %v549, 0
        %v565 = vsel %vm560, %v559, 0
        %567 = vmatprep.subr.bf16.mxu0 0
        %568 = vmatpush1.bf16.xpose.msra.mxu0 %v565
        %569 = vmatprep.subr.bf16.mxu0 0
        %570 = vmatpush1.bf16.xpose.msra.mxu0 0
        %571 = vmatprep.subr.bf16.mxu0 0
        %572 = vmatpush1.bf16.xpose.msra.mxu0 0
        %573 = vmatprep.subr.bf16.mxu0 0
        %574 = vmatpush1.bf16.xpose.msra.mxu0 0
        %575 = vmatprep.subr.bf16.mxu0 0
        %576 = vmatpush1.bf16.xpose.msra.mxu0 0
        %577 = vmatprep.subr.bf16.mxu0 0
        %578 = vmatpush1.bf16.xpose.msra.mxu0 0
        %579 = vmatprep.subr.bf16.mxu0 0
        %580 = vmatpush1.bf16.xpose.msra.mxu0 0
        %581 = vmatprep.subr.bf16.mxu0 0
        %582 = vmatpush1.bf16.xpose.msra.mxu0 0
        %583 = vmatprep.subr.bf16.mxu0 0
        %584 = vmatpush1.bf16.xpose.msra.mxu0 0
        %585 = vmatprep.subr.bf16.mxu0 0
        %586 = vmatpush1.bf16.xpose.msra.mxu0 0
        %587 = vmatprep.subr.bf16.mxu0 0
        %588 = vmatpush1.bf16.xpose.msra.mxu0 0
        %589 = vmatprep.subr.bf16.mxu0 0
        %590 = vmatpush1.bf16.xpose.msra.mxu0 0
        %591 = vmatprep.subr.bf16.mxu0 0
        %592 = vmatpush1.bf16.xpose.msra.mxu0 0
        %593 = vmatprep.subr.bf16.mxu0 0
        %594 = vmatpush1.bf16.xpose.msra.mxu0 0
        %595 = vmatprep.subr.bf16.mxu0 0
        %596 = vmatpush1.bf16.xpose.msra.mxu0 0
        %597 = vmatprep.subr.bf16.mxu0 0
        %598 = vmatpush1.bf16.xpose.msra.mxu0 0
        %599 = vmatprep.mubr.bf16.mxu0 0
        %600 = vmatmul.mubr.bf16.gmra.mrb[0].mxu0 %v562
        %v601 = vpop.f32.mrb[0].mxu0
        %v602 = vadd.f32 %v555, %v601
        %v603 = vpop.f32.mrb[0].mxu0
        %v604 = vpop.f32.mrb[0].mxu0
        %v605 = vpop.f32.mrb[0].mxu0
        %606 = vdwg.mxu0
        %v607 = vsel %vm560, %v602, -inf
        %608 = vmax.xlane.f32.xlu0 %v607
        %v609 = vpop.xlane.xlu0 %608
        %v610 = vsub.f32 %v602, %v609
        %v611 = vmul.f32 %v610, 1.442695
        %v612 = vpow.pop %v611
        %v613 = vsel %vm560, %v612, 0.0
        %614 = vadd.xlane.f32.xlu0 %v613
        %v615 = vpop.xlane.xlu0 %614
        %v616 = vpack.c.bf16 %v612, %v612
        %617 = vrot.lane.b32.xlu0 %v550, 64
        %v618 = vpop.permute.xlu0 %617
        %v620 = vsel %vm560, %v616, 0
        %vm622 = vcmask 1043456
        %v624 = vsel %vm622, %v618, 0
        %626 = vmatprep.subr.bf16.mxu0 0
        %627 = vmatpush1.bf16.msra.mxu0 %v624
        %628 = vmatprep.subr.bf16.mxu0 0
        %629 = vmatpush1.bf16.msra.mxu0 0
        %630 = vmatprep.subr.bf16.mxu0 0
        %631 = vmatpush1.bf16.msra.mxu0 0
        %632 = vmatprep.subr.bf16.mxu0 0
        %633 = vmatpush1.bf16.msra.mxu0 0
        %634 = vmatprep.subr.bf16.mxu0 0
        %635 = vmatpush1.bf16.msra.mxu0 0
        %636 = vmatprep.subr.bf16.mxu0 0
        %637 = vmatpush1.bf16.msra.mxu0 0
        %638 = vmatprep.subr.bf16.mxu0 0
        %639 = vmatpush1.bf16.msra.mxu0 0
        %640 = vmatprep.subr.bf16.mxu0 0
        %641 = vmatpush1.bf16.msra.mxu0 0
        %642 = vmatprep.subr.bf16.mxu0 0
        %643 = vmatpush1.bf16.msra.mxu0 0
        %644 = vmatprep.subr.bf16.mxu0 0
        %645 = vmatpush1.bf16.msra.mxu0 0
        %646 = vmatprep.subr.bf16.mxu0 0
        %647 = vmatpush1.bf16.msra.mxu0 0
        %648 = vmatprep.subr.bf16.mxu0 0
        %649 = vmatpush1.bf16.msra.mxu0 0
        %650 = vmatprep.subr.bf16.mxu0 0
        %651 = vmatpush1.bf16.msra.mxu0 0
        %652 = vmatprep.subr.bf16.mxu0 0
        %653 = vmatpush1.bf16.msra.mxu0 0
        %654 = vmatprep.subr.bf16.mxu0 0
        %655 = vmatpush1.bf16.msra.mxu0 0
        %656 = vmatprep.subr.bf16.mxu0 0
        %657 = vmatpush1.bf16.msra.mxu0 0
        %658 = vmatprep.mubr.bf16.mxu0 0
        %659 = vmatmul.mubr.bf16.gmra.mrb[0].mxu0 %v620
        %v660 = vpop.f32.mrb[0].mxu0
        %v661 = vadd.f32 0.0, %v660
        %v662 = vpop.f32.mrb[0].mxu0
        %v663 = vpop.f32.mrb[0].mxu0
        %v664 = vpop.f32.mrb[0].mxu0
        %665 = vdwg.mxu0
        %v666 = vrcp.pop %v615
        %v667 = vmul.f32 %v661, %v666
        %v668 = vpack.c.bf16 %v667, %v667
        %v669 = vld [vmem:[%s4] sm:$0xf]
        %671 = vrot.lane.b32.xlu0 %v549, 120
        %v672 = vpop.permute.xlu0 %671
        %673 = vrot.lane.b32.xlu0 %v550, 88
        %v674 = vpop.permute.xlu0 %673
        %v676 = vsel %vm560, %v672, 0
        %v679 = vsel %vm560, %v674, 0
        %681 = vmatprep.subr.bf16.mxu0 0
        %682 = vmatpush1.bf16.xpose.msra.mxu0 %v679
        %683 = vmatprep.subr.bf16.mxu0 0
        %684 = vmatpush1.bf16.xpose.msra.mxu0 0
        %685 = vmatprep.subr.bf16.mxu0 0
        %686 = vmatpush1.bf16.xpose.msra.mxu0 0
        %687 = vmatprep.subr.bf16.mxu0 0
        %688 = vmatpush1.bf16.xpose.msra.mxu0 0
        %689 = vmatprep.subr.bf16.mxu0 0
        %690 = vmatpush1.bf16.xpose.msra.mxu0 0
        %691 = vmatprep.subr.bf16.mxu0 0
        %692 = vmatpush1.bf16.xpose.msra.mxu0 0
        %693 = vmatprep.subr.bf16.mxu0 0
        %694 = vmatpush1.bf16.xpose.msra.mxu0 0
        %695 = vmatprep.subr.bf16.mxu0 0
        %696 = vmatpush1.bf16.xpose.msra.mxu0 0
        %697 = vmatprep.subr.bf16.mxu0 0
        %698 = vmatpush1.bf16.xpose.msra.mxu0 0
        %699 = vmatprep.subr.bf16.mxu0 0
        %700 = vmatpush1.bf16.xpose.msra.mxu0 0
        %701 = vmatprep.subr.bf16.mxu0 0
        %702 = vmatpush1.bf16.xpose.msra.mxu0 0
        %703 = vmatprep.subr.bf16.mxu0 0
        %704 = vmatpush1.bf16.xpose.msra.mxu0 0
        %705 = vmatprep.subr.bf16.mxu0 0
        %706 = vmatpush1.bf16.xpose.msra.mxu0 0
        %707 = vmatprep.subr.bf16.mxu0 0
        %708 = vmatpush1.bf16.xpose.msra.mxu0 0
        %709 = vmatprep.subr.bf16.mxu0 0
        %710 = vmatpush1.bf16.xpose.msra.mxu0 0
        %711 = vmatprep.subr.bf16.mxu0 0
        %712 = vmatpush1.bf16.xpose.msra.mxu0 0
        %713 = vmatprep.mubr.bf16.mxu0 0
        %714 = vmatmul.mubr.bf16.gmra.mrb[0].mxu0 %v676
        %v715 = vpop.f32.mrb[0].mxu0
        %v716 = vadd.f32 %v555, %v715
        %v717 = vpop.f32.mrb[0].mxu0
        %v718 = vpop.f32.mrb[0].mxu0
        %v719 = vpop.f32.mrb[0].mxu0
        %720 = vdwg.mxu0
        %v721 = vsel %vm560, %v716, -inf
        %722 = vmax.xlane.f32.xlu0 %v721
        %v723 = vpop.xlane.xlu0 %722
        %v724 = vsub.f32 %v716, %v723
        %v725 = vmul.f32 %v724, 1.442695
        %v726 = vpow.pop %v725
        %v727 = vsel %vm560, %v726, 0.0
        %728 = vadd.xlane.f32.xlu0 %v727
        %v729 = vpop.xlane.xlu0 %728
        %v730 = vpack.c.bf16 %v726, %v726
        %731 = vrot.lane.b32.xlu0 %v550, 56
        %v732 = vpop.permute.xlu0 %731
        %v734 = vsel %vm560, %v730, 0
        %v737 = vsel %vm622, %v732, 0
        %739 = vmatprep.subr.bf16.mxu0 0
        %740 = vmatpush1.bf16.msra.mxu0 %v737
        %741 = vmatprep.subr.bf16.mxu0 0
        %742 = vmatpush1.bf16.msra.mxu0 0
        %743 = vmatprep.subr.bf16.mxu0 0
        %744 = vmatpush1.bf16.msra.mxu0 0
        %745 = vmatprep.subr.bf16.mxu0 0
        %746 = vmatpush1.bf16.msra.mxu0 0
        %747 = vmatprep.subr.bf16.mxu0 0
        %748 = vmatpush1.bf16.msra.mxu0 0
        %749 = vmatprep.subr.bf16.mxu0 0
        %750 = vmatpush1.bf16.msra.mxu0 0
        %751 = vmatprep.subr.bf16.mxu0 0
        %752 = vmatpush1.bf16.msra.mxu0 0
        %753 = vmatprep.subr.bf16.mxu0 0
        %754 = vmatpush1.bf16.msra.mxu0 0
        %755 = vmatprep.subr.bf16.mxu0 0
        %756 = vmatpush1.bf16.msra.mxu0 0
        %757 = vmatprep.subr.bf16.mxu0 0
        %758 = vmatpush1.bf16.msra.mxu0 0
        %759 = vmatprep.subr.bf16.mxu0 0
        %760 = vmatpush1.bf16.msra.mxu0 0
        %761 = vmatprep.subr.bf16.mxu0 0
        %762 = vmatpush1.bf16.msra.mxu0 0
        %763 = vmatprep.subr.bf16.mxu0 0
        %764 = vmatpush1.bf16.msra.mxu0 0
        %765 = vmatprep.subr.bf16.mxu0 0
        %766 = vmatpush1.bf16.msra.mxu0 0
        %767 = vmatprep.subr.bf16.mxu0 0
        %768 = vmatpush1.bf16.msra.mxu0 0
        %769 = vmatprep.subr.bf16.mxu0 0
        %770 = vmatpush1.bf16.msra.mxu0 0
        %771 = vmatprep.mubr.bf16.mxu0 0
        %772 = vmatmul.mubr.bf16.gmra.mrb[0].mxu0 %v734
        %v773 = vpop.f32.mrb[0].mxu0
        %v774 = vadd.f32 0.0, %v773
        %v775 = vpop.f32.mrb[0].mxu0
        %v776 = vpop.f32.mrb[0].mxu0
        %v777 = vpop.f32.mrb[0].mxu0
        %778 = vdwg.mxu0
        %v779 = vrcp.pop %v729
        %v780 = vmul.f32 %v774, %v779
        %v781 = vpack.c.bf16 %v780, %v780
        %s782 = scalar_lea.vmem %s4, 4
        %v783 = vld [vmem:[%s782] sm:$0xf]
        %v785 = vsel %vm560, %v781, 0
        %v788 = vsel %vm622, %v783, 0
        %790 = vmatprep.subr.bf16.mxu0 0
        %791 = vmatpush1.bf16.msra.mxu0 %v788
        %792 = vmatprep.subr.bf16.mxu0 0
        %793 = vmatpush1.bf16.msra.mxu0 0
        %794 = vmatprep.subr.bf16.mxu0 0
        %795 = vmatpush1.bf16.msra.mxu0 0
        %796 = vmatprep.subr.bf16.mxu0 0
        %797 = vmatpush1.bf16.msra.mxu0 0
        %798 = vmatprep.subr.bf16.mxu0 0
        %799 = vmatpush1.bf16.msra.mxu0 0
        %800 = vmatprep.subr.bf16.mxu0 0
        %801 = vmatpush1.bf16.msra.mxu0 0
        %802 = vmatprep.subr.bf16.mxu0 0
        %803 = vmatpush1.bf16.msra.mxu0 0
        %804 = vmatprep.subr.bf16.mxu0 0
        %805 = vmatpush1.bf16.msra.mxu0 0
        %806 = vmatprep.subr.bf16.mxu0 0
        %807 = vmatpush1.bf16.msra.mxu0 0
        %808 = vmatprep.subr.bf16.mxu0 0
        %809 = vmatpush1.bf16.msra.mxu0 0
        %810 = vmatprep.subr.bf16.mxu0 0
        %811 = vmatpush1.bf16.msra.mxu0 0
        %812 = vmatprep.subr.bf16.mxu0 0
        %813 = vmatpush1.bf16.msra.mxu0 0
        %814 = vmatprep.subr.bf16.mxu0 0
        %815 = vmatpush1.bf16.msra.mxu0 0
        %816 = vmatprep.subr.bf16.mxu0 0
        %817 = vmatpush1.bf16.msra.mxu0 0
        %818 = vmatprep.subr.bf16.mxu0 0
        %819 = vmatpush1.bf16.msra.mxu0 0
        %820 = vmatprep.subr.bf16.mxu0 0
        %821 = vmatpush1.bf16.msra.mxu0 0
        %822 = vmatprep.mubr.bf16.mxu0 0
        %823 = vmatmul.mubr.bf16.gmra.mrb[0].mxu0 %v785
        %v824 = vpop.f32.mrb[0].mxu0
        %v825 = vadd.f32 0.0, %v824
        %v826 = vpop.f32.mrb[0].mxu0
        %v827 = vpop.f32.mrb[0].mxu0
        %v828 = vpop.f32.mrb[0].mxu0
        %829 = vdwg.mxu0
        %v831 = vsel %vm560, %v668, 0
        %v834 = vsel %vm622, %v669, 0
        %836 = vmatprep.subr.bf16.mxu0 0
        %837 = vmatpush1.bf16.msra.mxu0 %v834
        %838 = vmatprep.subr.bf16.mxu0 0
        %839 = vmatpush1.bf16.msra.mxu0 0
        %840 = vmatprep.subr.bf16.mxu0 0
        %841 = vmatpush1.bf16.msra.mxu0 0
        %842 = vmatprep.subr.bf16.mxu0 0
        %843 = vmatpush1.bf16.msra.mxu0 0
        %844 = vmatprep.subr.bf16.mxu0 0
        %845 = vmatpush1.bf16.msra.mxu0 0
        %846 = vmatprep.subr.bf16.mxu0 0
        %847 = vmatpush1.bf16.msra.mxu0 0
        %848 = vmatprep.subr.bf16.mxu0 0
        %849 = vmatpush1.bf16.msra.mxu0 0
        %850 = vmatprep.subr.bf16.mxu0 0
        %851 = vmatpush1.bf16.msra.mxu0 0
        %852 = vmatprep.subr.bf16.mxu0 0
        %853 = vmatpush1.bf16.msra.mxu0 0
        %854 = vmatprep.subr.bf16.mxu0 0
        %855 = vmatpush1.bf16.msra.mxu0 0
        %856 = vmatprep.subr.bf16.mxu0 0
        %857 = vmatpush1.bf16.msra.mxu0 0
        %858 = vmatprep.subr.bf16.mxu0 0
        %859 = vmatpush1.bf16.msra.mxu0 0
        %860 = vmatprep.subr.bf16.mxu0 0
        %861 = vmatpush1.bf16.msra.mxu0 0
        %862 = vmatprep.subr.bf16.mxu0 0
        %863 = vmatpush1.bf16.msra.mxu0 0
        %864 = vmatprep.subr.bf16.mxu0 0
        %865 = vmatpush1.bf16.msra.mxu0 0
        %866 = vmatprep.subr.bf16.mxu0 0
        %867 = vmatpush1.bf16.msra.mxu0 0
        %868 = vmatprep.mubr.bf16.mxu0 0
        %869 = vmatmul.mubr.bf16.gmra.mrb[0].mxu0 %v831
        %v870 = vpop.f32.mrb[0].mxu0
        %v871 = vadd.f32 %v825, %v870
        %v872 = vpop.f32.mrb[0].mxu0
        %v873 = vpop.f32.mrb[0].mxu0
        %v874 = vpop.f32.mrb[0].mxu0
        %875 = vdwg.mxu0
        %876 = vrot.lane.b32.xlu0 %v549, 112
        %v877 = vpop.permute.xlu0 %876
        %878 = vrot.lane.b32.xlu0 %v550, 80
        %v879 = vpop.permute.xlu0 %878
        %v881 = vsel %vm560, %v877, 0
        %v884 = vsel %vm560, %v879, 0
        %886 = vmatprep.subr.bf16.mxu0 0
        %887 = vmatpush1.bf16.xpose.msra.mxu0 %v884
        %888 = vmatprep.subr.bf16.mxu0 0
        %889 = vmatpush1.bf16.xpose.msra.mxu0 0
        %890 = vmatprep.subr.bf16.mxu0 0
        %891 = vmatpush1.bf16.xpose.msra.mxu0 0
        %892 = vmatprep.subr.bf16.mxu0 0
        %893 = vmatpush1.bf16.xpose.msra.mxu0 0
        %894 = vmatprep.subr.bf16.mxu0 0
        %895 = vmatpush1.bf16.xpose.msra.mxu0 0
        %896 = vmatprep.subr.bf16.mxu0 0
        %897 = vmatpush1.bf16.xpose.msra.mxu0 0
        %898 = vmatprep.subr.bf16.mxu0 0
        %899 = vmatpush1.bf16.xpose.msra.mxu0 0
        %900 = vmatprep.subr.bf16.mxu0 0
        %901 = vmatpush1.bf16.xpose.msra.mxu0 0
        %902 = vmatprep.subr.bf16.mxu0 0
        %903 = vmatpush1.bf16.xpose.msra.mxu0 0
        %904 = vmatprep.subr.bf16.mxu0 0
        %905 = vmatpush1.bf16.xpose.msra.mxu0 0
        %906 = vmatprep.subr.bf16.mxu0 0
        %907 = vmatpush1.bf16.xpose.msra.mxu0 0
        %908 = vmatprep.subr.bf16.mxu0 0
        %909 = vmatpush1.bf16.xpose.msra.mxu0 0
        %910 = vmatprep.subr.bf16.mxu0 0
        %911 = vmatpush1.bf16.xpose.msra.mxu0 0
        %912 = vmatprep.subr.bf16.mxu0 0
        %913 = vmatpush1.bf16.xpose.msra.mxu0 0
        %914 = vmatprep.subr.bf16.mxu0 0
        %915 = vmatpush1.bf16.xpose.msra.mxu0 0
        %916 = vmatprep.subr.bf16.mxu0 0
        %917 = vmatpush1.bf16.xpose.msra.mxu0 0
        %918 = vmatprep.mubr.bf16.mxu0 0
        %919 = vmatmul.mubr.bf16.gmra.mrb[0].mxu0 %v881
        %v920 = vpop.f32.mrb[0].mxu0
        %v921 = vadd.f32 %v555, %v920
        %v922 = vpop.f32.mrb[0].mxu0
        %v923 = vpop.f32.mrb[0].mxu0
        %v924 = vpop.f32.mrb[0].mxu0
        %925 = vdwg.mxu0
        %v926 = vsel %vm560, %v921, -inf
        %927 = vmax.xlane.f32.xlu0 %v926
        %v928 = vpop.xlane.xlu0 %927
        %v929 = vsub.f32 %v921, %v928
        %v930 = vmul.f32 %v929, 1.442695
        %v931 = vpow.pop %v930
        %v932 = vsel %vm560, %v931, 0.0
        %933 = vadd.xlane.f32.xlu0 %v932
        %v934 = vpop.xlane.xlu0 %933
        %v935 = vpack.c.bf16 %v931, %v931
        %936 = vrot.lane.b32.xlu0 %v550, 48
        %v937 = vpop.permute.xlu0 %936
        %v939 = vsel %vm560, %v935, 0
        %v942 = vsel %vm622, %v937, 0
        %944 = vmatprep.subr.bf16.mxu0 0
        %945 = vmatpush1.bf16.msra.mxu0 %v942
        %946 = vmatprep.subr.bf16.mxu0 0
        %947 = vmatpush1.bf16.msra.mxu0 0
        %948 = vmatprep.subr.bf16.mxu0 0
        %949 = vmatpush1.bf16.msra.mxu0 0
        %950 = vmatprep.subr.bf16.mxu0 0
        %951 = vmatpush1.bf16.msra.mxu0 0
        %952 = vmatprep.subr.bf16.mxu0 0
        %953 = vmatpush1.bf16.msra.mxu0 0
        %954 = vmatprep.subr.bf16.mxu0 0
        %955 = vmatpush1.bf16.msra.mxu0 0
        %956 = vmatprep.subr.bf16.mxu0 0
        %957 = vmatpush1.bf16.msra.mxu0 0
        %958 = vmatprep.subr.bf16.mxu0 0
        %959 = vmatpush1.bf16.msra.mxu0 0
        %960 = vmatprep.subr.bf16.mxu0 0
        %961 = vmatpush1.bf16.msra.mxu0 0
        %962 = vmatprep.subr.bf16.mxu0 0
        %963 = vmatpush1.bf16.msra.mxu0 0
        %964 = vmatprep.subr.bf16.mxu0 0
        %965 = vmatpush1.bf16.msra.mxu0 0
        %966 = vmatprep.subr.bf16.mxu0 0
        %967 = vmatpush1.bf16.msra.mxu0 0
        %968 = vmatprep.subr.bf16.mxu0 0
        %969 = vmatpush1.bf16.msra.mxu0 0
        %970 = vmatprep.subr.bf16.mxu0 0
        %971 = vmatpush1.bf16.msra.mxu0 0
        %972 = vmatprep.subr.bf16.mxu0 0
        %973 = vmatpush1.bf16.msra.mxu0 0
        %974 = vmatprep.subr.bf16.mxu0 0
        %975 = vmatpush1.bf16.msra.mxu0 0
        %976 = vmatprep.mubr.bf16.mxu0 0
        %977 = vmatmul.mubr.bf16.gmra.mrb[0].mxu0 %v939
        %v978 = vpop.f32.mrb[0].mxu0
        %v979 = vadd.f32 0.0, %v978
        %v980 = vpop.f32.mrb[0].mxu0
        %v981 = vpop.f32.mrb[0].mxu0
        %v982 = vpop.f32.mrb[0].mxu0
        %983 = vdwg.mxu0
        %v984 = vrcp.pop %v934
        %v985 = vmul.f32 %v979, %v984
        %v986 = vpack.c.bf16 %v985, %v985
        %s987 = scalar_lea.vmem %s4, 8
        %v988 = vld [vmem:[%s987] sm:$0xf]
        %v990 = vsel %vm560, %v986, 0
        %v993 = vsel %vm622, %v988, 0
        %995 = vmatprep.subr.bf16.mxu0 0
        %996 = vmatpush1.bf16.msra.mxu0 %v993
        %997 = vmatprep.subr.bf16.mxu0 0
        %998 = vmatpush1.bf16.msra.mxu0 0
        %999 = vmatprep.subr.bf16.mxu0 0
        %1000 = vmatpush1.bf16.msra.mxu0 0
        %1001 = vmatprep.subr.bf16.mxu0 0
        %1002 = vmatpush1.bf16.msra.mxu0 0
        %1003 = vmatprep.subr.bf16.mxu0 0
        %1004 = vmatpush1.bf16.msra.mxu0 0
        %1005 = vmatprep.subr.bf16.mxu0 0
        %1006 = vmatpush1.bf16.msra.mxu0 0
        %1007 = vmatprep.subr.bf16.mxu0 0
        %1008 = vmatpush1.bf16.msra.mxu0 0
        %1009 = vmatprep.subr.bf16.mxu0 0
        %1010 = vmatpush1.bf16.msra.mxu0 0
        %1011 = vmatprep.subr.bf16.mxu0 0
        %1012 = vmatpush1.bf16.msra.mxu0 0
        %1013 = vmatprep.subr.bf16.mxu0 0
        %1014 = vmatpush1.bf16.msra.mxu0 0
        %1015 = vmatprep.subr.bf16.mxu0 0
        %1016 = vmatpush1.bf16.msra.mxu0 0
        %1017 = vmatprep.subr.bf16.mxu0 0
        %1018 = vmatpush1.bf16.msra.mxu0 0
        %1019 = vmatprep.subr.bf16.mxu0 0
        %1020 = vmatpush1.bf16.msra.mxu0 0
        %1021 = vmatprep.subr.bf16.mxu0 0
        %1022 = vmatpush1.bf16.msra.mxu0 0
        %1023 = vmatprep.subr.bf16.mxu0 0
        %1024 = vmatpush1.bf16.msra.mxu0 0
        %1025 = vmatprep.subr.bf16.mxu0 0
        %1026 = vmatpush1.bf16.msra.mxu0 0
        %1027 = vmatprep.mubr.bf16.mxu0 0
        %1028 = vmatmul.mubr.bf16.gmra.mrb[0].mxu0 %v990
        %v1029 = vpop.f32.mrb[0].mxu0
        %v1030 = vadd.f32 0.0, %v1029
        %v1031 = vpop.f32.mrb[0].mxu0
        %v1032 = vpop.f32.mrb[0].mxu0
        %v1033 = vpop.f32.mrb[0].mxu0
        %1034 = vdwg.mxu0
        %v1035 = vadd.f32 %v871, %v1030
        %1036 = vrot.lane.b32.xlu0 %v549, 104
        %v1037 = vpop.permute.xlu0 %1036
        %1038 = vrot.lane.b32.xlu0 %v550, 72
        %v1039 = vpop.permute.xlu0 %1038
        %v1041 = vsel %vm560, %v1037, 0
        %v1044 = vsel %vm560, %v1039, 0
        %1046 = vmatprep.subr.bf16.mxu0 0
        %1047 = vmatpush1.bf16.xpose.msra.mxu0 %v1044
        %1048 = vmatprep.subr.bf16.mxu0 0
        %1049 = vmatpush1.bf16.xpose.msra.mxu0 0
        %1050 = vmatprep.subr.bf16.mxu0 0
        %1051 = vmatpush1.bf16.xpose.msra.mxu0 0
        %1052 = vmatprep.subr.bf16.mxu0 0
        %1053 = vmatpush1.bf16.xpose.msra.mxu0 0
        %1054 = vmatprep.subr.bf16.mxu0 0
        %1055 = vmatpush1.bf16.xpose.msra.mxu0 0
        %1056 = vmatprep.subr.bf16.mxu0 0
        %1057 = vmatpush1.bf16.xpose.msra.mxu0 0
        %1058 = vmatprep.subr.bf16.mxu0 0
        %1059 = vmatpush1.bf16.xpose.msra.mxu0 0
        %1060 = vmatprep.subr.bf16.mxu0 0
        %1061 = vmatpush1.bf16.xpose.msra.mxu0 0
        %1062 = vmatprep.subr.bf16.mxu0 0
        %1063 = vmatpush1.bf16.xpose.msra.mxu0 0
        %1064 = vmatprep.subr.bf16.mxu0 0
        %1065 = vmatpush1.bf16.xpose.msra.mxu0 0
        %1066 = vmatprep.subr.bf16.mxu0 0
        %1067 = vmatpush1.bf16.xpose.msra.mxu0 0
        %1068 = vmatprep.subr.bf16.mxu0 0
        %1069 = vmatpush1.bf16.xpose.msra.mxu0 0
        %1070 = vmatprep.subr.bf16.mxu0 0
        %1071 = vmatpush1.bf16.xpose.msra.mxu0 0
        %1072 = vmatprep.subr.bf16.mxu0 0
        %1073 = vmatpush1.bf16.xpose.msra.mxu0 0
        %1074 = vmatprep.subr.bf16.mxu0 0
        %1075 = vmatpush1.bf16.xpose.msra.mxu0 0
        %1076 = vmatprep.subr.bf16.mxu0 0
        %1077 = vmatpush1.bf16.xpose.msra.mxu0 0
        %1078 = vmatprep.mubr.bf16.mxu0 0
        %1079 = vmatmul.mubr.bf16.gmra.mrb[0].mxu0 %v1041
        %v1080 = vpop.f32.mrb[0].mxu0
        %v1081 = vadd.f32 %v555, %v1080
        %v1082 = vpop.f32.mrb[0].mxu0
        %v1083 = vpop.f32.mrb[0].mxu0
        %v1084 = vpop.f32.mrb[0].mxu0
        %1085 = vdwg.mxu0
        %v1086 = vsel %vm560, %v1081, -inf
        %1087 = vmax.xlane.f32.xlu0 %v1086
        %v1088 = vpop.xlane.xlu0 %1087
        %v1089 = vsub.f32 %v1081, %v1088
        %v1090 = vmul.f32 %v1089, 1.442695
        %v1091 = vpow.pop %v1090
        %v1092 = vsel %vm560, %v1091, 0.0
        %1093 = vadd.xlane.f32.xlu0 %v1092
        %v1094 = vpop.xlane.xlu0 %1093
        %v1095 = vpack.c.bf16 %v1091, %v1091
        %1096 = vrot.lane.b32.xlu0 %v550, 40
        %v1097 = vpop.permute.xlu0 %1096
        %v1099 = vsel %vm560, %v1095, 0
        %v1102 = vsel %vm622, %v1097, 0
        %1104 = vmatprep.subr.bf16.mxu0 0
        %1105 = vmatpush1.bf16.msra.mxu0 %v1102
        %1106 = vmatprep.subr.bf16.mxu0 0
        %1107 = vmatpush1.bf16.msra.mxu0 0
        %1108 = vmatprep.subr.bf16.mxu0 0
        %1109 = vmatpush1.bf16.msra.mxu0 0
        %1110 = vmatprep.subr.bf16.mxu0 0
        %1111 = vmatpush1.bf16.msra.mxu0 0
        %1112 = vmatprep.subr.bf16.mxu0 0
        %1113 = vmatpush1.bf16.msra.mxu0 0
        %1114 = vmatprep.subr.bf16.mxu0 0
        %1115 = vmatpush1.bf16.msra.mxu0 0
        %1116 = vmatprep.subr.bf16.mxu0 0
        %1117 = vmatpush1.bf16.msra.mxu0 0
        %1118 = vmatprep.subr.bf16.mxu0 0
        %1119 = vmatpush1.bf16.msra.mxu0 0
        %1120 = vmatprep.subr.bf16.mxu0 0
        %1121 = vmatpush1.bf16.msra.mxu0 0
        %1122 = vmatprep.subr.bf16.mxu0 0
        %1123 = vmatpush1.bf16.msra.mxu0 0
        %1124 = vmatprep.subr.bf16.mxu0 0
        %1125 = vmatpush1.bf16.msra.mxu0 0
        %1126 = vmatprep.subr.bf16.mxu0 0
        %1127 = vmatpush1.bf16.msra.mxu0 0
        %1128 = vmatprep.subr.bf16.mxu0 0
        %1129 = vmatpush1.bf16.msra.mxu0 0
        %1130 = vmatprep.subr.bf16.mxu0 0
        %1131 = vmatpush1.bf16.msra.mxu0 0
        %1132 = vmatprep.subr.bf16.mxu0 0
        %1133 = vmatpush1.bf16.msra.mxu0 0
        %1134 = vmatprep.subr.bf16.mxu0 0
        %1135 = vmatpush1.bf16.msra.mxu0 0
        %1136 = vmatprep.mubr.bf16.mxu0 0
        %1137 = vmatmul.mubr.bf16.gmra.mrb[0].mxu0 %v1099
        %v1138 = vpop.f32.mrb[0].mxu0
        %v1139 = vadd.f32 0.0, %v1138
        %v1140 = vpop.f32.mrb[0].mxu0
        %v1141 = vpop.f32.mrb[0].mxu0
        %v1142 = vpop.f32.mrb[0].mxu0
        %1143 = vdwg.mxu0
        %v1144 = vrcp.pop %v1094
        %v1145 = vmul.f32 %v1139, %v1144
        %v1146 = vpack.c.bf16 %v1145, %v1145
        %s1147 = scalar_lea.vmem %s4, 12
        %v1148 = vld [vmem:[%s1147] sm:$0xf]
        %v1150 = vsel %vm560, %v1146, 0
        %v1153 = vsel %vm622, %v1148, 0
        %1155 = vmatprep.subr.bf16.mxu0 0
        %1156 = vmatpush1.bf16.msra.mxu0 %v1153
        %1157 = vmatprep.subr.bf16.mxu0 0
        %1158 = vmatpush1.bf16.msra.mxu0 0
        %1159 = vmatprep.subr.bf16.mxu0 0
        %1160 = vmatpush1.bf16.msra.mxu0 0
        %1161 = vmatprep.subr.bf16.mxu0 0
        %1162 = vmatpush1.bf16.msra.mxu0 0
        %1163 = vmatprep.subr.bf16.mxu0 0
        %1164 = vmatpush1.bf16.msra.mxu0 0
        %1165 = vmatprep.subr.bf16.mxu0 0
        %1166 = vmatpush1.bf16.msra.mxu0 0
        %1167 = vmatprep.subr.bf16.mxu0 0
        %1168 = vmatpush1.bf16.msra.mxu0 0
        %1169 = vmatprep.subr.bf16.mxu0 0
        %1170 = vmatpush1.bf16.msra.mxu0 0
        %1171 = vmatprep.subr.bf16.mxu0 0
        %1172 = vmatpush1.bf16.msra.mxu0 0
        %1173 = vmatprep.subr.bf16.mxu0 0
        %1174 = vmatpush1.bf16.msra.mxu0 0
        %1175 = vmatprep.subr.bf16.mxu0 0
        %1176 = vmatpush1.bf16.msra.mxu0 0
        %1177 = vmatprep.subr.bf16.mxu0 0
        %1178 = vmatpush1.bf16.msra.mxu0 0
        %1179 = vmatprep.subr.bf16.mxu0 0
        %1180 = vmatpush1.bf16.msra.mxu0 0
        %1181 = vmatprep.subr.bf16.mxu0 0
        %1182 = vmatpush1.bf16.msra.mxu0 0
        %1183 = vmatprep.subr.bf16.mxu0 0
        %1184 = vmatpush1.bf16.msra.mxu0 0
        %1185 = vmatprep.subr.bf16.mxu0 0
        %1186 = vmatpush1.bf16.msra.mxu0 0
        %1187 = vmatprep.mubr.bf16.mxu0 0
        %1188 = vmatmul.mubr.bf16.gmra.mrb[0].mxu0 %v1150
        %v1189 = vpop.f32.mrb[0].mxu0
        %v1190 = vadd.f32 0.0, %v1189
        %v1191 = vpop.f32.mrb[0].mxu0
        %v1192 = vpop.f32.mrb[0].mxu0
        %v1193 = vpop.f32.mrb[0].mxu0
        %1194 = vdwg.mxu0
        %v1195 = vadd.f32 %v1035, %v1190
        %v1196 = vld [vmem:[%s5] sm:$0x1]
        %v1198 = vlaneseq
        %v1199 = vshrl.u32 %v1198, 7
        %v1200 = vsub.s32 0, %v1199
        %v1201 = vrot.slane %v1196, %v1200
        %v1203 = vadd.f32 %v1195, %v1201
        %v1204 = vadd.f32 %v1203, %v478
        %v1205 = vld [vmem:[%s6] sm:$0x1]
        %v1206 = vld [vmem:[%s7] sm:$0x1]
        %v1207 = vsel %vm504, %v1204, 0.0
        %1208 = vadd.xlane.f32.xlu0 %v1207
        %v1209 = vpop.xlane.xlu0 %1208
        %v1210 = vrcp.pop 32.0
        %v1211 = vmul.f32 %v1209, %v1210
        %v1212 = vsub.f32 %v1204, %v1211
        %v1213 = vmul.f32 %v1212, %v1212
        %v1214 = vsel %vm504, %v1213, 0.0
        %1215 = vadd.xlane.f32.xlu0 %v1214
        %v1216 = vpop.xlane.xlu0 %1215
        %v1217 = vmul.f32 %v1216, %v1210
        %v1218 = vadd.f32 %v1217, 1e-12
        %v1219 = vrsqrt.pop %v1218
        %v1220 = vmul.f32 %v1212, %v1219
        %v1222 = vlaneseq
        %v1223 = vshrl.u32 %v1222, 7
        %v1224 = vsub.s32 0, %v1223
        %v1225 = vrot.slane %v1205, %v1224
        %v1227 = vmul.f32 %v1220, %v1225
        %v1229 = vlaneseq
        %v1230 = vshrl.u32 %v1229, 7
        %v1231 = vsub.s32 0, %v1230
        %v1232 = vrot.slane %v1206, %v1231
        %v1234 = vadd.f32 %v1227, %v1232
        %v1235 = vpack.c.bf16 %v1234, %v1234
        %v1236 = vld [vmem:[%s8] sm:$0xf]
        %v1237 = vld [vmem:[%s8 + $0x4] sm:$0xf]
        %v1238 = vld [vmem:[%s8 + $0x8] sm:$0xf]
        %v1239 = vld [vmem:[%s8 + $0xc] sm:$0xf]
        %v1240 = vld [vmem:[%s9] sm:$0x1]
        %v1242 = vlaneseq
        %v1243 = vshrl.u32 %v1242, 7
        %v1244 = vsub.s32 0, %v1243
        %v1245 = vrot.slane %v1240, %v1244
        %v1251 = vunpack.c.l.b16 %v1236
        %v1252 = vunpack.c.l.b16 %v1237
        %v1253 = vunpack.c.l.b16 %v1238
        %v1254 = vunpack.c.l.b16 %v1239
        %v1255 = vpack.c.b16 %v1252, %v1251
        %v1256 = vpack.c.b16 %v1254, %v1253
        %v1260 = vsel %vm504, %v1235, 0
        %1262 = vmatprep.subr.bf16.mxu0 0
        %1263 = vmatpush1.bf16.msra.mxu0 %v1255
        %1264 = vmatprep.subr.bf16.mxu0 0
        %1265 = vmatpush1.bf16.msra.mxu0 %v1256
        %1266 = vmatprep.subr.bf16.mxu0 0
        %1267 = vmatpush1.bf16.msra.mxu0 0
        %1268 = vmatprep.subr.bf16.mxu0 0
        %1269 = vmatpush1.bf16.msra.mxu0 0
        %1270 = vmatprep.subr.bf16.mxu0 0
        %1271 = vmatpush1.bf16.msra.mxu0 0
        %1272 = vmatprep.subr.bf16.mxu0 0
        %1273 = vmatpush1.bf16.msra.mxu0 0
        %1274 = vmatprep.subr.bf16.mxu0 0
        %1275 = vmatpush1.bf16.msra.mxu0 0
        %1276 = vmatprep.subr.bf16.mxu0 0
        %1277 = vmatpush1.bf16.msra.mxu0 0
        %1278 = vmatprep.subr.bf16.mxu0 0
        %1279 = vmatpush1.bf16.msra.mxu0 0
        %1280 = vmatprep.subr.bf16.mxu0 0
        %1281 = vmatpush1.bf16.msra.mxu0 0
        %1282 = vmatprep.subr.bf16.mxu0 0
        %1283 = vmatpush1.bf16.msra.mxu0 0
        %1284 = vmatprep.subr.bf16.mxu0 0
        %1285 = vmatpush1.bf16.msra.mxu0 0
        %1286 = vmatprep.subr.bf16.mxu0 0
        %1287 = vmatpush1.bf16.msra.mxu0 0
        %1288 = vmatprep.subr.bf16.mxu0 0
        %1289 = vmatpush1.bf16.msra.mxu0 0
        %1290 = vmatprep.subr.bf16.mxu0 0
        %1291 = vmatpush1.bf16.msra.mxu0 0
        %1292 = vmatprep.subr.bf16.mxu0 0
        %1293 = vmatpush1.bf16.msra.mxu0 0
        %1294 = vmatprep.mubr.bf16.mxu0 0
        %1295 = vmatmul.mubr.bf16.gmra.mrb[0].mxu0 %v1260
        %v1296 = vpop.f32.mrb[0].mxu0
        %v1297 = vadd.f32 %v1245, %v1296
        %v1298 = vpop.f32.mrb[0].mxu0
        %v1299 = vpop.f32.mrb[0].mxu0
        %v1300 = vpop.f32.mrb[0].mxu0
        %1301 = vdwg.mxu0
        %v1302 = vmul.f32 %v1297, 0.5
        %v1303 = vmul.f32 %v1297, 0.044715
        %v1304 = vmul.f32 %v1303, %v1297
        %v1305 = vmul.f32 %v1304, %v1297
        %v1306 = vadd.f32 %v1297, %v1305
        %v1307 = vmul.f32 %v1306, 0.7978846
        %v1308 = vtanh.pop %v1307
        %v1309 = vadd.f32 %v1308, 1.0
        %v1310 = vmul.f32 %v1302, %v1309
        %v1311 = vpack.c.bf16 %v1310, %v1310
        %v1312 = vld [vmem:[%s10] sm:$0xf]
        %v1313 = vld [vmem:[%s10 + $0x4] sm:$0xf]
        %v1314 = vld [vmem:[%s10 + $0x8] sm:$0xf]
        %v1315 = vld [vmem:[%s10 + $0xc] sm:$0xf]
        %v1316 = vld [vmem:[%s10 + $0x10] sm:$0xf]
        %v1317 = vld [vmem:[%s10 + $0x14] sm:$0xf]
        %v1318 = vld [vmem:[%s10 + $0x18] sm:$0xf]
        %v1319 = vld [vmem:[%s10 + $0x1c] sm:$0xf]
        %v1320 = vld [vmem:[%s11] sm:$0x1]
        %v1322 = vlaneseq
        %v1323 = vshrl.u32 %v1322, 7
        %v1324 = vsub.s32 0, %v1323
        %v1325 = vrot.slane %v1320, %v1324
        %v1335 = vunpack.c.l.b16 %v1312
        %v1336 = vunpack.c.l.b16 %v1313
        %v1337 = vunpack.c.l.b16 %v1314
        %v1338 = vunpack.c.l.b16 %v1315
        %v1339 = vunpack.c.l.b16 %v1316
        %v1340 = vunpack.c.l.b16 %v1317
        %v1341 = vunpack.c.l.b16 %v1318
        %v1342 = vunpack.c.l.b16 %v1319
        %v1343 = vpack.c.b16 %v1336, %v1335
        %v1344 = vpack.c.b16 %v1338, %v1337
        %v1345 = vpack.c.b16 %v1340, %v1339
        %v1346 = vpack.c.b16 %v1342, %v1341
        %vm1351 = vcmask 523264
        %v1353 = vsel %vm1351, %v1311, 0
        %1355 = vmatprep.subr.bf16.mxu0 0
        %1356 = vmatpush1.bf16.msra.mxu0 %v1343
        %1357 = vmatprep.subr.bf16.mxu0 0
        %1358 = vmatpush1.bf16.msra.mxu0 %v1344
        %1359 = vmatprep.subr.bf16.mxu0 0
        %1360 = vmatpush1.bf16.msra.mxu0 %v1345
        %1361 = vmatprep.subr.bf16.mxu0 0
        %1362 = vmatpush1.bf16.msra.mxu0 %v1346
        %1363 = vmatprep.subr.bf16.mxu0 0
        %1364 = vmatpush1.bf16.msra.mxu0 0
        %1365 = vmatprep.subr.bf16.mxu0 0
        %1366 = vmatpush1.bf16.msra.mxu0 0
        %1367 = vmatprep.subr.bf16.mxu0 0
        %1368 = vmatpush1.bf16.msra.mxu0 0
        %1369 = vmatprep.subr.bf16.mxu0 0
        %1370 = vmatpush1.bf16.msra.mxu0 0
        %1371 = vmatprep.subr.bf16.mxu0 0
        %1372 = vmatpush1.bf16.msra.mxu0 0
        %1373 = vmatprep.subr.bf16.mxu0 0
        %1374 = vmatpush1.bf16.msra.mxu0 0
        %1375 = vmatprep.subr.bf16.mxu0 0
        %1376 = vmatpush1.bf16.msra.mxu0 0
        %1377 = vmatprep.subr.bf16.mxu0 0
        %1378 = vmatpush1.bf16.msra.mxu0 0
        %1379 = vmatprep.subr.bf16.mxu0 0
        %1380 = vmatpush1.bf16.msra.mxu0 0
        %1381 = vmatprep.subr.bf16.mxu0 0
        %1382 = vmatpush1.bf16.msra.mxu0 0
        %1383 = vmatprep.subr.bf16.mxu0 0
        %1384 = vmatpush1.bf16.msra.mxu0 0
        %1385 = vmatprep.subr.bf16.mxu0 0
        %1386 = vmatpush1.bf16.msra.mxu0 0
        %1387 = vmatprep.mubr.bf16.mxu0 0
        %1388 = vmatmul.mubr.bf16.gmra.mrb[0].mxu0 %v1353
        %v1389 = vpop.f32.mrb[0].mxu0
        %v1390 = vadd.f32 %v1325, %v1389
        %v1391 = vpop.f32.mrb[0].mxu0
        %v1392 = vpop.f32.mrb[0].mxu0
        %v1393 = vpop.f32.mrb[0].mxu0
        %1394 = vdwg.mxu0
        %v1395 = vadd.f32 %v1390, %v1234
        %v1396 = vld [vmem:[%s12] sm:$0x1]
        %v1397 = vld [vmem:[%s13] sm:$0x1]
        %v1398 = vsel %vm504, %v1395, 0.0
        %1399 = vadd.xlane.f32.xlu0 %v1398
        %v1400 = vpop.xlane.xlu0 %1399
        %v1401 = vmul.f32 %v1400, %v1210
        %v1402 = vsub.f32 %v1395, %v1401
        %v1403 = vmul.f32 %v1402, %v1402
        %v1404 = vsel %vm504, %v1403, 0.0
        %1405 = vadd.xlane.f32.xlu0 %v1404
        %v1406 = vpop.xlane.xlu0 %1405
        %v1407 = vmul.f32 %v1406, %v1210
        %v1408 = vadd.f32 %v1407, 1e-12
        %v1409 = vrsqrt.pop %v1408
        %v1410 = vmul.f32 %v1402, %v1409
        %v1412 = vlaneseq
        %v1413 = vshrl.u32 %v1412, 7
        %v1414 = vsub.s32 0, %v1413
        %v1415 = vrot.slane %v1396, %v1414
        %v1417 = vmul.f32 %v1410, %v1415
        %v1419 = vlaneseq
        %v1420 = vshrl.u32 %v1419, 7
        %v1421 = vsub.s32 0, %v1420
        %v1422 = vrot.slane %v1397, %v1421
        %v1424 = vadd.f32 %v1417, %v1422
        %1425 = vst.msk [vmem:[%s469] sm:$0xff] %vm504, %v1424
        %s1426 = sand.u32 %s340, 1
        %s1427 = scalar_lea.sflag [#allocation3], %s1426
        %s1428 = sand.u32 %s340, 1
        %s1429 = smul.addr %s1428, 8
        %s1430 = scalar_lea.vmem [#allocation2], %s1429
        // Predicated region
        $region77: #{bert_encoder_forward.46} parent=75 // pred_check
          %p1431 = pneg %p350
        $region78: #{bert_encoder_forward.46} parent=75 // pred_check_branch
          %1433 = sbr.rel (%p1431) target = $region80
        $region79: #{bert_encoder_forward.46} parent=75 // pred_region
          %s1435 = ssub.s32 128, 128
          %1436 = vsyncadd %s1427, %s1435
          %s1437 = smul.addr %s28, 128
          %s1438 = scalar_lea.hbm %s14, %s1437
          %s1440 = sshll.u32 %s1430, 4
          %s1441 = int_to_ptr.vmem [resolvable:$true] %s1440
          %1443 = dma.vmem_to_hbm [thread:$0]  %s1441, 128, %s1438, %s1427
        $region80: #{bert_encoder_forward.46} parent=75 // pred_fallthru
          _
      $region76: #{bert_encoder_forward.46} parent=5 // pred_fallthru
        _
      %p1444 = scmp.le.s32.totalorder 2, %s23
      // Predicated region
      $region81: #{bert_encoder_forward.46} parent=5 // pred_check
        %p1445 = pneg %p1444
      $region82: #{bert_encoder_forward.46} parent=5 // pred_check_branch
        %1447 = sbr.rel (%p1445) target = $region84
      $region83: #{bert_encoder_forward.46} parent=5 // pred_region
        %s1448 = ssub.s32 %s23, 2
        // Predicated region
        $region85: #{bert_encoder_forward.46} parent=83 // pred_check
          %p1449 = pneg %p356
        $region86: #{bert_encoder_forward.46} parent=83 // pred_check_branch
          %1451 = sbr.rel (%p1449) target = $region88
        $region87: #{bert_encoder_forward.46} parent=83 // pred_region
          %s1452 = sand.u32 %s341, 1
          %s1453 = scalar_lea.sflag [#allocation3], %s1452
          %s1454 = sand.u32 %s341, 1
          %s1455 = smul.addr %s1454, 8
          %s1456 = scalar_lea.vmem [#allocation2], %s1455
          %1457 = dma.done %s1453, 128
        $region88: #{bert_encoder_forward.46} parent=83 // pred_fallthru
          _
      $region84: #{bert_encoder_forward.46} parent=5 // pred_fallthru
        _
    $region6: #{bert_encoder_forward.46} parent=1 // loop_footer
      %s27 = sadd.s32 1, %s23
    $region7: #{bert_encoder_forward.46} parent=1 // loop_footer_branch
      %22 = sbr.rel target = $region3
    $region8: #{bert_encoder_forward.46} parent=1 // loop_exit
      _
    %1458 = vsyncpa [#allocation3], 1
    %s1459 = scalar_lea.sflag [#allocation3], 1
    %1460 = vsyncpa %s1459, 1

// kernel: bert_encoder_forward.24
$region0: #{bert_encoder_forward.24}
  #allocation0 [shape = 'u32[]', space=smem, size = 0x4, offset = 0x4, fixed_abs, tag = 'smem constant byte address 0x4 - core index']
  #allocation1 [shape = 'u32[144,128]{1,0:T(1,128)}', space=vmem, size = 0x12000, scoped, tag = 'internal scratch']
  %s0 = inlined_call_operand.vmem [shape: f32[2,8,32], index: 0, kind: input, shape index: {}]
  %s1 = inlined_call_operand.vmem [shape: f32[2,1,8], index: 1, kind: input, shape index: {}]
  %s2 = inlined_call_operand.vmem [shape: bf16[32,96], index: 2, kind: input, shape index: {}]
  %s3 = inlined_call_operand.vmem [shape: f32[1,96], index: 3, kind: input, shape index: {}]
  %s4 = inlined_call_operand.vmem [shape: bf16[4,8,32], index: 4, kind: input, shape index: {}]
  %s5 = inlined_call_operand.vmem [shape: f32[1,32], index: 5, kind: input, shape index: {}]
  %s6 = inlined_call_operand.vmem [shape: f32[1,32], index: 6, kind: input, shape index: {}]
  %s7 = inlined_call_operand.vmem [shape: f32[1,32], index: 7, kind: input, shape index: {}]
  %s8 = inlined_call_operand.vmem [shape: bf16[32,64], index: 8, kind: input, shape index: {}]
  %s9 = inlined_call_operand.vmem [shape: f32[1,64], index: 9, kind: input, shape index: {}]
  %s10 = inlined_call_operand.vmem [shape: bf16[64,32], index: 10, kind: input, shape index: {}]
  %s11 = inlined_call_operand.vmem [shape: f32[1,32], index: 11, kind: input, shape index: {}]
  %s12 = inlined_call_operand.vmem [shape: f32[1,32], index: 12, kind: input, shape index: {}]
  %s13 = inlined_call_operand.vmem [shape: f32[1,32], index: 13, kind: input, shape index: {}]
  %s14 = inlined_call_operand.vmem [shape: f32[2,8,32], index: 14, kind: output, shape index: {}]
  %s15 = sld [smem:[#allocation0]]
  $region89: #{bert_encoder_forward.24} parent=0
    _
  %s17 = ssub.s32 1, %s15
  %s18 = scalar_select 0, %s17, %s15
  loop: start=0, step=1, limit=4
  $region2: #{bert_encoder_forward.24} parent=0 // loop_pre_header
    _
  $region3: #{bert_encoder_forward.24} parent=0 // loop_header
    %s20 = sphi 0, %s24
    %p21 = scmp.ge.s32.totalorder %s20, 4
    %s30 = sphi 0, %s32
    %s33 = sphi 0, %s30
    %s34 = sphi 0, %s33
    %s50 = sphi 0, %s34
    %s56 = sphi 0, %s58
    %s59 = sphi 0, %s56
    %s60 = sphi 0, %s59
    %s76 = sphi 0, %s60
    %s80 = sphi 0, %s80
    %s82 = sphi 0, %s80
    %s83 = sphi 0, %s82
    %s97 = sphi 0, %s83
    %s101 = sphi 0, %s101
    %s103 = sphi 0, %s101
    %s104 = sphi 0, %s103
    %s118 = sphi 0, %s104
    %s122 = sphi 0, %s122
    %s124 = sphi 0, %s122
    %s125 = sphi 0, %s124
    %s139 = sphi 0, %s125
    %s143 = sphi 0, %s143
    %s145 = sphi 0, %s143
    %s146 = sphi 0, %s145
    %s160 = sphi 0, %s146
    %s164 = sphi 0, %s164
    %s166 = sphi 0, %s164
    %s167 = sphi 0, %s166
    %s181 = sphi 0, %s167
    %s185 = sphi 0, %s185
    %s187 = sphi 0, %s185
    %s188 = sphi 0, %s187
    %s202 = sphi 0, %s188
    %s206 = sphi 0, %s206
    %s208 = sphi 0, %s206
    %s209 = sphi 0, %s208
    %s223 = sphi 0, %s209
    %s227 = sphi 0, %s227
    %s229 = sphi 0, %s227
    %s230 = sphi 0, %s229
    %s244 = sphi 0, %s230
    %s248 = sphi 0, %s248
    %s250 = sphi 0, %s248
    %s251 = sphi 0, %s250
    %s265 = sphi 0, %s251
    %s269 = sphi 0, %s269
    %s271 = sphi 0, %s269
    %s272 = sphi 0, %s271
    %s286 = sphi 0, %s272
    %s290 = sphi 0, %s290
    %s292 = sphi 0, %s290
    %s293 = sphi 0, %s292
    %s307 = sphi 0, %s293
    %s311 = sphi 0, %s311
    %s313 = sphi 0, %s311
    %s314 = sphi 0, %s313
    %s328 = sphi 0, %s314
    %s334 = sphi 0, %s336
    %s337 = sphi 0, %s334
    %s338 = sphi 0, %s337
    %s354 = sphi 0, %s338
  $region4: #{bert_encoder_forward.24} parent=0 // loop_header_branch
    %23 = sbr.rel (%p21) target = $region8
  $region5: #{bert_encoder_forward.24} parent=0 // loop_body
    %s25 = ssub.s32 %s20, 1
    %s26 = ssub.s32 %s20, 2
    %s27 = sadd.s32 %s20, 1
    %s28 = ssub.s32 %s20, %s27
    %p29 = scmp.eq.s32.totalorder %s28, 0
    %s31 = sadd.s32 %s30, 1
    %s32 = scalar_select %p29, %s30, %s31
    %p35 = pneg %p29
    %p36 = scmp.eq.s32.totalorder %s20, 1
    %p37 = por %p35, %p36
    %p38 = scmp.ne.s32.totalorder %s30, %s33
    %p39 = scmp.eq.s32.totalorder %s20, 0
    %p40 = por %p38, %p39
    %p41 = scmp.ne.s32.totalorder %s30, %s33
    %p42 = scmp.eq.s32.totalorder %s25, 1
    %p43 = por %p41, %p42
    %p44 = scmp.ne.s32.totalorder %s33, %s34
    %p45 = scmp.eq.s32.totalorder %s25, 0
    %p46 = por %p44, %p45
    %p47 = scmp.ne.s32.totalorder %s33, %s34
    %p48 = scmp.eq.s32.totalorder %s26, 1
    %p49 = por %p47, %p48
    %p51 = scmp.ne.s32.totalorder %s34, %s50
    %p52 = scmp.eq.s32.totalorder %s26, 0
    %p53 = por %p51, %p52
    %s54 = ssub.s32 %s20, %s27
    %p55 = scmp.eq.s32.totalorder %s54, 0
    %s57 = sadd.s32 %s56, 1
    %s58 = scalar_select %p55, %s56, %s57
    %p61 = pneg %p55
    %p62 = scmp.eq.s32.totalorder %s20, 1
    %p63 = por %p61, %p62
    %p64 = scmp.ne.s32.totalorder %s56, %s59
    %p65 = scmp.eq.s32.totalorder %s20, 0
    %p66 = por %p64, %p65
    %p67 = scmp.ne.s32.totalorder %s56, %s59
    %p68 = scmp.eq.s32.totalorder %s25, 1
    %p69 = por %p67, %p68
    %p70 = scmp.ne.s32.totalorder %s59, %s60
    %p71 = scmp.eq.s32.totalorder %s25, 0
    %p72 = por %p70, %p71
    %p73 = scmp.ne.s32.totalorder %s59, %s60
    %p74 = scmp.eq.s32.totalorder %s26, 1
    %p75 = por %p73, %p74
    %p77 = scmp.ne.s32.totalorder %s60, %s76
    %p78 = scmp.eq.s32.totalorder %s26, 0
    %p79 = por %p77, %p78
    %s81 = sadd.s32 %s80, 1
    %p84 = scmp.eq.s32.totalorder %s20, 1
    %p85 = scmp.ne.s32.totalorder %s80, %s82
    %p86 = scmp.eq.s32.totalorder %s20, 0
    %p87 = por %p85, %p86
    %p88 = scmp.ne.s32.totalorder %s80, %s82
    %p89 = scmp.eq.s32.totalorder %s25, 1
    %p90 = por %p88, %p89
    %p91 = scmp.ne.s32.totalorder %s82, %s83
    %p92 = scmp.eq.s32.totalorder %s25, 0
    %p93 = por %p91, %p92
    %p94 = scmp.ne.s32.totalorder %s82, %s83
    %p95 = scmp.eq.s32.totalorder %s26, 1
    %p96 = por %p94, %p95
    %p98 = scmp.ne.s32.totalorder %s83, %s97
    %p99 = scmp.eq.s32.totalorder %s26, 0
    %p100 = por %p98, %p99
    %s102 = sadd.s32 %s101, 1
    %p105 = scmp.eq.s32.totalorder %s20, 1
    %p106 = scmp.ne.s32.totalorder %s101, %s103
    %p107 = scmp.eq.s32.totalorder %s20, 0
    %p108 = por %p106, %p107
    %p109 = scmp.ne.s32.totalorder %s101, %s103
    %p110 = scmp.eq.s32.totalorder %s25, 1
    %p111 = por %p109, %p110
    %p112 = scmp.ne.s32.totalorder %s103, %s104
    %p113 = scmp.eq.s32.totalorder %s25, 0
    %p114 = por %p112, %p113
    %p115 = scmp.ne.s32.totalorder %s103, %s104
    %p116 = scmp.eq.s32.totalorder %s26, 1
    %p117 = por %p115, %p116
    %p119 = scmp.ne.s32.totalorder %s104, %s118
    %p120 = scmp.eq.s32.totalorder %s26, 0
    %p121 = por %p119, %p120
    %s123 = sadd.s32 %s122, 1
    %p126 = scmp.eq.s32.totalorder %s20, 1
    %p127 = scmp.ne.s32.totalorder %s122, %s124
    %p128 = scmp.eq.s32.totalorder %s20, 0
    %p129 = por %p127, %p128
    %p130 = scmp.ne.s32.totalorder %s122, %s124
    %p131 = scmp.eq.s32.totalorder %s25, 1
    %p132 = por %p130, %p131
    %p133 = scmp.ne.s32.totalorder %s124, %s125
    %p134 = scmp.eq.s32.totalorder %s25, 0
    %p135 = por %p133, %p134
    %p136 = scmp.ne.s32.totalorder %s124, %s125
    %p137 = scmp.eq.s32.totalorder %s26, 1
    %p138 = por %p136, %p137
    %p140 = scmp.ne.s32.totalorder %s125, %s139
    %p141 = scmp.eq.s32.totalorder %s26, 0
    %p142 = por %p140, %p141
    %s144 = sadd.s32 %s143, 1
    %p147 = scmp.eq.s32.totalorder %s20, 1
    %p148 = scmp.ne.s32.totalorder %s143, %s145
    %p149 = scmp.eq.s32.totalorder %s20, 0
    %p150 = por %p148, %p149
    %p151 = scmp.ne.s32.totalorder %s143, %s145
    %p152 = scmp.eq.s32.totalorder %s25, 1
    %p153 = por %p151, %p152
    %p154 = scmp.ne.s32.totalorder %s145, %s146
    %p155 = scmp.eq.s32.totalorder %s25, 0
    %p156 = por %p154, %p155
    %p157 = scmp.ne.s32.totalorder %s145, %s146
    %p158 = scmp.eq.s32.totalorder %s26, 1
    %p159 = por %p157, %p158
    %p161 = scmp.ne.s32.totalorder %s146, %s160
    %p162 = scmp.eq.s32.totalorder %s26, 0
    %p163 = por %p161, %p162
    %s165 = sadd.s32 %s164, 1
    %p168 = scmp.eq.s32.totalorder %s20, 1
    %p169 = scmp.ne.s32.totalorder %s164, %s166
    %p170 = scmp.eq.s32.totalorder %s20, 0
    %p171 = por %p169, %p170
    %p172 = scmp.ne.s32.totalorder %s164, %s166
    %p173 = scmp.eq.s32.totalorder %s25, 1
    %p174 = por %p172, %p173
    %p175 = scmp.ne.s32.totalorder %s166, %s167
    %p176 = scmp.eq.s32.totalorder %s25, 0
    %p177 = por %p175, %p176
    %p178 = scmp.ne.s32.totalorder %s166, %s167
    %p179 = scmp.eq.s32.totalorder %s26, 1
    %p180 = por %p178, %p179
    %p182 = scmp.ne.s32.totalorder %s167, %s181
    %p183 = scmp.eq.s32.totalorder %s26, 0
    %p184 = por %p182, %p183
    %s186 = sadd.s32 %s185, 1
    %p189 = scmp.eq.s32.totalorder %s20, 1
    %p190 = scmp.ne.s32.totalorder %s185, %s187
    %p191 = scmp.eq.s32.totalorder %s20, 0
    %p192 = por %p190, %p191
    %p193 = scmp.ne.s32.totalorder %s185, %s187
    %p194 = scmp.eq.s32.totalorder %s25, 1
    %p195 = por %p193, %p194
    %p196 = scmp.ne.s32.totalorder %s187, %s188
    %p197 = scmp.eq.s32.totalorder %s25, 0
    %p198 = por %p196, %p197
    %p199 = scmp.ne.s32.totalorder %s187, %s188
    %p200 = scmp.eq.s32.totalorder %s26, 1
    %p201 = por %p199, %p200
    %p203 = scmp.ne.s32.totalorder %s188, %s202
    %p204 = scmp.eq.s32.totalorder %s26, 0
    %p205 = por %p203, %p204
    %s207 = sadd.s32 %s206, 1
    %p210 = scmp.eq.s32.totalorder %s20, 1
    %p211 = scmp.ne.s32.totalorder %s206, %s208
    %p212 = scmp.eq.s32.totalorder %s20, 0
    %p213 = por %p211, %p212
    %p214 = scmp.ne.s32.totalorder %s206, %s208
    %p215 = scmp.eq.s32.totalorder %s25, 1
    %p216 = por %p214, %p215
    %p217 = scmp.ne.s32.totalorder %s208, %s209
    %p218 = scmp.eq.s32.totalorder %s25, 0
    %p219 = por %p217, %p218
    %p220 = scmp.ne.s32.totalorder %s208, %s209
    %p221 = scmp.eq.s32.totalorder %s26, 1
    %p222 = por %p220, %p221
    %p224 = scmp.ne.s32.totalorder %s209, %s223
    %p225 = scmp.eq.s32.totalorder %s26, 0
    %p226 = por %p224, %p225
    %s228 = sadd.s32 %s227, 1
    %p231 = scmp.eq.s32.totalorder %s20, 1
    %p232 = scmp.ne.s32.totalorder %s227, %s229
    %p233 = scmp.eq.s32.totalorder %s20, 0
    %p234 = por %p232, %p233
    %p235 = scmp.ne.s32.totalorder %s227, %s229
    %p236 = scmp.eq.s32.totalorder %s25, 1
    %p237 = por %p235, %p236
    %p238 = scmp.ne.s32.totalorder %s229, %s230
    %p239 = scmp.eq.s32.totalorder %s25, 0
    %p240 = por %p238, %p239
    %p241 = scmp.ne.s32.totalorder %s229, %s230
    %p242 = scmp.eq.s32.totalorder %s26, 1
    %p243 = por %p241, %p242
    %p245 = scmp.ne.s32.totalorder %s230, %s244
    %p246 = scmp.eq.s32.totalorder %s26, 0
    %p247 = por %p245, %p246
    %s249 = sadd.s32 %s248, 1
    %p252 = scmp.eq.s32.totalorder %s20, 1
    %p253 = scmp.ne.s32.totalorder %s248, %s250
    %p254 = scmp.eq.s32.totalorder %s20, 0
    %p255 = por %p253, %p254
    %p256 = scmp.ne.s32.totalorder %s248, %s250
    %p257 = scmp.eq.s32.totalorder %s25, 1
    %p258 = por %p256, %p257
    %p259 = scmp.ne.s32.totalorder %s250, %s251
    %p260 = scmp.eq.s32.totalorder %s25, 0
    %p261 = por %p259, %p260
    %p262 = scmp.ne.s32.totalorder %s250, %s251
    %p263 = scmp.eq.s32.totalorder %s26, 1
    %p264 = por %p262, %p263
    %p266 = scmp.ne.s32.totalorder %s251, %s265
    %p267 = scmp.eq.s32.totalorder %s26, 0
    %p268 = por %p266, %p267
    %s270 = sadd.s32 %s269, 1
    %p273 = scmp.eq.s32.totalorder %s20, 1
    %p274 = scmp.ne.s32.totalorder %s269, %s271
    %p275 = scmp.eq.s32.totalorder %s20, 0
    %p276 = por %p274, %p275
    %p277 = scmp.ne.s32.totalorder %s269, %s271
    %p278 = scmp.eq.s32.totalorder %s25, 1
    %p279 = por %p277, %p278
    %p280 = scmp.ne.s32.totalorder %s271, %s272
    %p281 = scmp.eq.s32.totalorder %s25, 0
    %p282 = por %p280, %p281
    %p283 = scmp.ne.s32.totalorder %s271, %s272
    %p284 = scmp.eq.s32.totalorder %s26, 1
    %p285 = por %p283, %p284
    %p287 = scmp.ne.s32.totalorder %s272, %s286
    %p288 = scmp.eq.s32.totalorder %s26, 0
    %p289 = por %p287, %p288
    %s291 = sadd.s32 %s290, 1
    %p294 = scmp.eq.s32.totalorder %s20, 1
    %p295 = scmp.ne.s32.totalorder %s290, %s292
    %p296 = scmp.eq.s32.totalorder %s20, 0
    %p297 = por %p295, %p296
    %p298 = scmp.ne.s32.totalorder %s290, %s292
    %p299 = scmp.eq.s32.totalorder %s25, 1
    %p300 = por %p298, %p299
    %p301 = scmp.ne.s32.totalorder %s292, %s293
    %p302 = scmp.eq.s32.totalorder %s25, 0
    %p303 = por %p301, %p302
    %p304 = scmp.ne.s32.totalorder %s292, %s293
    %p305 = scmp.eq.s32.totalorder %s26, 1
    %p306 = por %p304, %p305
    %p308 = scmp.ne.s32.totalorder %s293, %s307
    %p309 = scmp.eq.s32.totalorder %s26, 0
    %p310 = por %p308, %p309
    %s312 = sadd.s32 %s311, 1
    %p315 = scmp.eq.s32.totalorder %s20, 1
    %p316 = scmp.ne.s32.totalorder %s311, %s313
    %p317 = scmp.eq.s32.totalorder %s20, 0
    %p318 = por %p316, %p317
    %p319 = scmp.ne.s32.totalorder %s311, %s313
    %p320 = scmp.eq.s32.totalorder %s25, 1
    %p321 = por %p319, %p320
    %p322 = scmp.ne.s32.totalorder %s313, %s314
    %p323 = scmp.eq.s32.totalorder %s25, 0
    %p324 = por %p322, %p323
    %p325 = scmp.ne.s32.totalorder %s313, %s314
    %p326 = scmp.eq.s32.totalorder %s26, 1
    %p327 = por %p325, %p326
    %p329 = scmp.ne.s32.totalorder %s314, %s328
    %p330 = scmp.eq.s32.totalorder %s26, 0
    %p331 = por %p329, %p330
    %s332 = ssub.s32 %s20, %s27
    %p333 = scmp.eq.s32.totalorder %s332, 0
    %s335 = sadd.s32 %s334, 1
    %s336 = scalar_select %p333, %s334, %s335
    %p339 = pneg %p333
    %p340 = scmp.eq.s32.totalorder %s20, 1
    %p341 = por %p339, %p340
    %p342 = scmp.ne.s32.totalorder %s334, %s337
    %p343 = scmp.eq.s32.totalorder %s20, 0
    %p344 = por %p342, %p343
    %p345 = scmp.ne.s32.totalorder %s334, %s337
    %p346 = scmp.eq.s32.totalorder %s25, 1
    %p347 = por %p345, %p346
    %p348 = scmp.ne.s32.totalorder %s337, %s338
    %p349 = scmp.eq.s32.totalorder %s25, 0
    %p350 = por %p348, %p349
    %p351 = scmp.ne.s32.totalorder %s337, %s338
    %p352 = scmp.eq.s32.totalorder %s26, 1
    %p353 = por %p351, %p352
    %p355 = scmp.ne.s32.totalorder %s338, %s354
    %p356 = scmp.eq.s32.totalorder %s26, 0
    %p357 = por %p355, %p356
    %p358 = scmp.le.s32.totalorder 1, %s20
    %p359 = scmp.lt.s32.totalorder %s20, 3
    %p360 = pnand %p358, %p359
    %p361 = pneg %p360
    // Predicated region
    $region9: #{bert_encoder_forward.24} parent=5 // pred_check
      _
    $region10: #{bert_encoder_forward.24} parent=5 // pred_check_branch
      %363 = sbr.rel (%p360) target = $region12
    $region11: #{bert_encoder_forward.24} parent=5 // pred_region
      %s364 = ssub.s32 %s20, 1
      // Predicated region
      $region13: #{bert_encoder_forward.24} parent=11 // pred_check
        %p365 = pneg %p93
      $region14: #{bert_encoder_forward.24} parent=11 // pred_check_branch
        %367 = sbr.rel (%p365) target = $region16
      $region15: #{bert_encoder_forward.24} parent=11 // pred_region
        _
      $region16: #{bert_encoder_forward.24} parent=11 // pred_fallthru
        _
      // Predicated region
      $region17: #{bert_encoder_forward.24} parent=11 // pred_check
        %p368 = pneg %p114
      $region18: #{bert_encoder_forward.24} parent=11 // pred_check_branch
        %370 = sbr.rel (%p368) target = $region20
      $region19: #{bert_encoder_forward.24} parent=11 // pred_region
        _
      $region20: #{bert_encoder_forward.24} parent=11 // pred_fallthru
        _
      // Predicated region
      $region21: #{bert_encoder_forward.24} parent=11 // pred_check
        %p371 = pneg %p135
      $region22: #{bert_encoder_forward.24} parent=11 // pred_check_branch
        %373 = sbr.rel (%p371) target = $region24
      $region23: #{bert_encoder_forward.24} parent=11 // pred_region
        _
      $region24: #{bert_encoder_forward.24} parent=11 // pred_fallthru
        _
      // Predicated region
      $region25: #{bert_encoder_forward.24} parent=11 // pred_check
        %p374 = pneg %p156
      $region26: #{bert_encoder_forward.24} parent=11 // pred_check_branch
        %376 = sbr.rel (%p374) target = $region28
      $region27: #{bert_encoder_forward.24} parent=11 // pred_region
        _
      $region28: #{bert_encoder_forward.24} parent=11 // pred_fallthru
        _
      // Predicated region
      $region29: #{bert_encoder_forward.24} parent=11 // pred_check
        %p377 = pneg %p177
      $region30: #{bert_encoder_forward.24} parent=11 // pred_check_branch
        %379 = sbr.rel (%p377) target = $region32
      $region31: #{bert_encoder_forward.24} parent=11 // pred_region
        _
      $region32: #{bert_encoder_forward.24} parent=11 // pred_fallthru
        _
      // Predicated region
      $region33: #{bert_encoder_forward.24} parent=11 // pred_check
        %p380 = pneg %p198
      $region34: #{bert_encoder_forward.24} parent=11 // pred_check_branch
        %382 = sbr.rel (%p380) target = $region36
      $region35: #{bert_encoder_forward.24} parent=11 // pred_region
        _
      $region36: #{bert_encoder_forward.24} parent=11 // pred_fallthru
        _
      // Predicated region
      $region37: #{bert_encoder_forward.24} parent=11 // pred_check
        %p383 = pneg %p219
      $region38: #{bert_encoder_forward.24} parent=11 // pred_check_branch
        %385 = sbr.rel (%p383) target = $region40
      $region39: #{bert_encoder_forward.24} parent=11 // pred_region
        _
      $region40: #{bert_encoder_forward.24} parent=11 // pred_fallthru
        _
      // Predicated region
      $region41: #{bert_encoder_forward.24} parent=11 // pred_check
        %p386 = pneg %p240
      $region42: #{bert_encoder_forward.24} parent=11 // pred_check_branch
        %388 = sbr.rel (%p386) target = $region44
      $region43: #{bert_encoder_forward.24} parent=11 // pred_region
        _
      $region44: #{bert_encoder_forward.24} parent=11 // pred_fallthru
        _
      // Predicated region
      $region45: #{bert_encoder_forward.24} parent=11 // pred_check
        %p389 = pneg %p261
      $region46: #{bert_encoder_forward.24} parent=11 // pred_check_branch
        %391 = sbr.rel (%p389) target = $region48
      $region47: #{bert_encoder_forward.24} parent=11 // pred_region
        _
      $region48: #{bert_encoder_forward.24} parent=11 // pred_fallthru
        _
      // Predicated region
      $region49: #{bert_encoder_forward.24} parent=11 // pred_check
        %p392 = pneg %p282
      $region50: #{bert_encoder_forward.24} parent=11 // pred_check_branch
        %394 = sbr.rel (%p392) target = $region52
      $region51: #{bert_encoder_forward.24} parent=11 // pred_region
        _
      $region52: #{bert_encoder_forward.24} parent=11 // pred_fallthru
        _
      // Predicated region
      $region53: #{bert_encoder_forward.24} parent=11 // pred_check
        %p395 = pneg %p303
      $region54: #{bert_encoder_forward.24} parent=11 // pred_check_branch
        %397 = sbr.rel (%p395) target = $region56
      $region55: #{bert_encoder_forward.24} parent=11 // pred_region
        _
      $region56: #{bert_encoder_forward.24} parent=11 // pred_fallthru
        _
      // Predicated region
      $region57: #{bert_encoder_forward.24} parent=11 // pred_check
        %p398 = pneg %p324
      $region58: #{bert_encoder_forward.24} parent=11 // pred_check_branch
        %400 = sbr.rel (%p398) target = $region60
      $region59: #{bert_encoder_forward.24} parent=11 // pred_region
        _
      $region60: #{bert_encoder_forward.24} parent=11 // pred_fallthru
        _
    $region12: #{bert_encoder_forward.24} parent=5 // pred_fallthru
      _
    %p401 = scmp.lt.s32.totalorder %s20, 2
    // Predicated region
    $region61: #{bert_encoder_forward.24} parent=5 // pred_check
      %p402 = pneg %p401
    $region62: #{bert_encoder_forward.24} parent=5 // pred_check_branch
      %404 = sbr.rel (%p402) target = $region64
    $region63: #{bert_encoder_forward.24} parent=5 // pred_region
      // Predicated region
      $region65: #{bert_encoder_forward.24} parent=63 // pred_check
        %p405 = pneg %p40
      $region66: #{bert_encoder_forward.24} parent=63 // pred_check_branch
        %407 = sbr.rel (%p405) target = $region68
      $region67: #{bert_encoder_forward.24} parent=63 // pred_region
        %p408 = scmp.lt.s32.totalorder %s20, 1
        %s409 = scalar_select %p408, %s20, 1
        %s410 = smul.addr %s409, 8
        %s411 = scalar_lea.vmem %s0, %s410
      $region68: #{bert_encoder_forward.24} parent=63 // pred_fallthru
        _
      // Predicated region
      $region69: #{bert_encoder_forward.24} parent=63 // pred_check
        %p412 = pneg %p66
      $region70: #{bert_encoder_forward.24} parent=63 // pred_check_branch
        %414 = sbr.rel (%p412) target = $region72
      $region71: #{bert_encoder_forward.24} parent=63 // pred_region
        %p415 = scmp.lt.s32.totalorder %s20, 1
        %s416 = scalar_select %p415, %s20, 1
        %s417 = scalar_lea.vmem %s1, %s416
      $region72: #{bert_encoder_forward.24} parent=63 // pred_fallthru
        _
    $region64: #{bert_encoder_forward.24} parent=5 // pred_fallthru
      _
    %p418 = scmp.le.s32.totalorder 1, %s20
    %p419 = scmp.lt.s32.totalorder %s20, 3
    %p420 = pnand %p418, %p419
    %p421 = pneg %p420
    // Predicated region
    $region73: #{bert_encoder_forward.24} parent=5 // pred_check
      _
    $region74: #{bert_encoder_forward.24} parent=5 // pred_check_branch
      %423 = sbr.rel (%p420) target = $region76
    $region75: #{bert_encoder_forward.24} parent=5 // pred_region
      %s424 = ssub.s32 %s20, 1
      %p425 = scmp.lt.s32.totalorder %s25, 1
      %s426 = scalar_select %p425, %s25, 1
      %s427 = smul.addr %s426, 8
      %s428 = scalar_lea.vmem %s0, %s427
      %p429 = pneg %p46
      %p430 = pneg %p43
      %p431 = scmp.lt.s32.totalorder %s25, 1
      %s432 = scalar_select %p431, %s25, 1
      %s433 = scalar_lea.vmem %s1, %s432
      %p434 = pneg %p72
      %p435 = pneg %p69
      %p436 = pneg %p93
      %p437 = pneg %p90
      %p438 = pneg %p114
      %p439 = pneg %p111
      %p440 = pneg %p135
      %p441 = pneg %p132
      %p442 = pneg %p156
      %p443 = pneg %p153
      %p444 = pneg %p177
      %p445 = pneg %p174
      %p446 = pneg %p198
      %p447 = pneg %p195
      %p448 = pneg %p219
      %p449 = pneg %p216
      %p450 = pneg %p240
      %p451 = pneg %p237
      %p452 = pneg %p261
      %p453 = pneg %p258
      %p454 = pneg %p282
      %p455 = pneg %p279
      %p456 = pneg %p303
      %p457 = pneg %p300
      %p458 = pneg %p324
      %p459 = pneg %p321
      %p460 = pneg %p350
      %p461 = pneg %p347
      %p462 = scmp.lt.s32.totalorder %s25, 1
      %s463 = scalar_select %p462, %s25, 1
      %s464 = smul.addr %s463, 8
      %s465 = scalar_lea.vmem %s14, %s464
      %p466 = scmp.lt.s32.totalorder %s25, 1
      %s467 = scalar_select %p466, %s25, 1
      %s468 = smul.addr %s467, 8
      %s469 = scalar_lea.vmem %s0, %s468
      %p470 = scmp.lt.s32.totalorder %s25, 1
      %s471 = scalar_select %p470, %s25, 1
      %s472 = scalar_lea.vmem %s1, %s471
      %p473 = scmp.lt.s32.totalorder %s25, 1
      %s474 = scalar_select %p473, %s25, 1
      %s475 = smul.addr %s474, 8
      %s476 = scalar_lea.vmem %s14, %s475
      %v478 = vld [vmem:[%s469] sm:$0xff]
      %v479 = vld [vmem:[%s472] sm:$0x1]
      %v480 = vpack.c.bf16 %v478, %v478
      %v481 = vld [vmem:[%s2] sm:$0xf]
      %v482 = vld [vmem:[%s2 + $0x4] sm:$0xf]
      %v483 = vld [vmem:[%s2 + $0x8] sm:$0xf]
      %v484 = vld [vmem:[%s2 + $0xc] sm:$0xf]
      %v485 = vld [vmem:[%s3] sm:$0x1]
      %v487 = vlaneseq
      %v488 = vshrl.u32 %v487, 7
      %v489 = vsub.s32 0, %v488
      %v490 = vrot.slane %v485, %v489
      %v496 = vunpack.c.l.b16 %v481
      %v497 = vunpack.c.l.b16 %v482
      %v498 = vunpack.c.l.b16 %v483
      %v499 = vunpack.c.l.b16 %v484
      %v500 = vpack.c.b16 %v497, %v496
      %v501 = vpack.c.b16 %v499, %v498
      %vm504 = vcmask 261120
      %v506 = vsel %vm504, %v480, 0
      %508 = vmatprep.subr.bf16.mxu0 0
      %509 = vmatpush1.bf16.msra.mxu0 %v500
      %510 = vmatprep.subr.bf16.mxu0 0
      %511 = vmatpush1.bf16.msra.mxu0 %v501
      %512 = vmatprep.subr.bf16.mxu0 0
      %513 = vmatpush1.bf16.msra.mxu0 0
      %514 = vmatprep.subr.bf16.mxu0 0
      %515 = vmatpush1.bf16.msra.mxu0 0
      %516 = vmatprep.subr.bf16.mxu0 0
      %517 = vmatpush1.bf16.msra.mxu0 0
      %518 = vmatprep.subr.bf16.mxu0 0
      %519 = vmatpush1.bf16.msra.mxu0 0
      %520 = vmatprep.subr.bf16.mxu0 0
      %521 = vmatpush1.bf16.msra.mxu0 0
      %522 = vmatprep.subr.bf16.mxu0 0
      %523 = vmatpush1.bf16.msra.mxu0 0
      %524 = vmatprep.subr.bf16.mxu0 0
      %525 = vmatpush1.bf16.msra.mxu0 0
      %526 = vmatprep.subr.bf16.mxu0 0
      %527 = vmatpush1.bf16.msra.mxu0 0
      %528 = vmatprep.subr.bf16.mxu0 0
      %529 = vmatpush1.bf16.msra.mxu0 0
      %530 = vmatprep.subr.bf16.mxu0 0
      %531 = vmatpush1.bf16.msra.mxu0 0
      %532 = vmatprep.subr.bf16.mxu0 0
      %533 = vmatpush1.bf16.msra.mxu0 0
      %534 = vmatprep.subr.bf16.mxu0 0
      %535 = vmatpush1.bf16.msra.mxu0 0
      %536 = vmatprep.subr.bf16.mxu0 0
      %537 = vmatpush1.bf16.msra.mxu0 0
      %538 = vmatprep.subr.bf16.mxu0 0
      %539 = vmatpush1.bf16.msra.mxu0 0
      %540 = vmatprep.mubr.bf16.mxu0 0
      %541 = vmatmul.mubr.bf16.gmra.mrb[0].mxu0 %v506
      %v542 = vpop.f32.mrb[0].mxu0
      %v543 = vadd.f32 %v490, %v542
      %v544 = vpop.f32.mrb[0].mxu0
      %v545 = vpop.f32.mrb[0].mxu0
      %v546 = vpop.f32.mrb[0].mxu0
      %547 = vdwg.mxu0
      %v548 = vmul.f32 %v543, 0.35355338
      %v549 = vpack.c.bf16 %v548, %v548
      %v550 = vpack.c.bf16 %v543, %v543
      %v552 = vlaneseq
      %v553 = vshrl.u32 %v552, 7
      %v554 = vsub.s32 0, %v553
      %v555 = vrot.slane %v479, %v554
      %558 = vrot.lane.b32.xlu0 %v550, 96
      %v559 = vpop.permute.xlu0 %558
      %vm560 = vcmask 64512
      %v562 = vsel %vm560, %v549, 0
      %v565 = vsel %vm560, %v559, 0
      %567 = vmatprep.subr.bf16.mxu0 0
      %568 = vmatpush1.bf16.xpose.msra.mxu0 %v565
      %569 = vmatprep.subr.bf16.mxu0 0
      %570 = vmatpush1.bf16.xpose.msra.mxu0 0
      %571 = vmatprep.subr.bf16.mxu0 0
      %572 = vmatpush1.bf16.xpose.msra.mxu0 0
      %573 = vmatprep.subr.bf16.mxu0 0
      %574 = vmatpush1.bf16.xpose.msra.mxu0 0
      %575 = vmatprep.subr.bf16.mxu0 0
      %576 = vmatpush1.bf16.xpose.msra.mxu0 0
      %577 = vmatprep.subr.bf16.mxu0 0
      %578 = vmatpush1.bf16.xpose.msra.mxu0 0
      %579 = vmatprep.subr.bf16.mxu0 0
      %580 = vmatpush1.bf16.xpose.msra.mxu0 0
      %581 = vmatprep.subr.bf16.mxu0 0
      %582 = vmatpush1.bf16.xpose.msra.mxu0 0
      %583 = vmatprep.subr.bf16.mxu0 0
      %584 = vmatpush1.bf16.xpose.msra.mxu0 0
      %585 = vmatprep.subr.bf16.mxu0 0
      %586 = vmatpush1.bf16.xpose.msra.mxu0 0
      %587 = vmatprep.subr.bf16.mxu0 0
      %588 = vmatpush1.bf16.xpose.msra.mxu0 0
      %589 = vmatprep.subr.bf16.mxu0 0
      %590 = vmatpush1.bf16.xpose.msra.mxu0 0
      %591 = vmatprep.subr.bf16.mxu0 0
      %592 = vmatpush1.bf16.xpose.msra.mxu0 0
      %593 = vmatprep.subr.bf16.mxu0 0
      %594 = vmatpush1.bf16.xpose.msra.mxu0 0
      %595 = vmatprep.subr.bf16.mxu0 0
      %596 = vmatpush1.bf16.xpose.msra.mxu0 0
      %597 = vmatprep.subr.bf16.mxu0 0
      %598 = vmatpush1.bf16.xpose.msra.mxu0 0
      %599 = vmatprep.mubr.bf16.mxu0 0
      %600 = vmatmul.mubr.bf16.gmra.mrb[0].mxu0 %v562
      %v601 = vpop.f32.mrb[0].mxu0
      %v602 = vadd.f32 %v555, %v601
      %v603 = vpop.f32.mrb[0].mxu0
      %v604 = vpop.f32.mrb[0].mxu0
      %v605 = vpop.f32.mrb[0].mxu0
      %606 = vdwg.mxu0
      %v607 = vsel %vm560, %v602, -inf
      %608 = vmax.xlane.f32.xlu0 %v607
      %v609 = vpop.xlane.xlu0 %608
      %v610 = vsub.f32 %v602, %v609
      %v611 = vmul.f32 %v610, 1.442695
      %v612 = vpow.pop %v611
      %v613 = vsel %vm560, %v612, 0.0
      %614 = vadd.xlane.f32.xlu0 %v613
      %v615 = vpop.xlane.xlu0 %614
      %v616 = vpack.c.bf16 %v612, %v612
      %617 = vrot.lane.b32.xlu0 %v550, 64
      %v618 = vpop.permute.xlu0 %617
      %v620 = vsel %vm560, %v616, 0
      %vm622 = vcmask 1043456
      %v624 = vsel %vm622, %v618, 0
      %626 = vmatprep.subr.bf16.mxu0 0
      %627 = vmatpush1.bf16.msra.mxu0 %v624
      %628 = vmatprep.subr.bf16.mxu0 0
      %629 = vmatpush1.bf16.msra.mxu0 0
      %630 = vmatprep.subr.bf16.mxu0 0
      %631 = vmatpush1.bf16.msra.mxu0 0
      %632 = vmatprep.subr.bf16.mxu0 0
      %633 = vmatpush1.bf16.msra.mxu0 0
      %634 = vmatprep.subr.bf16.mxu0 0
      %635 = vmatpush1.bf16.msra.mxu0 0
      %636 = vmatprep.subr.bf16.mxu0 0
      %637 = vmatpush1.bf16.msra.mxu0 0
      %638 = vmatprep.subr.bf16.mxu0 0
      %639 = vmatpush1.bf16.msra.mxu0 0
      %640 = vmatprep.subr.bf16.mxu0 0
      %641 = vmatpush1.bf16.msra.mxu0 0
      %642 = vmatprep.subr.bf16.mxu0 0
      %643 = vmatpush1.bf16.msra.mxu0 0
      %644 = vmatprep.subr.bf16.mxu0 0
      %645 = vmatpush1.bf16.msra.mxu0 0
      %646 = vmatprep.subr.bf16.mxu0 0
      %647 = vmatpush1.bf16.msra.mxu0 0
      %648 = vmatprep.subr.bf16.mxu0 0
      %649 = vmatpush1.bf16.msra.mxu0 0
      %650 = vmatprep.subr.bf16.mxu0 0
      %651 = vmatpush1.bf16.msra.mxu0 0
      %652 = vmatprep.subr.bf16.mxu0 0
      %653 = vmatpush1.bf16.msra.mxu0 0
      %654 = vmatprep.subr.bf16.mxu0 0
      %655 = vmatpush1.bf16.msra.mxu0 0
      %656 = vmatprep.subr.bf16.mxu0 0
      %657 = vmatpush1.bf16.msra.mxu0 0
      %658 = vmatprep.mubr.bf16.mxu0 0
      %659 = vmatmul.mubr.bf16.gmra.mrb[0].mxu0 %v620
      %v660 = vpop.f32.mrb[0].mxu0
      %v661 = vadd.f32 0.0, %v660
      %v662 = vpop.f32.mrb[0].mxu0
      %v663 = vpop.f32.mrb[0].mxu0
      %v664 = vpop.f32.mrb[0].mxu0
      %665 = vdwg.mxu0
      %v666 = vrcp.pop %v615
      %v667 = vmul.f32 %v661, %v666
      %v668 = vpack.c.bf16 %v667, %v667
      %v669 = vld [vmem:[%s4] sm:$0xf]
      %671 = vrot.lane.b32.xlu0 %v549, 120
      %v672 = vpop.permute.xlu0 %671
      %673 = vrot.lane.b32.xlu0 %v550, 88
      %v674 = vpop.permute.xlu0 %673
      %v676 = vsel %vm560, %v672, 0
      %v679 = vsel %vm560, %v674, 0
      %681 = vmatprep.subr.bf16.mxu0 0
      %682 = vmatpush1.bf16.xpose.msra.mxu0 %v679
      %683 = vmatprep.subr.bf16.mxu0 0
      %684 = vmatpush1.bf16.xpose.msra.mxu0 0
      %685 = vmatprep.subr.bf16.mxu0 0
      %686 = vmatpush1.bf16.xpose.msra.mxu0 0
      %687 = vmatprep.subr.bf16.mxu0 0
      %688 = vmatpush1.bf16.xpose.msra.mxu0 0
      %689 = vmatprep.subr.bf16.mxu0 0
      %690 = vmatpush1.bf16.xpose.msra.mxu0 0
      %691 = vmatprep.subr.bf16.mxu0 0
      %692 = vmatpush1.bf16.xpose.msra.mxu0 0
      %693 = vmatprep.subr.bf16.mxu0 0
      %694 = vmatpush1.bf16.xpose.msra.mxu0 0
      %695 = vmatprep.subr.bf16.mxu0 0
      %696 = vmatpush1.bf16.xpose.msra.mxu0 0
      %697 = vmatprep.subr.bf16.mxu0 0
      %698 = vmatpush1.bf16.xpose.msra.mxu0 0
      %699 = vmatprep.subr.bf16.mxu0 0
      %700 = vmatpush1.bf16.xpose.msra.mxu0 0
      %701 = vmatprep.subr.bf16.mxu0 0
      %702 = vmatpush1.bf16.xpose.msra.mxu0 0
      %703 = vmatprep.subr.bf16.mxu0 0
      %704 = vmatpush1.bf16.xpose.msra.mxu0 0
      %705 = vmatprep.subr.bf16.mxu0 0
      %706 = vmatpush1.bf16.xpose.msra.mxu0 0
      %707 = vmatprep.subr.bf16.mxu0 0
      %708 = vmatpush1.bf16.xpose.msra.mxu0 0
      %709 = vmatprep.subr.bf16.mxu0 0
      %710 = vmatpush1.bf16.xpose.msra.mxu0 0
      %711 = vmatprep.subr.bf16.mxu0 0
      %712 = vmatpush1.bf16.xpose.msra.mxu0 0
      %713 = vmatprep.mubr.bf16.mxu0 0
      %714 = vmatmul.mubr.bf16.gmra.mrb[0].mxu0 %v676
      %v715 = vpop.f32.mrb[0].mxu0
      %v716 = vadd.f32 %v555, %v715
      %v717 = vpop.f32.mrb[0].mxu0
      %v718 = vpop.f32.mrb[0].mxu0
      %v719 = vpop.f32.mrb[0].mxu0
      %720 = vdwg.mxu0
      %v721 = vsel %vm560, %v716, -inf
      %722 = vmax.xlane.f32.xlu0 %v721
      %v723 = vpop.xlane.xlu0 %722
      %v724 = vsub.f32 %v716, %v723
      %v725 = vmul.f32 %v724, 1.442695
      %v726 = vpow.pop %v725
      %v727 = vsel %vm560, %v726, 0.0
      %728 = vadd.xlane.f32.xlu0 %v727
      %v729 = vpop.xlane.xlu0 %728
      %v730 = vpack.c.bf16 %v726, %v726
      %731 = vrot.lane.b32.xlu0 %v550, 56
      %v732 = vpop.permute.xlu0 %731
      %v734 = vsel %vm560, %v730, 0
      %v737 = vsel %vm622, %v732, 0
      %739 = vmatprep.subr.bf16.mxu0 0
      %740 = vmatpush1.bf16.msra.mxu0 %v737
      %741 = vmatprep.subr.bf16.mxu0 0
      %742 = vmatpush1.bf16.msra.mxu0 0
      %743 = vmatprep.subr.bf16.mxu0 0
      %744 = vmatpush1.bf16.msra.mxu0 0
      %745 = vmatprep.subr.bf16.mxu0 0
      %746 = vmatpush1.bf16.msra.mxu0 0
      %747 = vmatprep.subr.bf16.mxu0 0
      %748 = vmatpush1.bf16.msra.mxu0 0
      %749 = vmatprep.subr.bf16.mxu0 0
      %750 = vmatpush1.bf16.msra.mxu0 0
      %751 = vmatprep.subr.bf16.mxu0 0
      %752 = vmatpush1.bf16.msra.mxu0 0
      %753 = vmatprep.subr.bf16.mxu0 0
      %754 = vmatpush1.bf16.msra.mxu0 0
      %755 = vmatprep.subr.bf16.mxu0 0
      %756 = vmatpush1.bf16.msra.mxu0 0
      %757 = vmatprep.subr.bf16.mxu0 0
      %758 = vmatpush1.bf16.msra.mxu0 0
      %759 = vmatprep.subr.bf16.mxu0 0
      %760 = vmatpush1.bf16.msra.mxu0 0
      %761 = vmatprep.subr.bf16.mxu0 0
      %762 = vmatpush1.bf16.msra.mxu0 0
      %763 = vmatprep.subr.bf16.mxu0 0
      %764 = vmatpush1.bf16.msra.mxu0 0
      %765 = vmatprep.subr.bf16.mxu0 0
      %766 = vmatpush1.bf16.msra.mxu0 0
      %767 = vmatprep.subr.bf16.mxu0 0
      %768 = vmatpush1.bf16.msra.mxu0 0
      %769 = vmatprep.subr.bf16.mxu0 0
      %770 = vmatpush1.bf16.msra.mxu0 0
      %771 = vmatprep.mubr.bf16.mxu0 0
      %772 = vmatmul.mubr.bf16.gmra.mrb[0].mxu0 %v734
      %v773 = vpop.f32.mrb[0].mxu0
      %v774 = vadd.f32 0.0, %v773
      %v775 = vpop.f32.mrb[0].mxu0
      %v776 = vpop.f32.mrb[0].mxu0
      %v777 = vpop.f32.mrb[0].mxu0
      %778 = vdwg.mxu0
      %v779 = vrcp.pop %v729
      %v780 = vmul.f32 %v774, %v779
      %v781 = vpack.c.bf16 %v780, %v780
      %s782 = scalar_lea.vmem %s4, 4
      %v783 = vld [vmem:[%s782] sm:$0xf]
      %v785 = vsel %vm560, %v781, 0
      %v788 = vsel %vm622, %v783, 0
      %790 = vmatprep.subr.bf16.mxu0 0
      %791 = vmatpush1.bf16.msra.mxu0 %v788
      %792 = vmatprep.subr.bf16.mxu0 0
      %793 = vmatpush1.bf16.msra.mxu0 0
      %794 = vmatprep.subr.bf16.mxu0 0
      %795 = vmatpush1.bf16.msra.mxu0 0
      %796 = vmatprep.subr.bf16.mxu0 0
      %797 = vmatpush1.bf16.msra.mxu0 0
      %798 = vmatprep.subr.bf16.mxu0 0
      %799 = vmatpush1.bf16.msra.mxu0 0
      %800 = vmatprep.subr.bf16.mxu0 0
      %801 = vmatpush1.bf16.msra.mxu0 0
      %802 = vmatprep.subr.bf16.mxu0 0
      %803 = vmatpush1.bf16.msra.mxu0 0
      %804 = vmatprep.subr.bf16.mxu0 0
      %805 = vmatpush1.bf16.msra.mxu0 0
      %806 = vmatprep.subr.bf16.mxu0 0
      %807 = vmatpush1.bf16.msra.mxu0 0
      %808 = vmatprep.subr.bf16.mxu0 0
      %809 = vmatpush1.bf16.msra.mxu0 0
      %810 = vmatprep.subr.bf16.mxu0 0
      %811 = vmatpush1.bf16.msra.mxu0 0
      %812 = vmatprep.subr.bf16.mxu0 0
      %813 = vmatpush1.bf16.msra.mxu0 0
      %814 = vmatprep.subr.bf16.mxu0 0
      %815 = vmatpush1.bf16.msra.mxu0 0
      %816 = vmatprep.subr.bf16.mxu0 0
      %817 = vmatpush1.bf16.msra.mxu0 0
      %818 = vmatprep.subr.bf16.mxu0 0
      %819 = vmatpush1.bf16.msra.mxu0 0
      %820 = vmatprep.subr.bf16.mxu0 0
      %821 = vmatpush1.bf16.msra.mxu0 0
      %822 = vmatprep.mubr.bf16.mxu0 0
      %823 = vmatmul.mubr.bf16.gmra.mrb[0].mxu0 %v785
      %v824 = vpop.f32.mrb[0].mxu0
      %v825 = vadd.f32 0.0, %v824
      %v826 = vpop.f32.mrb[0].mxu0
      %v827 = vpop.f32.mrb[0].mxu0
      %v828 = vpop.f32.mrb[0].mxu0
      %829 = vdwg.mxu0
      %v831 = vsel %vm560, %v668, 0
      %v834 = vsel %vm622, %v669, 0
      %836 = vmatprep.subr.bf16.mxu0 0
      %837 = vmatpush1.bf16.msra.mxu0 %v834
      %838 = vmatprep.subr.bf16.mxu0 0
      %839 = vmatpush1.bf16.msra.mxu0 0
      %840 = vmatprep.subr.bf16.mxu0 0
      %841 = vmatpush1.bf16.msra.mxu0 0
      %842 = vmatprep.subr.bf16.mxu0 0
      %843 = vmatpush1.bf16.msra.mxu0 0
      %844 = vmatprep.subr.bf16.mxu0 0
      %845 = vmatpush1.bf16.msra.mxu0 0
      %846 = vmatprep.subr.bf16.mxu0 0
      %847 = vmatpush1.bf16.msra.mxu0 0
      %848 = vmatprep.subr.bf16.mxu0 0
      %849 = vmatpush1.bf16.msra.mxu0 0
      %850 = vmatprep.subr.bf16.mxu0 0
      %851 = vmatpush1.bf16.msra.mxu0 0
      %852 = vmatprep.subr.bf16.mxu0 0
      %853 = vmatpush1.bf16.msra.mxu0 0
      %854 = vmatprep.subr.bf16.mxu0 0
      %855 = vmatpush1.bf16.msra.mxu0 0
      %856 = vmatprep.subr.bf16.mxu0 0
      %857 = vmatpush1.bf16.msra.mxu0 0
      %858 = vmatprep.subr.bf16.mxu0 0
      %859 = vmatpush1.bf16.msra.mxu0 0
      %860 = vmatprep.subr.bf16.mxu0 0
      %861 = vmatpush1.bf16.msra.mxu0 0
      %862 = vmatprep.subr.bf16.mxu0 0
      %863 = vmatpush1.bf16.msra.mxu0 0
      %864 = vmatprep.subr.bf16.mxu0 0
      %865 = vmatpush1.bf16.msra.mxu0 0
      %866 = vmatprep.subr.bf16.mxu0 0
      %867 = vmatpush1.bf16.msra.mxu0 0
      %868 = vmatprep.mubr.bf16.mxu0 0
      %869 = vmatmul.mubr.bf16.gmra.mrb[0].mxu0 %v831
      %v870 = vpop.f32.mrb[0].mxu0
      %v871 = vadd.f32 %v825, %v870
      %v872 = vpop.f32.mrb[0].mxu0
      %v873 = vpop.f32.mrb[0].mxu0
      %v874 = vpop.f32.mrb[0].mxu0
      %875 = vdwg.mxu0
      %876 = vrot.lane.b32.xlu0 %v549, 112
      %v877 = vpop.permute.xlu0 %876
      %878 = vrot.lane.b32.xlu0 %v550, 80
      %v879 = vpop.permute.xlu0 %878
      %v881 = vsel %vm560, %v877, 0
      %v884 = vsel %vm560, %v879, 0
      %886 = vmatprep.subr.bf16.mxu0 0
      %887 = vmatpush1.bf16.xpose.msra.mxu0 %v884
      %888 = vmatprep.subr.bf16.mxu0 0
      %889 = vmatpush1.bf16.xpose.msra.mxu0 0
      %890 = vmatprep.subr.bf16.mxu0 0
      %891 = vmatpush1.bf16.xpose.msra.mxu0 0
      %892 = vmatprep.subr.bf16.mxu0 0
      %893 = vmatpush1.bf16.xpose.msra.mxu0 0
      %894 = vmatprep.subr.bf16.mxu0 0
      %895 = vmatpush1.bf16.xpose.msra.mxu0 0
      %896 = vmatprep.subr.bf16.mxu0 0
      %897 = vmatpush1.bf16.xpose.msra.mxu0 0
      %898 = vmatprep.subr.bf16.mxu0 0
      %899 = vmatpush1.bf16.xpose.msra.mxu0 0
      %900 = vmatprep.subr.bf16.mxu0 0
      %901 = vmatpush1.bf16.xpose.msra.mxu0 0
      %902 = vmatprep.subr.bf16.mxu0 0
      %903 = vmatpush1.bf16.xpose.msra.mxu0 0
      %904 = vmatprep.subr.bf16.mxu0 0
      %905 = vmatpush1.bf16.xpose.msra.mxu0 0
      %906 = vmatprep.subr.bf16.mxu0 0
      %907 = vmatpush1.bf16.xpose.msra.mxu0 0
      %908 = vmatprep.subr.bf16.mxu0 0
      %909 = vmatpush1.bf16.xpose.msra.mxu0 0
      %910 = vmatprep.subr.bf16.mxu0 0
      %911 = vmatpush1.bf16.xpose.msra.mxu0 0
      %912 = vmatprep.subr.bf16.mxu0 0
      %913 = vmatpush1.bf16.xpose.msra.mxu0 0
      %914 = vmatprep.subr.bf16.mxu0 0
      %915 = vmatpush1.bf16.xpose.msra.mxu0 0
      %916 = vmatprep.subr.bf16.mxu0 0
      %917 = vmatpush1.bf16.xpose.msra.mxu0 0
      %918 = vmatprep.mubr.bf16.mxu0 0
      %919 = vmatmul.mubr.bf16.gmra.mrb[0].mxu0 %v881
      %v920 = vpop.f32.mrb[0].mxu0
      %v921 = vadd.f32 %v555, %v920
      %v922 = vpop.f32.mrb[0].mxu0
      %v923 = vpop.f32.mrb[0].mxu0
      %v924 = vpop.f32.mrb[0].mxu0
      %925 = vdwg.mxu0
      %v926 = vsel %vm560, %v921, -inf
      %927 = vmax.xlane.f32.xlu0 %v926
      %v928 = vpop.xlane.xlu0 %927
      %v929 = vsub.f32 %v921, %v928
      %v930 = vmul.f32 %v929, 1.442695
      %v931 = vpow.pop %v930
      %v932 = vsel %vm560, %v931, 0.0
      %933 = vadd.xlane.f32.xlu0 %v932
      %v934 = vpop.xlane.xlu0 %933
      %v935 = vpack.c.bf16 %v931, %v931
      %936 = vrot.lane.b32.xlu0 %v550, 48
      %v937 = vpop.permute.xlu0 %936
      %v939 = vsel %vm560, %v935, 0
      %v942 = vsel %vm622, %v937, 0
      %944 = vmatprep.subr.bf16.mxu0 0
      %945 = vmatpush1.bf16.msra.mxu0 %v942
      %946 = vmatprep.subr.bf16.mxu0 0
      %947 = vmatpush1.bf16.msra.mxu0 0
      %948 = vmatprep.subr.bf16.mxu0 0
      %949 = vmatpush1.bf16.msra.mxu0 0
      %950 = vmatprep.subr.bf16.mxu0 0
      %951 = vmatpush1.bf16.msra.mxu0 0
      %952 = vmatprep.subr.bf16.mxu0 0
      %953 = vmatpush1.bf16.msra.mxu0 0
      %954 = vmatprep.subr.bf16.mxu0 0
      %955 = vmatpush1.bf16.msra.mxu0 0
      %956 = vmatprep.subr.bf16.mxu0 0
      %957 = vmatpush1.bf16.msra.mxu0 0
      %958 = vmatprep.subr.bf16.mxu0 0
      %959 = vmatpush1.bf16.msra.mxu0 0
      %960 = vmatprep.subr.bf16.mxu0 0
      %961 = vmatpush1.bf16.msra.mxu0 0
      %962 = vmatprep.subr.bf16.mxu0 0
      %963 = vmatpush1.bf16.msra.mxu0 0
      %964 = vmatprep.subr.bf16.mxu0 0
      %965 = vmatpush1.bf16.msra.mxu0 0
      %966 = vmatprep.subr.bf16.mxu0 0
      %967 = vmatpush1.bf16.msra.mxu0 0
      %968 = vmatprep.subr.bf16.mxu0 0
      %969 = vmatpush1.bf16.msra.mxu0 0
      %970 = vmatprep.subr.bf16.mxu0 0
      %971 = vmatpush1.bf16.msra.mxu0 0
      %972 = vmatprep.subr.bf16.mxu0 0
      %973 = vmatpush1.bf16.msra.mxu0 0
      %974 = vmatprep.subr.bf16.mxu0 0
      %975 = vmatpush1.bf16.msra.mxu0 0
      %976 = vmatprep.mubr.bf16.mxu0 0
      %977 = vmatmul.mubr.bf16.gmra.mrb[0].mxu0 %v939
      %v978 = vpop.f32.mrb[0].mxu0
      %v979 = vadd.f32 0.0, %v978
      %v980 = vpop.f32.mrb[0].mxu0
      %v981 = vpop.f32.mrb[0].mxu0
      %v982 = vpop.f32.mrb[0].mxu0
      %983 = vdwg.mxu0
      %v984 = vrcp.pop %v934
      %v985 = vmul.f32 %v979, %v984
      %v986 = vpack.c.bf16 %v985, %v985
      %s987 = scalar_lea.vmem %s4, 8
      %v988 = vld [vmem:[%s987] sm:$0xf]
      %v990 = vsel %vm560, %v986, 0
      %v993 = vsel %vm622, %v988, 0
      %995 = vmatprep.subr.bf16.mxu0 0
      %996 = vmatpush1.bf16.msra.mxu0 %v993
      %997 = vmatprep.subr.bf16.mxu0 0
      %998 = vmatpush1.bf16.msra.mxu0 0
      %999 = vmatprep.subr.bf16.mxu0 0
      %1000 = vmatpush1.bf16.msra.mxu0 0
      %1001 = vmatprep.subr.bf16.mxu0 0
      %1002 = vmatpush1.bf16.msra.mxu0 0
      %1003 = vmatprep.subr.bf16.mxu0 0
      %1004 = vmatpush1.bf16.msra.mxu0 0
      %1005 = vmatprep.subr.bf16.mxu0 0
      %1006 = vmatpush1.bf16.msra.mxu0 0
      %1007 = vmatprep.subr.bf16.mxu0 0
      %1008 = vmatpush1.bf16.msra.mxu0 0
      %1009 = vmatprep.subr.bf16.mxu0 0
      %1010 = vmatpush1.bf16.msra.mxu0 0
      %1011 = vmatprep.subr.bf16.mxu0 0
      %1012 = vmatpush1.bf16.msra.mxu0 0
      %1013 = vmatprep.subr.bf16.mxu0 0
      %1014 = vmatpush1.bf16.msra.mxu0 0
      %1015 = vmatprep.subr.bf16.mxu0 0
      %1016 = vmatpush1.bf16.msra.mxu0 0
      %1017 = vmatprep.subr.bf16.mxu0 0
      %1018 = vmatpush1.bf16.msra.mxu0 0
      %1019 = vmatprep.subr.bf16.mxu0 0
      %1020 = vmatpush1.bf16.msra.mxu0 0
      %1021 = vmatprep.subr.bf16.mxu0 0
      %1022 = vmatpush1.bf16.msra.mxu0 0
      %1023 = vmatprep.subr.bf16.mxu0 0
      %1024 = vmatpush1.bf16.msra.mxu0 0
      %1025 = vmatprep.subr.bf16.mxu0 0
      %1026 = vmatpush1.bf16.msra.mxu0 0
      %1027 = vmatprep.mubr.bf16.mxu0 0
      %1028 = vmatmul.mubr.bf16.gmra.mrb[0].mxu0 %v990
      %v1029 = vpop.f32.mrb[0].mxu0
      %v1030 = vadd.f32 0.0, %v1029
      %v1031 = vpop.f32.mrb[0].mxu0
      %v1032 = vpop.f32.mrb[0].mxu0
      %v1033 = vpop.f32.mrb[0].mxu0
      %1034 = vdwg.mxu0
      %v1035 = vadd.f32 %v871, %v1030
      %1036 = vrot.lane.b32.xlu0 %v549, 104
      %v1037 = vpop.permute.xlu0 %1036
      %1038 = vrot.lane.b32.xlu0 %v550, 72
      %v1039 = vpop.permute.xlu0 %1038
      %v1041 = vsel %vm560, %v1037, 0
      %v1044 = vsel %vm560, %v1039, 0
      %1046 = vmatprep.subr.bf16.mxu0 0
      %1047 = vmatpush1.bf16.xpose.msra.mxu0 %v1044
      %1048 = vmatprep.subr.bf16.mxu0 0
      %1049 = vmatpush1.bf16.xpose.msra.mxu0 0
      %1050 = vmatprep.subr.bf16.mxu0 0
      %1051 = vmatpush1.bf16.xpose.msra.mxu0 0
      %1052 = vmatprep.subr.bf16.mxu0 0
      %1053 = vmatpush1.bf16.xpose.msra.mxu0 0
      %1054 = vmatprep.subr.bf16.mxu0 0
      %1055 = vmatpush1.bf16.xpose.msra.mxu0 0
      %1056 = vmatprep.subr.bf16.mxu0 0
      %1057 = vmatpush1.bf16.xpose.msra.mxu0 0
      %1058 = vmatprep.subr.bf16.mxu0 0
      %1059 = vmatpush1.bf16.xpose.msra.mxu0 0
      %1060 = vmatprep.subr.bf16.mxu0 0
      %1061 = vmatpush1.bf16.xpose.msra.mxu0 0
      %1062 = vmatprep.subr.bf16.mxu0 0
      %1063 = vmatpush1.bf16.xpose.msra.mxu0 0
      %1064 = vmatprep.subr.bf16.mxu0 0
      %1065 = vmatpush1.bf16.xpose.msra.mxu0 0
      %1066 = vmatprep.subr.bf16.mxu0 0
      %1067 = vmatpush1.bf16.xpose.msra.mxu0 0
      %1068 = vmatprep.subr.bf16.mxu0 0
      %1069 = vmatpush1.bf16.xpose.msra.mxu0 0
      %1070 = vmatprep.subr.bf16.mxu0 0
      %1071 = vmatpush1.bf16.xpose.msra.mxu0 0
      %1072 = vmatprep.subr.bf16.mxu0 0
      %1073 = vmatpush1.bf16.xpose.msra.mxu0 0
      %1074 = vmatprep.subr.bf16.mxu0 0
      %1075 = vmatpush1.bf16.xpose.msra.mxu0 0
      %1076 = vmatprep.subr.bf16.mxu0 0
      %1077 = vmatpush1.bf16.xpose.msra.mxu0 0
      %1078 = vmatprep.mubr.bf16.mxu0 0
      %1079 = vmatmul.mubr.bf16.gmra.mrb[0].mxu0 %v1041
      %v1080 = vpop.f32.mrb[0].mxu0
      %v1081 = vadd.f32 %v555, %v1080
      %v1082 = vpop.f32.mrb[0].mxu0
      %v1083 = vpop.f32.mrb[0].mxu0
      %v1084 = vpop.f32.mrb[0].mxu0
      %1085 = vdwg.mxu0
      %v1086 = vsel %vm560, %v1081, -inf
      %1087 = vmax.xlane.f32.xlu0 %v1086
      %v1088 = vpop.xlane.xlu0 %1087
      %v1089 = vsub.f32 %v1081, %v1088
      %v1090 = vmul.f32 %v1089, 1.442695
      %v1091 = vpow.pop %v1090
      %v1092 = vsel %vm560, %v1091, 0.0
      %1093 = vadd.xlane.f32.xlu0 %v1092
      %v1094 = vpop.xlane.xlu0 %1093
      %v1095 = vpack.c.bf16 %v1091, %v1091
      %1096 = vrot.lane.b32.xlu0 %v550, 40
      %v1097 = vpop.permute.xlu0 %1096
      %v1099 = vsel %vm560, %v1095, 0
      %v1102 = vsel %vm622, %v1097, 0
      %1104 = vmatprep.subr.bf16.mxu0 0
      %1105 = vmatpush1.bf16.msra.mxu0 %v1102
      %1106 = vmatprep.subr.bf16.mxu0 0
      %1107 = vmatpush1.bf16.msra.mxu0 0
      %1108 = vmatprep.subr.bf16.mxu0 0
      %1109 = vmatpush1.bf16.msra.mxu0 0
      %1110 = vmatprep.subr.bf16.mxu0 0
      %1111 = vmatpush1.bf16.msra.mxu0 0
      %1112 = vmatprep.subr.bf16.mxu0 0
      %1113 = vmatpush1.bf16.msra.mxu0 0
      %1114 = vmatprep.subr.bf16.mxu0 0
      %1115 = vmatpush1.bf16.msra.mxu0 0
      %1116 = vmatprep.subr.bf16.mxu0 0
      %1117 = vmatpush1.bf16.msra.mxu0 0
      %1118 = vmatprep.subr.bf16.mxu0 0
      %1119 = vmatpush1.bf16.msra.mxu0 0
      %1120 = vmatprep.subr.bf16.mxu0 0
      %1121 = vmatpush1.bf16.msra.mxu0 0
      %1122 = vmatprep.subr.bf16.mxu0 0
      %1123 = vmatpush1.bf16.msra.mxu0 0
      %1124 = vmatprep.subr.bf16.mxu0 0
      %1125 = vmatpush1.bf16.msra.mxu0 0
      %1126 = vmatprep.subr.bf16.mxu0 0
      %1127 = vmatpush1.bf16.msra.mxu0 0
      %1128 = vmatprep.subr.bf16.mxu0 0
      %1129 = vmatpush1.bf16.msra.mxu0 0
      %1130 = vmatprep.subr.bf16.mxu0 0
      %1131 = vmatpush1.bf16.msra.mxu0 0
      %1132 = vmatprep.subr.bf16.mxu0 0
      %1133 = vmatpush1.bf16.msra.mxu0 0
      %1134 = vmatprep.subr.bf16.mxu0 0
      %1135 = vmatpush1.bf16.msra.mxu0 0
      %1136 = vmatprep.mubr.bf16.mxu0 0
      %1137 = vmatmul.mubr.bf16.gmra.mrb[0].mxu0 %v1099
      %v1138 = vpop.f32.mrb[0].mxu0
      %v1139 = vadd.f32 0.0, %v1138
      %v1140 = vpop.f32.mrb[0].mxu0
      %v1141 = vpop.f32.mrb[0].mxu0
      %v1142 = vpop.f32.mrb[0].mxu0
      %1143 = vdwg.mxu0
      %v1144 = vrcp.pop %v1094
      %v1145 = vmul.f32 %v1139, %v1144
      %v1146 = vpack.c.bf16 %v1145, %v1145
      %s1147 = scalar_lea.vmem %s4, 12
      %v1148 = vld [vmem:[%s1147] sm:$0xf]
      %v1150 = vsel %vm560, %v1146, 0
      %v1153 = vsel %vm622, %v1148, 0
      %1155 = vmatprep.subr.bf16.mxu0 0
      %1156 = vmatpush1.bf16.msra.mxu0 %v1153
      %1157 = vmatprep.subr.bf16.mxu0 0
      %1158 = vmatpush1.bf16.msra.mxu0 0
      %1159 = vmatprep.subr.bf16.mxu0 0
      %1160 = vmatpush1.bf16.msra.mxu0 0
      %1161 = vmatprep.subr.bf16.mxu0 0
      %1162 = vmatpush1.bf16.msra.mxu0 0
      %1163 = vmatprep.subr.bf16.mxu0 0
      %1164 = vmatpush1.bf16.msra.mxu0 0
      %1165 = vmatprep.subr.bf16.mxu0 0
      %1166 = vmatpush1.bf16.msra.mxu0 0
      %1167 = vmatprep.subr.bf16.mxu0 0
      %1168 = vmatpush1.bf16.msra.mxu0 0
      %1169 = vmatprep.subr.bf16.mxu0 0
      %1170 = vmatpush1.bf16.msra.mxu0 0
      %1171 = vmatprep.subr.bf16.mxu0 0
      %1172 = vmatpush1.bf16.msra.mxu0 0
      %1173 = vmatprep.subr.bf16.mxu0 0
      %1174 = vmatpush1.bf16.msra.mxu0 0
      %1175 = vmatprep.subr.bf16.mxu0 0
      %1176 = vmatpush1.bf16.msra.mxu0 0
      %1177 = vmatprep.subr.bf16.mxu0 0
      %1178 = vmatpush1.bf16.msra.mxu0 0
      %1179 = vmatprep.subr.bf16.mxu0 0
      %1180 = vmatpush1.bf16.msra.mxu0 0
      %1181 = vmatprep.subr.bf16.mxu0 0
      %1182 = vmatpush1.bf16.msra.mxu0 0
      %1183 = vmatprep.subr.bf16.mxu0 0
      %1184 = vmatpush1.bf16.msra.mxu0 0
      %1185 = vmatprep.subr.bf16.mxu0 0
      %1186 = vmatpush1.bf16.msra.mxu0 0
      %1187 = vmatprep.mubr.bf16.mxu0 0
      %1188 = vmatmul.mubr.bf16.gmra.mrb[0].mxu0 %v1150
      %v1189 = vpop.f32.mrb[0].mxu0
      %v1190 = vadd.f32 0.0, %v1189
      %v1191 = vpop.f32.mrb[0].mxu0
      %v1192 = vpop.f32.mrb[0].mxu0
      %v1193 = vpop.f32.mrb[0].mxu0
      %1194 = vdwg.mxu0
      %v1195 = vadd.f32 %v1035, %v1190
      %v1196 = vld [vmem:[%s5] sm:$0x1]
      %v1198 = vlaneseq
      %v1199 = vshrl.u32 %v1198, 7
      %v1200 = vsub.s32 0, %v1199
      %v1201 = vrot.slane %v1196, %v1200
      %v1203 = vadd.f32 %v1195, %v1201
      %v1204 = vadd.f32 %v1203, %v478
      %v1205 = vld [vmem:[%s6] sm:$0x1]
      %v1206 = vld [vmem:[%s7] sm:$0x1]
      %v1207 = vsel %vm504, %v1204, 0.0
      %1208 = vadd.xlane.f32.xlu0 %v1207
      %v1209 = vpop.xlane.xlu0 %1208
      %v1210 = vrcp.pop 32.0
      %v1211 = vmul.f32 %v1209, %v1210
      %v1212 = vsub.f32 %v1204, %v1211
      %v1213 = vmul.f32 %v1212, %v1212
      %v1214 = vsel %vm504, %v1213, 0.0
      %1215 = vadd.xlane.f32.xlu0 %v1214
      %v1216 = vpop.xlane.xlu0 %1215
      %v1217 = vmul.f32 %v1216, %v1210
      %v1218 = vadd.f32 %v1217, 1e-12
      %v1219 = vrsqrt.pop %v1218
      %v1220 = vmul.f32 %v1212, %v1219
      %v1222 = vlaneseq
      %v1223 = vshrl.u32 %v1222, 7
      %v1224 = vsub.s32 0, %v1223
      %v1225 = vrot.slane %v1205, %v1224
      %v1227 = vmul.f32 %v1220, %v1225
      %v1229 = vlaneseq
      %v1230 = vshrl.u32 %v1229, 7
      %v1231 = vsub.s32 0, %v1230
      %v1232 = vrot.slane %v1206, %v1231
      %v1234 = vadd.f32 %v1227, %v1232
      %v1235 = vpack.c.bf16 %v1234, %v1234
      %v1236 = vld [vmem:[%s8] sm:$0xf]
      %v1237 = vld [vmem:[%s8 + $0x4] sm:$0xf]
      %v1238 = vld [vmem:[%s8 + $0x8] sm:$0xf]
      %v1239 = vld [vmem:[%s8 + $0xc] sm:$0xf]
      %v1240 = vld [vmem:[%s9] sm:$0x1]
      %v1242 = vlaneseq
      %v1243 = vshrl.u32 %v1242, 7
      %v1244 = vsub.s32 0, %v1243
      %v1245 = vrot.slane %v1240, %v1244
      %v1251 = vunpack.c.l.b16 %v1236
      %v1252 = vunpack.c.l.b16 %v1237
      %v1253 = vunpack.c.l.b16 %v1238
      %v1254 = vunpack.c.l.b16 %v1239
      %v1255 = vpack.c.b16 %v1252, %v1251
      %v1256 = vpack.c.b16 %v1254, %v1253
      %v1260 = vsel %vm504, %v1235, 0
      %1262 = vmatprep.subr.bf16.mxu0 0
      %1263 = vmatpush1.bf16.msra.mxu0 %v1255
      %1264 = vmatprep.subr.bf16.mxu0 0
      %1265 = vmatpush1.bf16.msra.mxu0 %v1256
      %1266 = vmatprep.subr.bf16.mxu0 0
      %1267 = vmatpush1.bf16.msra.mxu0 0
      %1268 = vmatprep.subr.bf16.mxu0 0
      %1269 = vmatpush1.bf16.msra.mxu0 0
      %1270 = vmatprep.subr.bf16.mxu0 0
      %1271 = vmatpush1.bf16.msra.mxu0 0
      %1272 = vmatprep.subr.bf16.mxu0 0
      %1273 = vmatpush1.bf16.msra.mxu0 0
      %1274 = vmatprep.subr.bf16.mxu0 0
      %1275 = vmatpush1.bf16.msra.mxu0 0
      %1276 = vmatprep.subr.bf16.mxu0 0
      %1277 = vmatpush1.bf16.msra.mxu0 0
      %1278 = vmatprep.subr.bf16.mxu0 0
      %1279 = vmatpush1.bf16.msra.mxu0 0
      %1280 = vmatprep.subr.bf16.mxu0 0
      %1281 = vmatpush1.bf16.msra.mxu0 0
      %1282 = vmatprep.subr.bf16.mxu0 0
      %1283 = vmatpush1.bf16.msra.mxu0 0
      %1284 = vmatprep.subr.bf16.mxu0 0
      %1285 = vmatpush1.bf16.msra.mxu0 0
      %1286 = vmatprep.subr.bf16.mxu0 0
      %1287 = vmatpush1.bf16.msra.mxu0 0
      %1288 = vmatprep.subr.bf16.mxu0 0
      %1289 = vmatpush1.bf16.msra.mxu0 0
      %1290 = vmatprep.subr.bf16.mxu0 0
      %1291 = vmatpush1.bf16.msra.mxu0 0
      %1292 = vmatprep.subr.bf16.mxu0 0
      %1293 = vmatpush1.bf16.msra.mxu0 0
      %1294 = vmatprep.mubr.bf16.mxu0 0
      %1295 = vmatmul.mubr.bf16.gmra.mrb[0].mxu0 %v1260
      %v1296 = vpop.f32.mrb[0].mxu0
      %v1297 = vadd.f32 %v1245, %v1296
      %v1298 = vpop.f32.mrb[0].mxu0
      %v1299 = vpop.f32.mrb[0].mxu0
      %v1300 = vpop.f32.mrb[0].mxu0
      %1301 = vdwg.mxu0
      %v1302 = vmul.f32 %v1297, 0.5
      %v1303 = vmul.f32 %v1297, 0.044715
      %v1304 = vmul.f32 %v1303, %v1297
      %v1305 = vmul.f32 %v1304, %v1297
      %v1306 = vadd.f32 %v1297, %v1305
      %v1307 = vmul.f32 %v1306, 0.7978846
      %v1308 = vtanh.pop %v1307
      %v1309 = vadd.f32 %v1308, 1.0
      %v1310 = vmul.f32 %v1302, %v1309
      %v1311 = vpack.c.bf16 %v1310, %v1310
      %v1312 = vld [vmem:[%s10] sm:$0xf]
      %v1313 = vld [vmem:[%s10 + $0x4] sm:$0xf]
      %v1314 = vld [vmem:[%s10 + $0x8] sm:$0xf]
      %v1315 = vld [vmem:[%s10 + $0xc] sm:$0xf]
      %v1316 = vld [vmem:[%s10 + $0x10] sm:$0xf]
      %v1317 = vld [vmem:[%s10 + $0x14] sm:$0xf]
      %v1318 = vld [vmem:[%s10 + $0x18] sm:$0xf]
      %v1319 = vld [vmem:[%s10 + $0x1c] sm:$0xf]
      %v1320 = vld [vmem:[%s11] sm:$0x1]
      %v1322 = vlaneseq
      %v1323 = vshrl.u32 %v1322, 7
      %v1324 = vsub.s32 0, %v1323
      %v1325 = vrot.slane %v1320, %v1324
      %v1335 = vunpack.c.l.b16 %v1312
      %v1336 = vunpack.c.l.b16 %v1313
      %v1337 = vunpack.c.l.b16 %v1314
      %v1338 = vunpack.c.l.b16 %v1315
      %v1339 = vunpack.c.l.b16 %v1316
      %v1340 = vunpack.c.l.b16 %v1317
      %v1341 = vunpack.c.l.b16 %v1318
      %v1342 = vunpack.c.l.b16 %v1319
      %v1343 = vpack.c.b16 %v1336, %v1335
      %v1344 = vpack.c.b16 %v1338, %v1337
      %v1345 = vpack.c.b16 %v1340, %v1339
      %v1346 = vpack.c.b16 %v1342, %v1341
      %vm1351 = vcmask 523264
      %v1353 = vsel %vm1351, %v1311, 0
      %1355 = vmatprep.subr.bf16.mxu0 0
      %1356 = vmatpush1.bf16.msra.mxu0 %v1343
      %1357 = vmatprep.subr.bf16.mxu0 0
      %1358 = vmatpush1.bf16.msra.mxu0 %v1344
      %1359 = vmatprep.subr.bf16.mxu0 0
      %1360 = vmatpush1.bf16.msra.mxu0 %v1345
      %1361 = vmatprep.subr.bf16.mxu0 0
      %1362 = vmatpush1.bf16.msra.mxu0 %v1346
      %1363 = vmatprep.subr.bf16.mxu0 0
      %1364 = vmatpush1.bf16.msra.mxu0 0
      %1365 = vmatprep.subr.bf16.mxu0 0
      %1366 = vmatpush1.bf16.msra.mxu0 0
      %1367 = vmatprep.subr.bf16.mxu0 0
      %1368 = vmatpush1.bf16.msra.mxu0 0
      %1369 = vmatprep.subr.bf16.mxu0 0
      %1370 = vmatpush1.bf16.msra.mxu0 0
      %1371 = vmatprep.subr.bf16.mxu0 0
      %1372 = vmatpush1.bf16.msra.mxu0 0
      %1373 = vmatprep.subr.bf16.mxu0 0
      %1374 = vmatpush1.bf16.msra.mxu0 0
      %1375 = vmatprep.subr.bf16.mxu0 0
      %1376 = vmatpush1.bf16.msra.mxu0 0
      %1377 = vmatprep.subr.bf16.mxu0 0
      %1378 = vmatpush1.bf16.msra.mxu0 0
      %1379 = vmatprep.subr.bf16.mxu0 0
      %1380 = vmatpush1.bf16.msra.mxu0 0
      %1381 = vmatprep.subr.bf16.mxu0 0
      %1382 = vmatpush1.bf16.msra.mxu0 0
      %1383 = vmatprep.subr.bf16.mxu0 0
      %1384 = vmatpush1.bf16.msra.mxu0 0
      %1385 = vmatprep.subr.bf16.mxu0 0
      %1386 = vmatpush1.bf16.msra.mxu0 0
      %1387 = vmatprep.mubr.bf16.mxu0 0
      %1388 = vmatmul.mubr.bf16.gmra.mrb[0].mxu0 %v1353
      %v1389 = vpop.f32.mrb[0].mxu0
      %v1390 = vadd.f32 %v1325, %v1389
      %v1391 = vpop.f32.mrb[0].mxu0
      %v1392 = vpop.f32.mrb[0].mxu0
      %v1393 = vpop.f32.mrb[0].mxu0
      %1394 = vdwg.mxu0
      %v1395 = vadd.f32 %v1390, %v1234
      %v1396 = vld [vmem:[%s12] sm:$0x1]
      %v1397 = vld [vmem:[%s13] sm:$0x1]
      %v1398 = vsel %vm504, %v1395, 0.0
      %1399 = vadd.xlane.f32.xlu0 %v1398
      %v1400 = vpop.xlane.xlu0 %1399
      %v1401 = vmul.f32 %v1400, %v1210
      %v1402 = vsub.f32 %v1395, %v1401
      %v1403 = vmul.f32 %v1402, %v1402
      %v1404 = vsel %vm504, %v1403, 0.0
      %1405 = vadd.xlane.f32.xlu0 %v1404
      %v1406 = vpop.xlane.xlu0 %1405
      %v1407 = vmul.f32 %v1406, %v1210
      %v1408 = vadd.f32 %v1407, 1e-12
      %v1409 = vrsqrt.pop %v1408
      %v1410 = vmul.f32 %v1402, %v1409
      %v1412 = vlaneseq
      %v1413 = vshrl.u32 %v1412, 7
      %v1414 = vsub.s32 0, %v1413
      %v1415 = vrot.slane %v1396, %v1414
      %v1417 = vmul.f32 %v1410, %v1415
      %v1419 = vlaneseq
      %v1420 = vshrl.u32 %v1419, 7
      %v1421 = vsub.s32 0, %v1420
      %v1422 = vrot.slane %v1397, %v1421
      %v1424 = vadd.f32 %v1417, %v1422
      %1425 = vst.msk [vmem:[%s476] sm:$0xff] %vm504, %v1424
      %p1426 = scmp.lt.s32.totalorder %s25, 1
      %s1427 = scalar_select %p1426, %s25, 1
      %s1428 = smul.addr %s1427, 8
      %s1429 = scalar_lea.vmem %s14, %s1428
      // Predicated region
      $region77: #{bert_encoder_forward.24} parent=75 // pred_check
        %p1430 = pneg %p347
      $region78: #{bert_encoder_forward.24} parent=75 // pred_check_branch
        %1432 = sbr.rel (%p1430) target = $region80
      $region79: #{bert_encoder_forward.24} parent=75 // pred_region
        _
      $region80: #{bert_encoder_forward.24} parent=75 // pred_fallthru
        _
    $region76: #{bert_encoder_forward.24} parent=5 // pred_fallthru
      _
    %p1433 = scmp.le.s32.totalorder 2, %s20
    // Predicated region
    $region81: #{bert_encoder_forward.24} parent=5 // pred_check
      %p1434 = pneg %p1433
    $region82: #{bert_encoder_forward.24} parent=5 // pred_check_branch
      %1436 = sbr.rel (%p1434) target = $region84
    $region83: #{bert_encoder_forward.24} parent=5 // pred_region
      %s1437 = ssub.s32 %s20, 2
      // Predicated region
      $region85: #{bert_encoder_forward.24} parent=83 // pred_check
        %p1438 = pneg %p353
      $region86: #{bert_encoder_forward.24} parent=83 // pred_check_branch
        %1440 = sbr.rel (%p1438) target = $region88
      $region87: #{bert_encoder_forward.24} parent=83 // pred_region
        %p1441 = scmp.lt.s32.totalorder %s26, 1
        %s1442 = scalar_select %p1441, %s26, 1
        %s1443 = smul.addr %s1442, 8
        %s1444 = scalar_lea.vmem %s14, %s1443
      $region88: #{bert_encoder_forward.24} parent=83 // pred_fallthru
        _
    $region84: #{bert_encoder_forward.24} parent=5 // pred_fallthru
      _
  $region6: #{bert_encoder_forward.24} parent=0 // loop_footer
    %s24 = sadd.s32 1, %s20
  $region7: #{bert_encoder_forward.24} parent=0 // loop_footer_branch
    %19 = sbr.rel target = $region3
  $region8: #{bert_encoder_forward.24} parent=0 // loop_exit
    _

</llo_original>
